<compile_context>
chip_gen: v7x
topology: tpu7x:2x2x1
jax: 0.10.0
libtpu: 0.0.40
codegen_flags: <defaults>
</compile_context>

<pallas_src>
import functools
import math

import jax
import jax.numpy as jnp
from jax import lax
from jax.experimental import pallas as pl
from jax.experimental.pallas import tpu as pltpu


def _nbytes(shape, dtype):
    return math.prod(shape) * jnp.dtype(dtype).itemsize


def _layernorm(x, g, b, eps):
    mu = jnp.mean(x, axis=-1, keepdims=True)
    var = jnp.mean((x - mu) ** 2, axis=-1, keepdims=True)
    return (x - mu) * lax.rsqrt(var + eps) * g + b


def encoder_layer_kernel(x_ref,
                         wqkv_ref, bqkv_ref, wo_ref, bo_ref,
                         ln1g_ref, ln1b_ref,
                         w1_ref, b1_ref, w2_ref, b2_ref,
                         ln2g_ref, ln2b_ref,
                         out_ref, acc_ref, attn_ref, *, heads, eps):
    l = pl.program_id(1)
    n_layers = pl.num_programs(1)

    @pl.when(l == 0)
    def _():
        acc_ref[...] = jnp.zeros_like(acc_ref)

    x = x_ref[...]                            # (Bt, S, D) f32 residual stream
    Bt, S, D = x.shape
    hd = D // heads
    scale = 1.0 / (hd ** 0.5)
    xb = x.astype(jnp.bfloat16)

    # (Bt,S,K)@(K,N) with f32 accumulation on the MXU.
    def bdot(a, w):
        return lax.dot_general(a, w, (((2,), (0,)), ((), ())),
                               preferred_element_type=jnp.float32)

    # ---- fused QKV projection: single (Bt*S, D) @ (D, 3D) MXU pass ----------
    qkv = bdot(xb, wqkv_ref[0]) + bqkv_ref[0]          # (Bt, S, 3D) f32
    q = qkv[:, :, 0:D].astype(jnp.bfloat16)
    k = qkv[:, :, D:2 * D].astype(jnp.bfloat16)
    v = qkv[:, :, 2 * D:3 * D].astype(jnp.bfloat16)

    # ---- multi-head attention -----------------------------------------------
    # Per-head scores/softmax (static lane slices, no head-axis reshape); each
    # head output is stored into a VMEM scratch at its head offset so the output
    # projection is ONE full-D contraction and live ranges stay bounded.
    for h in range(heads):
        sl = slice(h * hd, (h + 1) * hd)
        qh, kh, vh = q[:, :, sl], k[:, :, sl], v[:, :, sl]
        s = lax.dot_general(qh, kh, (((2,), (2,)), ((0,), (0,))),
                            preferred_element_type=jnp.float32) * scale   # (Bt,S,S)
        s = s - jnp.max(s, axis=-1, keepdims=True)
        p = jnp.exp(s)
        p = p * pl.reciprocal(jnp.sum(p, axis=-1, keepdims=True), approx=True)
        oh = lax.dot_general(p.astype(jnp.bfloat16), vh,
                             (((2,), (1,)), ((0,), (0,))),
                             preferred_element_type=jnp.float32)          # (Bt,S,hd)
        attn_ref[:, :, sl] = oh

    attn = bdot(attn_ref[...].astype(jnp.bfloat16), wo_ref[0]) + bo_ref[0]

    # ---- residual + LayerNorm 1 (f32 stats) ---------------------------------
    h1 = _layernorm(x + attn, ln1g_ref[0], ln1b_ref[0], eps)

    # ---- feed-forward (relu) ------------------------------------------------
    ff = bdot(h1.astype(jnp.bfloat16), w1_ref[0]) + b1_ref[0]
    ff = jnp.maximum(ff, 0.0)
    ff = bdot(ff.astype(jnp.bfloat16), w2_ref[0]) + b2_ref[0]

    # ---- residual + LayerNorm 2 ---------------------------------------------
    h2 = _layernorm(h1 + ff, ln2g_ref[0], ln2b_ref[0], eps)

    # ---- accumulate layer sum in f32 scratch; single store at the last layer
    acc_ref[...] += h2

    @pl.when(l == n_layers - 1)
    def _():
        out_ref[...] = acc_ref[...]


def encoder_forward(x, params, *, heads, eps, btile=None):
    B, S, D = x.shape
    L, _, H = params["w1"].shape

    # Batch tile: larger tile amortizes per-layer weight DMA over more rows.
    # (On v7x with B > 1 consider btile = B // 2 so both TensorCores get work.)
    if btile is None:
        btile = B if B <= 8 else 8
    assert B % btile == 0, "batch must be divisible by the batch tile"
    nb = B // btile

    bf16 = jnp.bfloat16
    # Host-side prep: fuse QKV weights/biases, cast matmul weights to bf16
    # (halves weight DMA + VMEM; biases / LN params stay f32).
    wqkv = jnp.concatenate([params["wq"], params["wk"], params["wv"]],
                           axis=-1).astype(bf16)            # (L, D, 3D)
    bqkv = jnp.concatenate([params["bq"], params["bk"], params["bv"]],
                           axis=-1)                          # (L, 1, 3D) f32
    wo = params["wo"].astype(bf16)
    w1 = params["w1"].astype(bf16)
    w2 = params["w2"].astype(bf16)

    xmap = lambda b, l: (b, 0, 0)
    wmap = lambda b, l: (l, 0, 0)

    in_specs = [
        pl.BlockSpec((btile, S, D), xmap),        # x (f32)
        pl.BlockSpec((1, D, 3 * D), wmap),        # wqkv (bf16)
        pl.BlockSpec((1, 1, 3 * D), wmap),        # bqkv (f32)
        pl.BlockSpec((1, D, D), wmap),            # wo (bf16)
        pl.BlockSpec((1, 1, D), wmap),            # bo
        pl.BlockSpec((1, 1, D), wmap),            # ln1 gamma
        pl.BlockSpec((1, 1, D), wmap),            # ln1 beta
        pl.BlockSpec((1, D, H), wmap),            # w1 (bf16)
        pl.BlockSpec((1, 1, H), wmap),            # b1
        pl.BlockSpec((1, H, D), wmap),            # w2 (bf16)
        pl.BlockSpec((1, 1, D), wmap),            # b2
        pl.BlockSpec((1, 1, D), wmap),            # ln2 gamma
        pl.BlockSpec((1, 1, D), wmap),            # ln2 beta
    ]

    # Scoped-VMEM budget: double-buffered blocks + scratch + headroom, capped
    # so the same number also fits v7x's 64 MiB VMEM.
    blk_bytes = (
        2 * _nbytes((btile, S, D), jnp.float32)                     # x + out blocks
        + _nbytes((D, 3 * D), bf16) + _nbytes((1, 3 * D), jnp.float32)
        + _nbytes((D, D), bf16) + _nbytes((D, H), bf16) + _nbytes((H, D), bf16)
        + 7 * _nbytes((1, D), jnp.float32) + _nbytes((1, H), jnp.float32)
    )
    scratch_bytes = 2 * _nbytes((btile, S, D), jnp.float32)
    vmem_limit = int(min(max(2 * blk_bytes + scratch_bytes + (8 << 20), 16 << 20),
                         64 << 20))

    kernel = functools.partial(encoder_layer_kernel, heads=heads, eps=eps)
    return pl.pallas_call(
        kernel,
        out_shape=jax.ShapeDtypeStruct((B, S, D), jnp.float32),
        grid_spec=pltpu.PrefetchScalarGridSpec(
            num_scalar_prefetch=0,
            grid=(nb, L),
            in_specs=in_specs,
            out_specs=pl.BlockSpec((btile, S, D), xmap),
            scratch_shapes=[
                pltpu.VMEM((btile, S, D), jnp.float32),   # f32 layer-sum accumulator
                pltpu.VMEM((btile, S, D), jnp.float32),   # concat of per-head outputs
            ],
        ),
        compiler_params=pltpu.CompilerParams(
            dimension_semantics=("parallel", "arbitrary"),
            vmem_limit_bytes=vmem_limit,
        ),
    )(x, wqkv, bqkv, wo, params["bo"], params["ln1g"], params["ln1b"],
      w1, params["b1"], w2, params["b2"], params["ln2g"], params["ln2b"])


def encoder_reference(x, params, *, heads, eps):
    """Plain-JAX f32 reference matching the module semantics."""
    B, S, D = x.shape
    L = params["wq"].shape[0]
    hd = D // heads
    out = jnp.zeros_like(x)
    for l in range(L):
        q = x @ params["wq"][l] + params["bq"][l]
        k = x @ params["wk"][l] + params["bk"][l]
        v = x @ params["wv"][l] + params["bv"][l]
        split = lambda t: t.reshape(B, S, heads, hd).transpose(0, 2, 1, 3)
        qh, kh, vh = split(q), split(k), split(v)
        s = jnp.einsum("bhqd,bhkd->bhqk", qh, kh) / (hd ** 0.5)
        p = jax.nn.softmax(s, axis=-1)
        o = jnp.einsum("bhqk,bhkd->bhqd", p, vh)
        o = o.transpose(0, 2, 1, 3).reshape(B, S, D) @ params["wo"][l] + params["bo"][l]
        h1 = _layernorm(x + o, params["ln1g"][l], params["ln1b"][l], eps)
        ff = jnp.maximum(h1 @ params["w1"][l] + params["b1"][l], 0.0)
        ff = ff @ params["w2"][l] + params["b2"][l]
        h2 = _layernorm(h1 + ff, params["ln2g"][l], params["ln2b"][l], eps)
        out = out + h2
    return out


def init_params(key, L, D, H):
    ks = jax.random.split(key, 8)
    scale = 0.05
    return {
        "wq": scale * jax.random.normal(ks[0], (L, D, D), jnp.float32),
        "bq": jnp.zeros((L, 1, D), jnp.float32),
        "wk": scale * jax.random.normal(ks[1], (L, D, D), jnp.float32),
        "bk": jnp.zeros((L, 1, D), jnp.float32),
        "wv": scale * jax.random.normal(ks[2], (L, D, D), jnp.float32),
        "bv": jnp.zeros((L, 1, D), jnp.float32),
        "wo": scale * jax.random.normal(ks[3], (L, D, D), jnp.float32),
        "bo": scale * jax.random.normal(ks[4], (L, 1, D), jnp.float32),
        "ln1g": jnp.ones((L, 1, D), jnp.float32),
        "ln1b": jnp.zeros((L, 1, D), jnp.float32),
        "w1": scale * jax.random.normal(ks[5], (L, D, H), jnp.float32),
        "b1": scale * jax.random.normal(ks[6], (L, 1, H), jnp.float32),
        "w2": scale * jax.random.normal(ks[7], (L, H, D), jnp.float32),
        "b2": jnp.zeros((L, 1, D), jnp.float32),
        "ln2g": jnp.ones((L, 1, D), jnp.float32),
        "ln2b": jnp.zeros((L, 1, D), jnp.float32),
    }


if __name__ == "__main__":
    # Small but lane-dense shapes (D, HID multiples of 128; S multiple of 8).
    B, S, D, HEADS, HID, LAYERS, EPS = 2, 16, 128, 4, 256, 2, 0.1

    key = jax.random.PRNGKey(0)
    kx, kp = jax.random.split(key)
    x = jax.random.normal(kx, (B, S, D), jnp.float32)
    params = init_params(kp, LAYERS, D, HID)

    out = jax.block_until_ready(encoder_forward(x, params, heads=HEADS, eps=EPS))

    ref = encoder_reference(x, params, heads=HEADS, eps=EPS)
    assert out.shape == (B, S, D)
    max_err = float(jnp.max(jnp.abs(out - ref)))
    # bf16 matmul operands + approx reciprocal -> looser tolerance than pure f32.
    assert jnp.allclose(out, ref, atol=5e-2, rtol=5e-2), max_err

    print("KERNEL_OK")
</pallas_src>

<mosaic_0001>
module attributes {stable_mosaic.version = 11 : i64} {
  func.func @encoder_layer_kernel(%arg0: i32, %arg1: i32, %arg2: memref<2x16x128xf32, #tpu.memory_space<vmem>>, %arg3: memref<1x128x384xbf16, #tpu.memory_space<vmem>>, %arg4: memref<1x1x384xf32, #tpu.memory_space<vmem>>, %arg5: memref<1x128x128xbf16, #tpu.memory_space<vmem>>, %arg6: memref<1x1x128xf32, #tpu.memory_space<vmem>>, %arg7: memref<1x1x128xf32, #tpu.memory_space<vmem>>, %arg8: memref<1x1x128xf32, #tpu.memory_space<vmem>>, %arg9: memref<1x128x256xbf16, #tpu.memory_space<vmem>>, %arg10: memref<1x1x256xf32, #tpu.memory_space<vmem>>, %arg11: memref<1x256x128xbf16, #tpu.memory_space<vmem>>, %arg12: memref<1x1x128xf32, #tpu.memory_space<vmem>>, %arg13: memref<1x1x128xf32, #tpu.memory_space<vmem>>, %arg14: memref<1x1x128xf32, #tpu.memory_space<vmem>>, %arg15: memref<2x16x128xf32, #tpu.memory_space<vmem>>, %arg16: memref<2x16x128xf32, #tpu.memory_space<vmem>>, %arg17: memref<2x16x128xf32, #tpu.memory_space<vmem>>) attributes {dimension_semantics = [#tpu.dimension_semantics<parallel>, #tpu.dimension_semantics<arbitrary>], iteration_bounds = array<i64: 1, 2>, scalar_prefetch = 0 : i64, scratch_operands = 2 : i64, tpu.core_type = #tpu.core_type<tc>, window_params = [{transform_indices = @transform_0, window_bounds = array<i64: 2, 16, 128>}, {transform_indices = @transform_1, window_bounds = array<i64: 1, 128, 384>}, {transform_indices = @transform_2, window_bounds = array<i64: 1, 1, 384>}, {transform_indices = @transform_3, window_bounds = array<i64: 1, 128, 128>}, {transform_indices = @transform_4, window_bounds = array<i64: 1, 1, 128>}, {transform_indices = @transform_5, window_bounds = array<i64: 1, 1, 128>}, {transform_indices = @transform_6, window_bounds = array<i64: 1, 1, 128>}, {transform_indices = @transform_7, window_bounds = array<i64: 1, 128, 256>}, {transform_indices = @transform_8, window_bounds = array<i64: 1, 1, 256>}, {transform_indices = @transform_9, window_bounds = array<i64: 1, 256, 128>}, {transform_indices = @transform_10, window_bounds = array<i64: 1, 1, 128>}, {transform_indices = @transform_11, window_bounds = array<i64: 1, 1, 128>}, {transform_indices = @transform_12, window_bounds = array<i64: 1, 1, 128>}, {transform_indices = @transform_13, window_bounds = array<i64: 2, 16, 128>}]} {
    %c0_i32 = arith.constant 0 : i32
    %0 = arith.cmpi eq, %arg1, %c0_i32 : i32
    %1 = arith.extui %0 : i1 to i32
    %c0_i32_0 = arith.constant 0 : i32
    %2 = arith.cmpi ne, %1, %c0_i32_0 : i32
    scf.if %2 {
      %cst_92 = arith.constant 0.000000e+00 : f32
      %189 = vector.broadcast %cst_92 : f32 to vector<2x16x128xf32>
      %c0_93 = arith.constant 0 : index
      %c0_94 = arith.constant 0 : index
      %c0_95 = arith.constant 0 : index
      %190 = vector.load %arg16[%c0_93, %c0_94, %c0_95] : memref<2x16x128xf32, #tpu.memory_space<vmem>>, vector<2x16x128xf32>
      tpu.vector_store %arg16[%c0_93, %c0_94, %c0_95], %189 {strides = array<i32>} : memref<2x16x128xf32, #tpu.memory_space<vmem>>, vector<2x16x128xf32>,
    } else {
    }
    %c0 = arith.constant 0 : index
    %c0_1 = arith.constant 0 : index
    %c0_2 = arith.constant 0 : index
    %3 = vector.load %arg2[%c0, %c0_1, %c0_2] : memref<2x16x128xf32, #tpu.memory_space<vmem>>, vector<2x16x128xf32>
    %4 = arith.truncf %3 : vector<2x16x128xf32> to vector<2x16x128xbf16>
    %c0_3 = arith.constant 0 : index
    %c0_4 = arith.constant 0 : index
    %c0_5 = arith.constant 0 : index
    %5 = vector.load %arg3[%c0_3, %c0_4, %c0_5] : memref<1x128x384xbf16, #tpu.memory_space<vmem>>, vector<1x128x384xbf16>
    %6 = vector.shape_cast %5 : vector<1x128x384xbf16> to vector<128x384xbf16>
    %cst = arith.constant dense<0.000000e+00> : vector<2x16x384xf32>
    %7 = tpu.matmul %4, %6, %cst {dimension_numbers = #tpu.dot_dimension_numbers<[2], [0], [0, 1], [1], [0, 0, 0, 1, 1, 1], [], []>} : vector<2x16x128xbf16>, vector<128x384xbf16>, vector<2x16x384xf32> -> vector<2x16x384xf32>
    %c0_6 = arith.constant 0 : index
    %c0_7 = arith.constant 0 : index
    %c0_8 = arith.constant 0 : index
    %8 = vector.load %arg4[%c0_6, %c0_7, %c0_8] : memref<1x1x384xf32, #tpu.memory_space<vmem>>, vector<1x1x384xf32>
    %9 = vector.shape_cast %8 : vector<1x1x384xf32> to vector<1x384xf32>
    %10 = vector.shape_cast %9 : vector<1x384xf32> to vector<1x1x384xf32>
    %11 = vector.broadcast %10 : vector<1x1x384xf32> to vector<2x16x384xf32>
    %12 = arith.addf %7, %11 : vector<2x16x384xf32>
    %13 = vector.extract_strided_slice %12 {offsets = [0, 0, 0], sizes = [2, 16, 128], strides = [1, 1, 1]} : vector<2x16x384xf32> to vector<2x16x128xf32>
    %14 = arith.truncf %13 : vector<2x16x128xf32> to vector<2x16x128xbf16>
    %15 = vector.extract_strided_slice %12 {offsets = [0, 0, 128], sizes = [2, 16, 128], strides = [1, 1, 1]} : vector<2x16x384xf32> to vector<2x16x128xf32>
    %16 = arith.truncf %15 : vector<2x16x128xf32> to vector<2x16x128xbf16>
    %17 = vector.extract_strided_slice %12 {offsets = [0, 0, 256], sizes = [2, 16, 128], strides = [1, 1, 1]} : vector<2x16x384xf32> to vector<2x16x128xf32>
    %18 = arith.truncf %17 : vector<2x16x128xf32> to vector<2x16x128xbf16>
    %19 = vector.extract_strided_slice %14 {offsets = [0, 0, 0], sizes = [2, 16, 32], strides = [1, 1, 1]} : vector<2x16x128xbf16> to vector<2x16x32xbf16>
    %20 = vector.extract_strided_slice %16 {offsets = [0, 0, 0], sizes = [2, 16, 32], strides = [1, 1, 1]} : vector<2x16x128xbf16> to vector<2x16x32xbf16>
    %21 = vector.extract_strided_slice %18 {offsets = [0, 0, 0], sizes = [2, 16, 32], strides = [1, 1, 1]} : vector<2x16x128xbf16> to vector<2x16x32xbf16>
    %cst_9 = arith.constant dense<0.000000e+00> : vector<2x16x16xf32>
    %22 = tpu.matmul %19, %20, %cst_9 {dimension_numbers = #tpu.dot_dimension_numbers<[2], [2], [1], [1], [0, 0, 0, 1, 1, 1], [0], [0]>} : vector<2x16x32xbf16>, vector<2x16x32xbf16>, vector<2x16x16xf32> -> vector<2x16x16xf32>
    %cst_10 = arith.constant 0.176776692 : f32
    %23 = vector.broadcast %cst_10 : f32 to vector<2x16x16xf32>
    %24 = arith.mulf %22, %23 : vector<2x16x16xf32>
    %cst_11 = arith.constant dense<0xFF800000> : vector<2x16xf32>
    %25 = vector.multi_reduction <maximumf>, %24, %cst_11 [2] : vector<2x16x16xf32> to vector<2x16xf32>
    %26 = vector.shape_cast %25 : vector<2x16xf32> to vector<2x16x1xf32>
    %27 = vector.broadcast %26 : vector<2x16x1xf32> to vector<2x16x16xf32>
    %28 = arith.subf %24, %27 : vector<2x16x16xf32>
    %29 = math.exp %28 : vector<2x16x16xf32>
    %cst_12 = arith.constant dense<0.000000e+00> : vector<2x16xf32>
    %30 = vector.multi_reduction <add>, %29, %cst_12 [2] : vector<2x16x16xf32> to vector<2x16xf32>
    %31 = vector.shape_cast %30 : vector<2x16xf32> to vector<2x16x1xf32>
    %32 = tpu.reciprocal %31 {approx = true} : vector<2x16x1xf32> -> vector<2x16x1xf32>
    %33 = vector.broadcast %32 : vector<2x16x1xf32> to vector<2x16x16xf32>
    %34 = arith.mulf %29, %33 : vector<2x16x16xf32>
    %35 = arith.truncf %34 : vector<2x16x16xf32> to vector<2x16x16xbf16>
    %cst_13 = arith.constant dense<0.000000e+00> : vector<2x16x32xf32>
    %36 = tpu.matmul %35, %21, %cst_13 {dimension_numbers = #tpu.dot_dimension_numbers<[2], [1], [1], [2], [0, 0, 0, 1, 1, 2], [0], [0]>} : vector<2x16x16xbf16>, vector<2x16x32xbf16>, vector<2x16x32xf32> -> vector<2x16x32xf32>
    %c0_14 = arith.constant 0 : index
    %c0_15 = arith.constant 0 : index
    %c0_16 = arith.constant 0 : index
    %37 = vector.load %arg17[%c0_14, %c0_15, %c0_16] : memref<2x16x128xf32, #tpu.memory_space<vmem>>, vector<2x16x32xf32>
    tpu.vector_store %arg17[%c0_14, %c0_15, %c0_16], %36 {strides = array<i32>} : memref<2x16x128xf32, #tpu.memory_space<vmem>>, vector<2x16x32xf32>,
    %38 = vector.extract_strided_slice %14 {offsets = [0, 0, 32], sizes = [2, 16, 32], strides = [1, 1, 1]} : vector<2x16x128xbf16> to vector<2x16x32xbf16>
    %39 = vector.extract_strided_slice %16 {offsets = [0, 0, 32], sizes = [2, 16, 32], strides = [1, 1, 1]} : vector<2x16x128xbf16> to vector<2x16x32xbf16>
    %40 = vector.extract_strided_slice %18 {offsets = [0, 0, 32], sizes = [2, 16, 32], strides = [1, 1, 1]} : vector<2x16x128xbf16> to vector<2x16x32xbf16>
    %cst_17 = arith.constant dense<0.000000e+00> : vector<2x16x16xf32>
    %41 = tpu.matmul %38, %39, %cst_17 {dimension_numbers = #tpu.dot_dimension_numbers<[2], [2], [1], [1], [0, 0, 0, 1, 1, 1], [0], [0]>} : vector<2x16x32xbf16>, vector<2x16x32xbf16>, vector<2x16x16xf32> -> vector<2x16x16xf32>
    %cst_18 = arith.constant 0.176776692 : f32
    %42 = vector.broadcast %cst_18 : f32 to vector<2x16x16xf32>
    %43 = arith.mulf %41, %42 : vector<2x16x16xf32>
    %cst_19 = arith.constant dense<0xFF800000> : vector<2x16xf32>
    %44 = vector.multi_reduction <maximumf>, %43, %cst_19 [2] : vector<2x16x16xf32> to vector<2x16xf32>
    %45 = vector.shape_cast %44 : vector<2x16xf32> to vector<2x16x1xf32>
    %46 = vector.broadcast %45 : vector<2x16x1xf32> to vector<2x16x16xf32>
    %47 = arith.subf %43, %46 : vector<2x16x16xf32>
    %48 = math.exp %47 : vector<2x16x16xf32>
    %cst_20 = arith.constant dense<0.000000e+00> : vector<2x16xf32>
    %49 = vector.multi_reduction <add>, %48, %cst_20 [2] : vector<2x16x16xf32> to vector<2x16xf32>
    %50 = vector.shape_cast %49 : vector<2x16xf32> to vector<2x16x1xf32>
    %51 = tpu.reciprocal %50 {approx = true} : vector<2x16x1xf32> -> vector<2x16x1xf32>
    %52 = vector.broadcast %51 : vector<2x16x1xf32> to vector<2x16x16xf32>
    %53 = arith.mulf %48, %52 : vector<2x16x16xf32>
    %54 = arith.truncf %53 : vector<2x16x16xf32> to vector<2x16x16xbf16>
    %cst_21 = arith.constant dense<0.000000e+00> : vector<2x16x32xf32>
    %55 = tpu.matmul %54, %40, %cst_21 {dimension_numbers = #tpu.dot_dimension_numbers<[2], [1], [1], [2], [0, 0, 0, 1, 1, 2], [0], [0]>} : vector<2x16x16xbf16>, vector<2x16x32xbf16>, vector<2x16x32xf32> -> vector<2x16x32xf32>
    %c0_22 = arith.constant 0 : index
    %c0_23 = arith.constant 0 : index
    %c32 = arith.constant 32 : index
    %56 = vector.load %arg17[%c0_22, %c0_23, %c32] : memref<2x16x128xf32, #tpu.memory_space<vmem>>, vector<2x16x32xf32>
    tpu.vector_store %arg17[%c0_22, %c0_23, %c32], %55 {strides = array<i32>} : memref<2x16x128xf32, #tpu.memory_space<vmem>>, vector<2x16x32xf32>,
    %57 = vector.extract_strided_slice %14 {offsets = [0, 0, 64], sizes = [2, 16, 32], strides = [1, 1, 1]} : vector<2x16x128xbf16> to vector<2x16x32xbf16>
    %58 = vector.extract_strided_slice %16 {offsets = [0, 0, 64], sizes = [2, 16, 32], strides = [1, 1, 1]} : vector<2x16x128xbf16> to vector<2x16x32xbf16>
    %59 = vector.extract_strided_slice %18 {offsets = [0, 0, 64], sizes = [2, 16, 32], strides = [1, 1, 1]} : vector<2x16x128xbf16> to vector<2x16x32xbf16>
    %cst_24 = arith.constant dense<0.000000e+00> : vector<2x16x16xf32>
    %60 = tpu.matmul %57, %58, %cst_24 {dimension_numbers = #tpu.dot_dimension_numbers<[2], [2], [1], [1], [0, 0, 0, 1, 1, 1], [0], [0]>} : vector<2x16x32xbf16>, vector<2x16x32xbf16>, vector<2x16x16xf32> -> vector<2x16x16xf32>
    %cst_25 = arith.constant 0.176776692 : f32
    %61 = vector.broadcast %cst_25 : f32 to vector<2x16x16xf32>
    %62 = arith.mulf %60, %61 : vector<2x16x16xf32>
    %cst_26 = arith.constant dense<0xFF800000> : vector<2x16xf32>
    %63 = vector.multi_reduction <maximumf>, %62, %cst_26 [2] : vector<2x16x16xf32> to vector<2x16xf32>
    %64 = vector.shape_cast %63 : vector<2x16xf32> to vector<2x16x1xf32>
    %65 = vector.broadcast %64 : vector<2x16x1xf32> to vector<2x16x16xf32>
    %66 = arith.subf %62, %65 : vector<2x16x16xf32>
    %67 = math.exp %66 : vector<2x16x16xf32>
    %cst_27 = arith.constant dense<0.000000e+00> : vector<2x16xf32>
    %68 = vector.multi_reduction <add>, %67, %cst_27 [2] : vector<2x16x16xf32> to vector<2x16xf32>
    %69 = vector.shape_cast %68 : vector<2x16xf32> to vector<2x16x1xf32>
    %70 = tpu.reciprocal %69 {approx = true} : vector<2x16x1xf32> -> vector<2x16x1xf32>
    %71 = vector.broadcast %70 : vector<2x16x1xf32> to vector<2x16x16xf32>
    %72 = arith.mulf %67, %71 : vector<2x16x16xf32>
    %73 = arith.truncf %72 : vector<2x16x16xf32> to vector<2x16x16xbf16>
    %cst_28 = arith.constant dense<0.000000e+00> : vector<2x16x32xf32>
    %74 = tpu.matmul %73, %59, %cst_28 {dimension_numbers = #tpu.dot_dimension_numbers<[2], [1], [1], [2], [0, 0, 0, 1, 1, 2], [0], [0]>} : vector<2x16x16xbf16>, vector<2x16x32xbf16>, vector<2x16x32xf32> -> vector<2x16x32xf32>
    %c0_29 = arith.constant 0 : index
    %c0_30 = arith.constant 0 : index
    %c64 = arith.constant 64 : index
    %75 = vector.load %arg17[%c0_29, %c0_30, %c64] : memref<2x16x128xf32, #tpu.memory_space<vmem>>, vector<2x16x32xf32>
    tpu.vector_store %arg17[%c0_29, %c0_30, %c64], %74 {strides = array<i32>} : memref<2x16x128xf32, #tpu.memory_space<vmem>>, vector<2x16x32xf32>,
    %76 = vector.extract_strided_slice %14 {offsets = [0, 0, 96], sizes = [2, 16, 32], strides = [1, 1, 1]} : vector<2x16x128xbf16> to vector<2x16x32xbf16>
    %77 = vector.extract_strided_slice %16 {offsets = [0, 0, 96], sizes = [2, 16, 32], strides = [1, 1, 1]} : vector<2x16x128xbf16> to vector<2x16x32xbf16>
    %78 = vector.extract_strided_slice %18 {offsets = [0, 0, 96], sizes = [2, 16, 32], strides = [1, 1, 1]} : vector<2x16x128xbf16> to vector<2x16x32xbf16>
    %cst_31 = arith.constant dense<0.000000e+00> : vector<2x16x16xf32>
    %79 = tpu.matmul %76, %77, %cst_31 {dimension_numbers = #tpu.dot_dimension_numbers<[2], [2], [1], [1], [0, 0, 0, 1, 1, 1], [0], [0]>} : vector<2x16x32xbf16>, vector<2x16x32xbf16>, vector<2x16x16xf32> -> vector<2x16x16xf32>
    %cst_32 = arith.constant 0.176776692 : f32
    %80 = vector.broadcast %cst_32 : f32 to vector<2x16x16xf32>
    %81 = arith.mulf %79, %80 : vector<2x16x16xf32>
    %cst_33 = arith.constant dense<0xFF800000> : vector<2x16xf32>
    %82 = vector.multi_reduction <maximumf>, %81, %cst_33 [2] : vector<2x16x16xf32> to vector<2x16xf32>
    %83 = vector.shape_cast %82 : vector<2x16xf32> to vector<2x16x1xf32>
    %84 = vector.broadcast %83 : vector<2x16x1xf32> to vector<2x16x16xf32>
    %85 = arith.subf %81, %84 : vector<2x16x16xf32>
    %86 = math.exp %85 : vector<2x16x16xf32>
    %cst_34 = arith.constant dense<0.000000e+00> : vector<2x16xf32>
    %87 = vector.multi_reduction <add>, %86, %cst_34 [2] : vector<2x16x16xf32> to vector<2x16xf32>
    %88 = vector.shape_cast %87 : vector<2x16xf32> to vector<2x16x1xf32>
    %89 = tpu.reciprocal %88 {approx = true} : vector<2x16x1xf32> -> vector<2x16x1xf32>
    %90 = vector.broadcast %89 : vector<2x16x1xf32> to vector<2x16x16xf32>
    %91 = arith.mulf %86, %90 : vector<2x16x16xf32>
    %92 = arith.truncf %91 : vector<2x16x16xf32> to vector<2x16x16xbf16>
    %cst_35 = arith.constant dense<0.000000e+00> : vector<2x16x32xf32>
    %93 = tpu.matmul %92, %78, %cst_35 {dimension_numbers = #tpu.dot_dimension_numbers<[2], [1], [1], [2], [0, 0, 0, 1, 1, 2], [0], [0]>} : vector<2x16x16xbf16>, vector<2x16x32xbf16>, vector<2x16x32xf32> -> vector<2x16x32xf32>
    %c0_36 = arith.constant 0 : index
    %c0_37 = arith.constant 0 : index
    %c96 = arith.constant 96 : index
    %94 = vector.load %arg17[%c0_36, %c0_37, %c96] : memref<2x16x128xf32, #tpu.memory_space<vmem>>, vector<2x16x32xf32>
    tpu.vector_store %arg17[%c0_36, %c0_37, %c96], %93 {strides = array<i32>} : memref<2x16x128xf32, #tpu.memory_space<vmem>>, vector<2x16x32xf32>,
    %c0_38 = arith.constant 0 : index
    %c0_39 = arith.constant 0 : index
    %c0_40 = arith.constant 0 : index
    %95 = vector.load %arg17[%c0_38, %c0_39, %c0_40] : memref<2x16x128xf32, #tpu.memory_space<vmem>>, vector<2x16x128xf32>
    %96 = arith.truncf %95 : vector<2x16x128xf32> to vector<2x16x128xbf16>
    %c0_41 = arith.constant 0 : index
    %c0_42 = arith.constant 0 : index
    %c0_43 = arith.constant 0 : index
    %97 = vector.load %arg5[%c0_41, %c0_42, %c0_43] : memref<1x128x128xbf16, #tpu.memory_space<vmem>>, vector<1x128x128xbf16>
    %98 = vector.shape_cast %97 : vector<1x128x128xbf16> to vector<128x128xbf16>
    %cst_44 = arith.constant dense<0.000000e+00> : vector<2x16x128xf32>
    %99 = tpu.matmul %96, %98, %cst_44 {dimension_numbers = #tpu.dot_dimension_numbers<[2], [0], [0, 1], [1], [0, 0, 0, 1, 1, 1], [], []>} : vector<2x16x128xbf16>, vector<128x128xbf16>, vector<2x16x128xf32> -> vector<2x16x128xf32>
    %c0_45 = arith.constant 0 : index
    %c0_46 = arith.constant 0 : index
    %c0_47 = arith.constant 0 : index
    %100 = vector.load %arg6[%c0_45, %c0_46, %c0_47] : memref<1x1x128xf32, #tpu.memory_space<vmem>>, vector<1x1x128xf32>
    %101 = vector.shape_cast %100 : vector<1x1x128xf32> to vector<1x128xf32>
    %102 = vector.shape_cast %101 : vector<1x128xf32> to vector<1x1x128xf32>
    %103 = vector.broadcast %102 : vector<1x1x128xf32> to vector<2x16x128xf32>
    %104 = arith.addf %99, %103 : vector<2x16x128xf32>
    %105 = arith.addf %3, %104 : vector<2x16x128xf32>
    %c0_48 = arith.constant 0 : index
    %c0_49 = arith.constant 0 : index
    %c0_50 = arith.constant 0 : index
    %106 = vector.load %arg7[%c0_48, %c0_49, %c0_50] : memref<1x1x128xf32, #tpu.memory_space<vmem>>, vector<1x1x128xf32>
    %107 = vector.shape_cast %106 : vector<1x1x128xf32> to vector<1x128xf32>
    %c0_51 = arith.constant 0 : index
    %c0_52 = arith.constant 0 : index
    %c0_53 = arith.constant 0 : index
    %108 = vector.load %arg8[%c0_51, %c0_52, %c0_53] : memref<1x1x128xf32, #tpu.memory_space<vmem>>, vector<1x1x128xf32>
    %109 = vector.shape_cast %108 : vector<1x1x128xf32> to vector<1x128xf32>
    %cst_54 = arith.constant dense<0.000000e+00> : vector<2x16xf32>
    %110 = vector.multi_reduction <add>, %105, %cst_54 [2] : vector<2x16x128xf32> to vector<2x16xf32>
    %111 = vector.shape_cast %110 : vector<2x16xf32> to vector<2x16x1xf32>
    %cst_55 = arith.constant 1.280000e+02 : f32
    %112 = vector.broadcast %cst_55 : f32 to vector<2x16x1xf32>
    %113 = arith.divf %111, %112 : vector<2x16x1xf32>
    %114 = vector.broadcast %113 : vector<2x16x1xf32> to vector<2x16x128xf32>
    %115 = arith.subf %105, %114 : vector<2x16x128xf32>
    %116 = arith.mulf %115, %115 : vector<2x16x128xf32>
    %cst_56 = arith.constant dense<0.000000e+00> : vector<2x16xf32>
    %117 = vector.multi_reduction <add>, %116, %cst_56 [2] : vector<2x16x128xf32> to vector<2x16xf32>
    %118 = vector.shape_cast %117 : vector<2x16xf32> to vector<2x16x1xf32>
    %cst_57 = arith.constant 1.280000e+02 : f32
    %119 = vector.broadcast %cst_57 : f32 to vector<2x16x1xf32>
    %120 = arith.divf %118, %119 : vector<2x16x1xf32>
    %121 = vector.broadcast %113 : vector<2x16x1xf32> to vector<2x16x128xf32>
    %122 = arith.subf %105, %121 : vector<2x16x128xf32>
    %cst_58 = arith.constant 1.000000e-01 : f32
    %123 = vector.broadcast %cst_58 : f32 to vector<2x16x1xf32>
    %124 = arith.addf %120, %123 : vector<2x16x1xf32>
    %125 = math.rsqrt %124 : vector<2x16x1xf32>
    %126 = vector.broadcast %125 : vector<2x16x1xf32> to vector<2x16x128xf32>
    %127 = arith.mulf %122, %126 : vector<2x16x128xf32>
    %128 = vector.shape_cast %107 : vector<1x128xf32> to vector<1x1x128xf32>
    %129 = vector.broadcast %128 : vector<1x1x128xf32> to vector<2x16x128xf32>
    %130 = arith.mulf %127, %129 : vector<2x16x128xf32>
    %131 = vector.shape_cast %109 : vector<1x128xf32> to vector<1x1x128xf32>
    %132 = vector.broadcast %131 : vector<1x1x128xf32> to vector<2x16x128xf32>
    %133 = arith.addf %130, %132 : vector<2x16x128xf32>
    %134 = arith.truncf %133 : vector<2x16x128xf32> to vector<2x16x128xbf16>
    %c0_59 = arith.constant 0 : index
    %c0_60 = arith.constant 0 : index
    %c0_61 = arith.constant 0 : index
    %135 = vector.load %arg9[%c0_59, %c0_60, %c0_61] : memref<1x128x256xbf16, #tpu.memory_space<vmem>>, vector<1x128x256xbf16>
    %136 = vector.shape_cast %135 : vector<1x128x256xbf16> to vector<128x256xbf16>
    %cst_62 = arith.constant dense<0.000000e+00> : vector<2x16x256xf32>
    %137 = tpu.matmul %134, %136, %cst_62 {dimension_numbers = #tpu.dot_dimension_numbers<[2], [0], [0, 1], [1], [0, 0, 0, 1, 1, 1], [], []>} : vector<2x16x128xbf16>, vector<128x256xbf16>, vector<2x16x256xf32> -> vector<2x16x256xf32>
    %c0_63 = arith.constant 0 : index
    %c0_64 = arith.constant 0 : index
    %c0_65 = arith.constant 0 : index
    %138 = vector.load %arg10[%c0_63, %c0_64, %c0_65] : memref<1x1x256xf32, #tpu.memory_space<vmem>>, vector<1x1x256xf32>
    %139 = vector.shape_cast %138 : vector<1x1x256xf32> to vector<1x256xf32>
    %140 = vector.shape_cast %139 : vector<1x256xf32> to vector<1x1x256xf32>
    %141 = vector.broadcast %140 : vector<1x1x256xf32> to vector<2x16x256xf32>
    %142 = arith.addf %137, %141 : vector<2x16x256xf32>
    %cst_66 = arith.constant 0.000000e+00 : f32
    %143 = vector.broadcast %cst_66 : f32 to vector<2x16x256xf32>
    %144 = arith.maximumf %142, %143 : vector<2x16x256xf32>
    %145 = arith.truncf %144 : vector<2x16x256xf32> to vector<2x16x256xbf16>
    %c0_67 = arith.constant 0 : index
    %c0_68 = arith.constant 0 : index
    %c0_69 = arith.constant 0 : index
    %146 = vector.load %arg11[%c0_67, %c0_68, %c0_69] : memref<1x256x128xbf16, #tpu.memory_space<vmem>>, vector<1x256x128xbf16>
    %147 = vector.shape_cast %146 : vector<1x256x128xbf16> to vector<256x128xbf16>
    %cst_70 = arith.constant dense<0.000000e+00> : vector<2x16x128xf32>
    %148 = tpu.matmul %145, %147, %cst_70 {dimension_numbers = #tpu.dot_dimension_numbers<[2], [0], [0, 1], [1], [0, 0, 0, 1, 1, 1], [], []>} : vector<2x16x256xbf16>, vector<256x128xbf16>, vector<2x16x128xf32> -> vector<2x16x128xf32>
    %c0_71 = arith.constant 0 : index
    %c0_72 = arith.constant 0 : index
    %c0_73 = arith.constant 0 : index
    %149 = vector.load %arg12[%c0_71, %c0_72, %c0_73] : memref<1x1x128xf32, #tpu.memory_space<vmem>>, vector<1x1x128xf32>
    %150 = vector.shape_cast %149 : vector<1x1x128xf32> to vector<1x128xf32>
    %151 = vector.shape_cast %150 : vector<1x128xf32> to vector<1x1x128xf32>
    %152 = vector.broadcast %151 : vector<1x1x128xf32> to vector<2x16x128xf32>
    %153 = arith.addf %148, %152 : vector<2x16x128xf32>
    %154 = arith.addf %133, %153 : vector<2x16x128xf32>
    %c0_74 = arith.constant 0 : index
    %c0_75 = arith.constant 0 : index
    %c0_76 = arith.constant 0 : index
    %155 = vector.load %arg13[%c0_74, %c0_75, %c0_76] : memref<1x1x128xf32, #tpu.memory_space<vmem>>, vector<1x1x128xf32>
    %156 = vector.shape_cast %155 : vector<1x1x128xf32> to vector<1x128xf32>
    %c0_77 = arith.constant 0 : index
    %c0_78 = arith.constant 0 : index
    %c0_79 = arith.constant 0 : index
    %157 = vector.load %arg14[%c0_77, %c0_78, %c0_79] : memref<1x1x128xf32, #tpu.memory_space<vmem>>, vector<1x1x128xf32>
    %158 = vector.shape_cast %157 : vector<1x1x128xf32> to vector<1x128xf32>
    %cst_80 = arith.constant dense<0.000000e+00> : vector<2x16xf32>
    %159 = vector.multi_reduction <add>, %154, %cst_80 [2] : vector<2x16x128xf32> to vector<2x16xf32>
    %160 = vector.shape_cast %159 : vector<2x16xf32> to vector<2x16x1xf32>
    %cst_81 = arith.constant 1.280000e+02 : f32
    %161 = vector.broadcast %cst_81 : f32 to vector<2x16x1xf32>
    %162 = arith.divf %160, %161 : vector<2x16x1xf32>
    %163 = vector.broadcast %162 : vector<2x16x1xf32> to vector<2x16x128xf32>
    %164 = arith.subf %154, %163 : vector<2x16x128xf32>
    %165 = arith.mulf %164, %164 : vector<2x16x128xf32>
    %cst_82 = arith.constant dense<0.000000e+00> : vector<2x16xf32>
    %166 = vector.multi_reduction <add>, %165, %cst_82 [2] : vector<2x16x128xf32> to vector<2x16xf32>
    %167 = vector.shape_cast %166 : vector<2x16xf32> to vector<2x16x1xf32>
    %cst_83 = arith.constant 1.280000e+02 : f32
    %168 = vector.broadcast %cst_83 : f32 to vector<2x16x1xf32>
    %169 = arith.divf %167, %168 : vector<2x16x1xf32>
    %170 = vector.broadcast %162 : vector<2x16x1xf32> to vector<2x16x128xf32>
    %171 = arith.subf %154, %170 : vector<2x16x128xf32>
    %cst_84 = arith.constant 1.000000e-01 : f32
    %172 = vector.broadcast %cst_84 : f32 to vector<2x16x1xf32>
    %173 = arith.addf %169, %172 : vector<2x16x1xf32>
    %174 = math.rsqrt %173 : vector<2x16x1xf32>
    %175 = vector.broadcast %174 : vector<2x16x1xf32> to vector<2x16x128xf32>
    %176 = arith.mulf %171, %175 : vector<2x16x128xf32>
    %177 = vector.shape_cast %156 : vector<1x128xf32> to vector<1x1x128xf32>
    %178 = vector.broadcast %177 : vector<1x1x128xf32> to vector<2x16x128xf32>
    %179 = arith.mulf %176, %178 : vector<2x16x128xf32>
    %180 = vector.shape_cast %158 : vector<1x128xf32> to vector<1x1x128xf32>
    %181 = vector.broadcast %180 : vector<1x1x128xf32> to vector<2x16x128xf32>
    %182 = arith.addf %179, %181 : vector<2x16x128xf32>
    %c0_85 = arith.constant 0 : index
    %c0_86 = arith.constant 0 : index
    %c0_87 = arith.constant 0 : index
    %183 = vector.load %arg16[%c0_85, %c0_86, %c0_87] : memref<2x16x128xf32, #tpu.memory_space<vmem>>, vector<2x16x128xf32>
    %184 = arith.addf %183, %182 : vector<2x16x128xf32>
    %c0_88 = arith.constant 0 : index
    %c0_89 = arith.constant 0 : index
    %c0_90 = arith.constant 0 : index
    %185 = vector.load %arg16[%c0_88, %c0_89, %c0_90] : memref<2x16x128xf32, #tpu.memory_space<vmem>>, vector<2x16x128xf32>
    tpu.vector_store %arg16[%c0_88, %c0_89, %c0_90], %184 {strides = array<i32>} : memref<2x16x128xf32, #tpu.memory_space<vmem>>, vector<2x16x128xf32>,
    %c1_i32 = arith.constant 1 : i32
    %186 = arith.cmpi eq, %arg1, %c1_i32 : i32
    %187 = arith.extui %186 : i1 to i32
    %c0_i32_91 = arith.constant 0 : i32
    %188 = arith.cmpi ne, %187, %c0_i32_91 : i32
    scf.if %188 {
      %c0_92 = arith.constant 0 : index
      %c0_93 = arith.constant 0 : index
      %c0_94 = arith.constant 0 : index
      %189 = vector.load %arg16[%c0_92, %c0_93, %c0_94] : memref<2x16x128xf32, #tpu.memory_space<vmem>>, vector<2x16x128xf32>
      %c0_95 = arith.constant 0 : index
      %c0_96 = arith.constant 0 : index
      %c0_97 = arith.constant 0 : index
      %190 = vector.load %arg15[%c0_95, %c0_96, %c0_97] : memref<2x16x128xf32, #tpu.memory_space<vmem>>, vector<2x16x128xf32>
      tpu.vector_store %arg15[%c0_95, %c0_96, %c0_97], %189 {strides = array<i32>} : memref<2x16x128xf32, #tpu.memory_space<vmem>>, vector<2x16x128xf32>,
    } else {
    }
    return
  }
  func.func @transform_0(%arg0: i32, %arg1: i32) -> (i32, i32, i32) {
    %c0_i32 = arith.constant 0 : i32
    %c0_i32_0 = arith.constant 0 : i32
    %c0_i32_1 = arith.constant 0 : i32
    return %arg0, %c0_i32, %c0_i32_0 : i32, i32, i32
  }
  func.func @transform_1(%arg0: i32, %arg1: i32) -> (i32, i32, i32) {
    %c0_i32 = arith.constant 0 : i32
    %c0_i32_0 = arith.constant 0 : i32
    %c0_i32_1 = arith.constant 0 : i32
    return %arg1, %c0_i32, %c0_i32_0 : i32, i32, i32
  }
  func.func @transform_2(%arg0: i32, %arg1: i32) -> (i32, i32, i32) {
    %c0_i32 = arith.constant 0 : i32
    %c0_i32_0 = arith.constant 0 : i32
    %c0_i32_1 = arith.constant 0 : i32
    return %arg1, %c0_i32, %c0_i32_0 : i32, i32, i32
  }
  func.func @transform_3(%arg0: i32, %arg1: i32) -> (i32, i32, i32) {
    %c0_i32 = arith.constant 0 : i32
    %c0_i32_0 = arith.constant 0 : i32
    %c0_i32_1 = arith.constant 0 : i32
    return %arg1, %c0_i32, %c0_i32_0 : i32, i32, i32
  }
  func.func @transform_4(%arg0: i32, %arg1: i32) -> (i32, i32, i32) {
    %c0_i32 = arith.constant 0 : i32
    %c0_i32_0 = arith.constant 0 : i32
    %c0_i32_1 = arith.constant 0 : i32
    return %arg1, %c0_i32, %c0_i32_0 : i32, i32, i32
  }
  func.func @transform_5(%arg0: i32, %arg1: i32) -> (i32, i32, i32) {
    %c0_i32 = arith.constant 0 : i32
    %c0_i32_0 = arith.constant 0 : i32
    %c0_i32_1 = arith.constant 0 : i32
    return %arg1, %c0_i32, %c0_i32_0 : i32, i32, i32
  }
  func.func @transform_6(%arg0: i32, %arg1: i32) -> (i32, i32, i32) {
    %c0_i32 = arith.constant 0 : i32
    %c0_i32_0 = arith.constant 0 : i32
    %c0_i32_1 = arith.constant 0 : i32
    return %arg1, %c0_i32, %c0_i32_0 : i32, i32, i32
  }
  func.func @transform_7(%arg0: i32, %arg1: i32) -> (i32, i32, i32) {
    %c0_i32 = arith.constant 0 : i32
    %c0_i32_0 = arith.constant 0 : i32
    %c0_i32_1 = arith.constant 0 : i32
    return %arg1, %c0_i32, %c0_i32_0 : i32, i32, i32
  }
  func.func @transform_8(%arg0: i32, %arg1: i32) -> (i32, i32, i32) {
    %c0_i32 = arith.constant 0 : i32
    %c0_i32_0 = arith.constant 0 : i32
    %c0_i32_1 = arith.constant 0 : i32
    return %arg1, %c0_i32, %c0_i32_0 : i32, i32, i32
  }
  func.func @transform_9(%arg0: i32, %arg1: i32) -> (i32, i32, i32) {
    %c0_i32 = arith.constant 0 : i32
    %c0_i32_0 = arith.constant 0 : i32
    %c0_i32_1 = arith.constant 0 : i32
    return %arg1, %c0_i32, %c0_i32_0 : i32, i32, i32
  }
  func.func @transform_10(%arg0: i32, %arg1: i32) -> (i32, i32, i32) {
    %c0_i32 = arith.constant 0 : i32
    %c0_i32_0 = arith.constant 0 : i32
    %c0_i32_1 = arith.constant 0 : i32
    return %arg1, %c0_i32, %c0_i32_0 : i32, i32, i32
  }
  func.func @transform_11(%arg0: i32, %arg1: i32) -> (i32, i32, i32) {
    %c0_i32 = arith.constant 0 : i32
    %c0_i32_0 = arith.constant 0 : i32
    %c0_i32_1 = arith.constant 0 : i32
    return %arg1, %c0_i32, %c0_i32_0 : i32, i32, i32
  }
  func.func @transform_12(%arg0: i32, %arg1: i32) -> (i32, i32, i32) {
    %c0_i32 = arith.constant 0 : i32
    %c0_i32_0 = arith.constant 0 : i32
    %c0_i32_1 = arith.constant 0 : i32
    return %arg1, %c0_i32, %c0_i32_0 : i32, i32, i32
  }
  func.func @transform_13(%arg0: i32, %arg1: i32) -> (i32, i32, i32) {
    %c0_i32 = arith.constant 0 : i32
    %c0_i32_0 = arith.constant 0 : i32
    %c0_i32_1 = arith.constant 0 : i32
    return %arg0, %c0_i32, %c0_i32_0 : i32, i32, i32
  }
}

</mosaic_0001>

<llo_original>
// kernel: tpu_custom_call.1
$region0: #{tpu_custom_call.1}
  #allocation0 [shape = 'u32[]', space=smem, size = 0x4, offset = 0x4, fixed_abs, tag = 'smem constant byte address 0x4 - core index']
  #allocation1 [shape = 'u32[144,128]{1,0:T(1,128)}', space=vmem, size = 0x12000, scoped, tag = 'internal scratch']
  #allocation2 [shape = 'f32[2,16,128]{2,1,0:T(8,128)}', space=vmem, size = 0x4000, scoped, tag = 'scratch operand']
  #allocation3 [shape = 'f32[2,16,128]{2,1,0:T(8,128)}', space=vmem, size = 0x4000, scoped, tag = 'scratch operand']
  %s0 = inlined_call_operand.hbm [shape: f32[2,16,128], index: 0, kind: input, shape index: {}]
  %s1 = inlined_call_operand.hbm [shape: bf16[2,128,384], index: 1, kind: input, shape index: {}]
  %s2 = inlined_call_operand.vmem [shape: f32[2,1,384], index: 2, kind: input, shape index: {}]
  %s3 = inlined_call_operand.hbm [shape: bf16[2,128,128], index: 3, kind: input, shape index: {}]
  %s4 = inlined_call_operand.vmem [shape: f32[2,1,128], index: 4, kind: input, shape index: {}]
  %s5 = inlined_call_operand.vmem [shape: f32[2,1,128], index: 5, kind: input, shape index: {}]
  %s6 = inlined_call_operand.vmem [shape: f32[2,1,128], index: 6, kind: input, shape index: {}]
  %s7 = inlined_call_operand.hbm [shape: bf16[2,128,256], index: 7, kind: input, shape index: {}]
  %s8 = inlined_call_operand.vmem [shape: f32[2,1,256], index: 8, kind: input, shape index: {}]
  %s9 = inlined_call_operand.hbm [shape: bf16[2,256,128], index: 9, kind: input, shape index: {}]
  %s10 = inlined_call_operand.vmem [shape: f32[2,1,128], index: 10, kind: input, shape index: {}]
  %s11 = inlined_call_operand.vmem [shape: f32[2,1,128], index: 11, kind: input, shape index: {}]
  %s12 = inlined_call_operand.vmem [shape: f32[2,1,128], index: 12, kind: input, shape index: {}]
  %s13 = inlined_call_operand.hbm [shape: f32[2,16,128], index: 13, kind: output, shape index: {}]
  %s14 = sld [smem:[#allocation0]]
  $region113: #{tpu_custom_call.1} parent=0
    _
  %s16 = ssub.s32 1, %s14
  %s17 = scalar_select 0, %s16, %s14
  $region1: #{tpu_custom_call.1} parent=0
    #allocation4 [shape = 'u8[16384]{0}', space=vmem, size = 0x4000, scoped, tag = 'input window, operand 0, single buffered']
    #allocation5 [shape = 's32[2]{0}', space=sflag, size = 0x8, scoped, tag = 'scoped memory for tpu_custom_call.1']
    #allocation6 [shape = 's32[2]{0}', space=sflag, size = 0x8, scoped, tag = 'scoped memory for tpu_custom_call.1']
    #allocation7 [shape = 'u8[196608]{0}', space=vmem, size = 0x30000, scoped, tag = 'input window, operand 1']
    #allocation8 [shape = 's32[2]{0}', space=sflag, size = 0x8, scoped, tag = 'scoped memory for tpu_custom_call.1']
    #allocation9 [shape = 'u8[65536]{0}', space=vmem, size = 0x10000, scoped, tag = 'input window, operand 3']
    #allocation10 [shape = 'u8[131072]{0}', space=vmem, size = 0x20000, scoped, tag = 'input window, operand 7']
    #allocation11 [shape = 's32[2]{0}', space=sflag, size = 0x8, scoped, tag = 'scoped memory for tpu_custom_call.1']
    #allocation12 [shape = 'u8[131072]{0}', space=vmem, size = 0x20000, scoped, tag = 'input window, operand 9']
    #allocation13 [shape = 'u8[16384]{0}', space=vmem, size = 0x4000, scoped, tag = 'output window, operand 0, single buffered']
    %18 = vsyncpa [#allocation5], 0
    %19 = vsyncpa [#allocation8], 0
    %s20 = scalar_lea.sflag [#allocation8], 1
    %21 = vsyncpa %s20, 0
    %22 = vsyncpa [#allocation11], 0
    %s23 = scalar_lea.sflag [#allocation11], 1
    %24 = vsyncpa %s23, 0
    %25 = vsyncpa [#allocation6], 0
    loop: start=0, step=1, limit=4
    $region2: #{tpu_custom_call.1} parent=1 // loop_pre_header
      _
    $region3: #{tpu_custom_call.1} parent=1 // loop_header
      %s27 = sphi 0, %s31
      %p28 = scmp.ge.s32.totalorder %s27, 4
      %s34 = sphi 0, %s46
      %s35 = sphi 0, %s42
      %s36 = sphi 0, %s34
      %s37 = sphi 0, %s35
      %s38 = sphi 0, %s36
      %s39 = sphi 0, %s37
      %s49 = sphi 0, %s51
      %s52 = sphi 0, %s49
      %s53 = sphi 0, %s52
      %s69 = sphi 0, %s53
      %s75 = sphi 0, %s77
      %s78 = sphi 0, %s75
      %s79 = sphi 0, %s78
      %s95 = sphi 0, %s79
      %s101 = sphi 0, %s103
      %s104 = sphi 0, %s101
      %s105 = sphi 0, %s104
      %s121 = sphi 0, %s105
      %s127 = sphi 0, %s129
      %s130 = sphi 0, %s127
      %s131 = sphi 0, %s130
      %s147 = sphi 0, %s131
      %s153 = sphi 0, %s155
      %s156 = sphi 0, %s153
      %s157 = sphi 0, %s156
      %s173 = sphi 0, %s157
      %s179 = sphi 0, %s181
      %s182 = sphi 0, %s179
      %s183 = sphi 0, %s182
      %s199 = sphi 0, %s183
      %s205 = sphi 0, %s207
      %s208 = sphi 0, %s205
      %s209 = sphi 0, %s208
      %s225 = sphi 0, %s209
      %s231 = sphi 0, %s233
      %s234 = sphi 0, %s231
      %s235 = sphi 0, %s234
      %s251 = sphi 0, %s235
      %s257 = sphi 0, %s259
      %s260 = sphi 0, %s257
      %s261 = sphi 0, %s260
      %s277 = sphi 0, %s261
      %s283 = sphi 0, %s285
      %s286 = sphi 0, %s283
      %s287 = sphi 0, %s286
      %s303 = sphi 0, %s287
      %s309 = sphi 0, %s311
      %s312 = sphi 0, %s309
      %s313 = sphi 0, %s312
      %s329 = sphi 0, %s313
      %s335 = sphi 0, %s337
      %s338 = sphi 0, %s335
      %s339 = sphi 0, %s338
      %s355 = sphi 0, %s339
      %s361 = sphi 0, %s363
      %s364 = sphi 0, %s361
      %s365 = sphi 0, %s364
      %s381 = sphi 0, %s365
      %s387 = sphi 0, %s389
      %s390 = sphi 0, %s387
      %s391 = sphi 0, %s390
      %s407 = sphi 0, %s391
    $region4: #{tpu_custom_call.1} parent=1 // loop_header_branch
      %30 = sbr.rel (%p28) target = $region8
    $region5: #{tpu_custom_call.1} parent=1 // loop_body
      %s32 = ssub.s32 %s27, 1
      %s33 = ssub.s32 %s27, 2
      %s40 = sadd.s32 1, %s35
      %p41 = scmp.ge.s32.totalorder %s40, 2
      %s42 = scalar_select %p41, 0, %s40
      %s43 = sadd.s32 1, %s34
      %s44 = scalar_select %p41, %s43, %s34
      %p45 = scmp.ge.s32.totalorder %s44, 1
      %s46 = scalar_select %p45, 0, %s44
      %s47 = ssub.s32 %s34, %s46
      %p48 = scmp.eq.s32.totalorder %s47, 0
      %s50 = sadd.s32 %s49, 1
      %s51 = scalar_select %p48, %s49, %s50
      %p54 = pneg %p48
      %p55 = scmp.eq.s32.totalorder %s27, 1
      %p56 = por %p54, %p55
      %p57 = scmp.ne.s32.totalorder %s49, %s52
      %p58 = scmp.eq.s32.totalorder %s27, 0
      %p59 = por %p57, %p58
      %p60 = scmp.ne.s32.totalorder %s49, %s52
      %p61 = scmp.eq.s32.totalorder %s32, 1
      %p62 = por %p60, %p61
      %p63 = scmp.ne.s32.totalorder %s52, %s53
      %p64 = scmp.eq.s32.totalorder %s32, 0
      %p65 = por %p63, %p64
      %p66 = scmp.ne.s32.totalorder %s52, %s53
      %p67 = scmp.eq.s32.totalorder %s33, 1
      %p68 = por %p66, %p67
      %p70 = scmp.ne.s32.totalorder %s53, %s69
      %p71 = scmp.eq.s32.totalorder %s33, 0
      %p72 = por %p70, %p71
      %s73 = ssub.s32 %s35, %s42
      %p74 = scmp.eq.s32.totalorder %s73, 0
      %s76 = sadd.s32 %s75, 1
      %s77 = scalar_select %p74, %s75, %s76
      %p80 = pneg %p74
      %p81 = scmp.eq.s32.totalorder %s27, 1
      %p82 = por %p80, %p81
      %p83 = scmp.ne.s32.totalorder %s75, %s78
      %p84 = scmp.eq.s32.totalorder %s27, 0
      %p85 = por %p83, %p84
      %p86 = scmp.ne.s32.totalorder %s75, %s78
      %p87 = scmp.eq.s32.totalorder %s32, 1
      %p88 = por %p86, %p87
      %p89 = scmp.ne.s32.totalorder %s78, %s79
      %p90 = scmp.eq.s32.totalorder %s32, 0
      %p91 = por %p89, %p90
      %p92 = scmp.ne.s32.totalorder %s78, %s79
      %p93 = scmp.eq.s32.totalorder %s33, 1
      %p94 = por %p92, %p93
      %p96 = scmp.ne.s32.totalorder %s79, %s95
      %p97 = scmp.eq.s32.totalorder %s33, 0
      %p98 = por %p96, %p97
      %s99 = ssub.s32 %s35, %s42
      %p100 = scmp.eq.s32.totalorder %s99, 0
      %s102 = sadd.s32 %s101, 1
      %s103 = scalar_select %p100, %s101, %s102
      %p106 = pneg %p100
      %p107 = scmp.eq.s32.totalorder %s27, 1
      %p108 = por %p106, %p107
      %p109 = scmp.ne.s32.totalorder %s101, %s104
      %p110 = scmp.eq.s32.totalorder %s27, 0
      %p111 = por %p109, %p110
      %p112 = scmp.ne.s32.totalorder %s101, %s104
      %p113 = scmp.eq.s32.totalorder %s32, 1
      %p114 = por %p112, %p113
      %p115 = scmp.ne.s32.totalorder %s104, %s105
      %p116 = scmp.eq.s32.totalorder %s32, 0
      %p117 = por %p115, %p116
      %p118 = scmp.ne.s32.totalorder %s104, %s105
      %p119 = scmp.eq.s32.totalorder %s33, 1
      %p120 = por %p118, %p119
      %p122 = scmp.ne.s32.totalorder %s105, %s121
      %p123 = scmp.eq.s32.totalorder %s33, 0
      %p124 = por %p122, %p123
      %s125 = ssub.s32 %s35, %s42
      %p126 = scmp.eq.s32.totalorder %s125, 0
      %s128 = sadd.s32 %s127, 1
      %s129 = scalar_select %p126, %s127, %s128
      %p132 = pneg %p126
      %p133 = scmp.eq.s32.totalorder %s27, 1
      %p134 = por %p132, %p133
      %p135 = scmp.ne.s32.totalorder %s127, %s130
      %p136 = scmp.eq.s32.totalorder %s27, 0
      %p137 = por %p135, %p136
      %p138 = scmp.ne.s32.totalorder %s127, %s130
      %p139 = scmp.eq.s32.totalorder %s32, 1
      %p140 = por %p138, %p139
      %p141 = scmp.ne.s32.totalorder %s130, %s131
      %p142 = scmp.eq.s32.totalorder %s32, 0
      %p143 = por %p141, %p142
      %p144 = scmp.ne.s32.totalorder %s130, %s131
      %p145 = scmp.eq.s32.totalorder %s33, 1
      %p146 = por %p144, %p145
      %p148 = scmp.ne.s32.totalorder %s131, %s147
      %p149 = scmp.eq.s32.totalorder %s33, 0
      %p150 = por %p148, %p149
      %s151 = ssub.s32 %s35, %s42
      %p152 = scmp.eq.s32.totalorder %s151, 0
      %s154 = sadd.s32 %s153, 1
      %s155 = scalar_select %p152, %s153, %s154
      %p158 = pneg %p152
      %p159 = scmp.eq.s32.totalorder %s27, 1
      %p160 = por %p158, %p159
      %p161 = scmp.ne.s32.totalorder %s153, %s156
      %p162 = scmp.eq.s32.totalorder %s27, 0
      %p163 = por %p161, %p162
      %p164 = scmp.ne.s32.totalorder %s153, %s156
      %p165 = scmp.eq.s32.totalorder %s32, 1
      %p166 = por %p164, %p165
      %p167 = scmp.ne.s32.totalorder %s156, %s157
      %p168 = scmp.eq.s32.totalorder %s32, 0
      %p169 = por %p167, %p168
      %p170 = scmp.ne.s32.totalorder %s156, %s157
      %p171 = scmp.eq.s32.totalorder %s33, 1
      %p172 = por %p170, %p171
      %p174 = scmp.ne.s32.totalorder %s157, %s173
      %p175 = scmp.eq.s32.totalorder %s33, 0
      %p176 = por %p174, %p175
      %s177 = ssub.s32 %s35, %s42
      %p178 = scmp.eq.s32.totalorder %s177, 0
      %s180 = sadd.s32 %s179, 1
      %s181 = scalar_select %p178, %s179, %s180
      %p184 = pneg %p178
      %p185 = scmp.eq.s32.totalorder %s27, 1
      %p186 = por %p184, %p185
      %p187 = scmp.ne.s32.totalorder %s179, %s182
      %p188 = scmp.eq.s32.totalorder %s27, 0
      %p189 = por %p187, %p188
      %p190 = scmp.ne.s32.totalorder %s179, %s182
      %p191 = scmp.eq.s32.totalorder %s32, 1
      %p192 = por %p190, %p191
      %p193 = scmp.ne.s32.totalorder %s182, %s183
      %p194 = scmp.eq.s32.totalorder %s32, 0
      %p195 = por %p193, %p194
      %p196 = scmp.ne.s32.totalorder %s182, %s183
      %p197 = scmp.eq.s32.totalorder %s33, 1
      %p198 = por %p196, %p197
      %p200 = scmp.ne.s32.totalorder %s183, %s199
      %p201 = scmp.eq.s32.totalorder %s33, 0
      %p202 = por %p200, %p201
      %s203 = ssub.s32 %s35, %s42
      %p204 = scmp.eq.s32.totalorder %s203, 0
      %s206 = sadd.s32 %s205, 1
      %s207 = scalar_select %p204, %s205, %s206
      %p210 = pneg %p204
      %p211 = scmp.eq.s32.totalorder %s27, 1
      %p212 = por %p210, %p211
      %p213 = scmp.ne.s32.totalorder %s205, %s208
      %p214 = scmp.eq.s32.totalorder %s27, 0
      %p215 = por %p213, %p214
      %p216 = scmp.ne.s32.totalorder %s205, %s208
      %p217 = scmp.eq.s32.totalorder %s32, 1
      %p218 = por %p216, %p217
      %p219 = scmp.ne.s32.totalorder %s208, %s209
      %p220 = scmp.eq.s32.totalorder %s32, 0
      %p221 = por %p219, %p220
      %p222 = scmp.ne.s32.totalorder %s208, %s209
      %p223 = scmp.eq.s32.totalorder %s33, 1
      %p224 = por %p222, %p223
      %p226 = scmp.ne.s32.totalorder %s209, %s225
      %p227 = scmp.eq.s32.totalorder %s33, 0
      %p228 = por %p226, %p227
      %s229 = ssub.s32 %s35, %s42
      %p230 = scmp.eq.s32.totalorder %s229, 0
      %s232 = sadd.s32 %s231, 1
      %s233 = scalar_select %p230, %s231, %s232
      %p236 = pneg %p230
      %p237 = scmp.eq.s32.totalorder %s27, 1
      %p238 = por %p236, %p237
      %p239 = scmp.ne.s32.totalorder %s231, %s234
      %p240 = scmp.eq.s32.totalorder %s27, 0
      %p241 = por %p239, %p240
      %p242 = scmp.ne.s32.totalorder %s231, %s234
      %p243 = scmp.eq.s32.totalorder %s32, 1
      %p244 = por %p242, %p243
      %p245 = scmp.ne.s32.totalorder %s234, %s235
      %p246 = scmp.eq.s32.totalorder %s32, 0
      %p247 = por %p245, %p246
      %p248 = scmp.ne.s32.totalorder %s234, %s235
      %p249 = scmp.eq.s32.totalorder %s33, 1
      %p250 = por %p248, %p249
      %p252 = scmp.ne.s32.totalorder %s235, %s251
      %p253 = scmp.eq.s32.totalorder %s33, 0
      %p254 = por %p252, %p253
      %s255 = ssub.s32 %s35, %s42
      %p256 = scmp.eq.s32.totalorder %s255, 0
      %s258 = sadd.s32 %s257, 1
      %s259 = scalar_select %p256, %s257, %s258
      %p262 = pneg %p256
      %p263 = scmp.eq.s32.totalorder %s27, 1
      %p264 = por %p262, %p263
      %p265 = scmp.ne.s32.totalorder %s257, %s260
      %p266 = scmp.eq.s32.totalorder %s27, 0
      %p267 = por %p265, %p266
      %p268 = scmp.ne.s32.totalorder %s257, %s260
      %p269 = scmp.eq.s32.totalorder %s32, 1
      %p270 = por %p268, %p269
      %p271 = scmp.ne.s32.totalorder %s260, %s261
      %p272 = scmp.eq.s32.totalorder %s32, 0
      %p273 = por %p271, %p272
      %p274 = scmp.ne.s32.totalorder %s260, %s261
      %p275 = scmp.eq.s32.totalorder %s33, 1
      %p276 = por %p274, %p275
      %p278 = scmp.ne.s32.totalorder %s261, %s277
      %p279 = scmp.eq.s32.totalorder %s33, 0
      %p280 = por %p278, %p279
      %s281 = ssub.s32 %s35, %s42
      %p282 = scmp.eq.s32.totalorder %s281, 0
      %s284 = sadd.s32 %s283, 1
      %s285 = scalar_select %p282, %s283, %s284
      %p288 = pneg %p282
      %p289 = scmp.eq.s32.totalorder %s27, 1
      %p290 = por %p288, %p289
      %p291 = scmp.ne.s32.totalorder %s283, %s286
      %p292 = scmp.eq.s32.totalorder %s27, 0
      %p293 = por %p291, %p292
      %p294 = scmp.ne.s32.totalorder %s283, %s286
      %p295 = scmp.eq.s32.totalorder %s32, 1
      %p296 = por %p294, %p295
      %p297 = scmp.ne.s32.totalorder %s286, %s287
      %p298 = scmp.eq.s32.totalorder %s32, 0
      %p299 = por %p297, %p298
      %p300 = scmp.ne.s32.totalorder %s286, %s287
      %p301 = scmp.eq.s32.totalorder %s33, 1
      %p302 = por %p300, %p301
      %p304 = scmp.ne.s32.totalorder %s287, %s303
      %p305 = scmp.eq.s32.totalorder %s33, 0
      %p306 = por %p304, %p305
      %s307 = ssub.s32 %s35, %s42
      %p308 = scmp.eq.s32.totalorder %s307, 0
      %s310 = sadd.s32 %s309, 1
      %s311 = scalar_select %p308, %s309, %s310
      %p314 = pneg %p308
      %p315 = scmp.eq.s32.totalorder %s27, 1
      %p316 = por %p314, %p315
      %p317 = scmp.ne.s32.totalorder %s309, %s312
      %p318 = scmp.eq.s32.totalorder %s27, 0
      %p319 = por %p317, %p318
      %p320 = scmp.ne.s32.totalorder %s309, %s312
      %p321 = scmp.eq.s32.totalorder %s32, 1
      %p322 = por %p320, %p321
      %p323 = scmp.ne.s32.totalorder %s312, %s313
      %p324 = scmp.eq.s32.totalorder %s32, 0
      %p325 = por %p323, %p324
      %p326 = scmp.ne.s32.totalorder %s312, %s313
      %p327 = scmp.eq.s32.totalorder %s33, 1
      %p328 = por %p326, %p327
      %p330 = scmp.ne.s32.totalorder %s313, %s329
      %p331 = scmp.eq.s32.totalorder %s33, 0
      %p332 = por %p330, %p331
      %s333 = ssub.s32 %s35, %s42
      %p334 = scmp.eq.s32.totalorder %s333, 0
      %s336 = sadd.s32 %s335, 1
      %s337 = scalar_select %p334, %s335, %s336
      %p340 = pneg %p334
      %p341 = scmp.eq.s32.totalorder %s27, 1
      %p342 = por %p340, %p341
      %p343 = scmp.ne.s32.totalorder %s335, %s338
      %p344 = scmp.eq.s32.totalorder %s27, 0
      %p345 = por %p343, %p344
      %p346 = scmp.ne.s32.totalorder %s335, %s338
      %p347 = scmp.eq.s32.totalorder %s32, 1
      %p348 = por %p346, %p347
      %p349 = scmp.ne.s32.totalorder %s338, %s339
      %p350 = scmp.eq.s32.totalorder %s32, 0
      %p351 = por %p349, %p350
      %p352 = scmp.ne.s32.totalorder %s338, %s339
      %p353 = scmp.eq.s32.totalorder %s33, 1
      %p354 = por %p352, %p353
      %p356 = scmp.ne.s32.totalorder %s339, %s355
      %p357 = scmp.eq.s32.totalorder %s33, 0
      %p358 = por %p356, %p357
      %s359 = ssub.s32 %s35, %s42
      %p360 = scmp.eq.s32.totalorder %s359, 0
      %s362 = sadd.s32 %s361, 1
      %s363 = scalar_select %p360, %s361, %s362
      %p366 = pneg %p360
      %p367 = scmp.eq.s32.totalorder %s27, 1
      %p368 = por %p366, %p367
      %p369 = scmp.ne.s32.totalorder %s361, %s364
      %p370 = scmp.eq.s32.totalorder %s27, 0
      %p371 = por %p369, %p370
      %p372 = scmp.ne.s32.totalorder %s361, %s364
      %p373 = scmp.eq.s32.totalorder %s32, 1
      %p374 = por %p372, %p373
      %p375 = scmp.ne.s32.totalorder %s364, %s365
      %p376 = scmp.eq.s32.totalorder %s32, 0
      %p377 = por %p375, %p376
      %p378 = scmp.ne.s32.totalorder %s364, %s365
      %p379 = scmp.eq.s32.totalorder %s33, 1
      %p380 = por %p378, %p379
      %p382 = scmp.ne.s32.totalorder %s365, %s381
      %p383 = scmp.eq.s32.totalorder %s33, 0
      %p384 = por %p382, %p383
      %s385 = ssub.s32 %s34, %s46
      %p386 = scmp.eq.s32.totalorder %s385, 0
      %s388 = sadd.s32 %s387, 1
      %s389 = scalar_select %p386, %s387, %s388
      %p392 = pneg %p386
      %p393 = scmp.eq.s32.totalorder %s27, 1
      %p394 = por %p392, %p393
      %p395 = scmp.ne.s32.totalorder %s387, %s390
      %p396 = scmp.eq.s32.totalorder %s27, 0
      %p397 = por %p395, %p396
      %p398 = scmp.ne.s32.totalorder %s387, %s390
      %p399 = scmp.eq.s32.totalorder %s32, 1
      %p400 = por %p398, %p399
      %p401 = scmp.ne.s32.totalorder %s390, %s391
      %p402 = scmp.eq.s32.totalorder %s32, 0
      %p403 = por %p401, %p402
      %p404 = scmp.ne.s32.totalorder %s390, %s391
      %p405 = scmp.eq.s32.totalorder %s33, 1
      %p406 = por %p404, %p405
      %p408 = scmp.ne.s32.totalorder %s391, %s407
      %p409 = scmp.eq.s32.totalorder %s33, 0
      %p410 = por %p408, %p409
      %p411 = scmp.le.s32.totalorder 1, %s27
      %p412 = scmp.lt.s32.totalorder %s27, 3
      %p413 = pnand %p411, %p412
      %p414 = pneg %p413
      // Predicated region
      $region9: #{tpu_custom_call.1} parent=5 // pred_check
        _
      $region10: #{tpu_custom_call.1} parent=5 // pred_check_branch
        %416 = sbr.rel (%p413) target = $region12
      $region11: #{tpu_custom_call.1} parent=5 // pred_region
        %s417 = ssub.s32 %s27, 1
        // Predicated region
        $region13: #{tpu_custom_call.1} parent=11 // pred_check
          %p418 = pneg %p65
        $region14: #{tpu_custom_call.1} parent=11 // pred_check_branch
          %420 = sbr.rel (%p418) target = $region16
        $region15: #{tpu_custom_call.1} parent=11 // pred_region
          %s421 = smul.u32 2, %s36
          %s423 = ssub.s32 512, 512
          %424 = vsyncadd [#allocation5], %s423
          %s425 = smul.addr %s421, 2
          %s426 = smul.addr %s425, 128
          %s427 = scalar_lea.hbm %s0, %s426
          %s428 = sshll.u32 [#allocation4], 4
          %s429 = int_to_ptr.vmem [resolvable:$true] %s428
          %434 = dma.hbm_to_vmem [thread:$0]  %s427, 512, %s429, [#allocation5], 128, 128, 8
        $region16: #{tpu_custom_call.1} parent=11 // pred_fallthru
          _
      $region12: #{tpu_custom_call.1} parent=5 // pred_fallthru
        _
      %p435 = scmp.lt.s32.totalorder %s27, 2
      // Predicated region
      $region17: #{tpu_custom_call.1} parent=5 // pred_check
        %p436 = pneg %p435
      $region18: #{tpu_custom_call.1} parent=5 // pred_check_branch
        %438 = sbr.rel (%p436) target = $region20
      $region19: #{tpu_custom_call.1} parent=5 // pred_region
        // Predicated region
        $region21: #{tpu_custom_call.1} parent=19 // pred_check
          %p439 = pneg %p85
        $region22: #{tpu_custom_call.1} parent=19 // pred_check_branch
          %441 = sbr.rel (%p439) target = $region24
        $region23: #{tpu_custom_call.1} parent=19 // pred_region
          %s442 = sand.u32 %s27, 1
          %s443 = scalar_lea.sflag [#allocation8], %s442
          %s444 = sand.u32 %s75, 1
          %s445 = smul.addr %s444, 192
          %s446 = scalar_lea.vmem [#allocation7], %s445
          %s448 = ssub.s32 3072, 3072
          %449 = vsyncadd %s443, %s448
          %s450 = smul.addr %s35, 48
          %s451 = smul.addr %s450, 64
          %s452 = scalar_lea.hbm %s1, %s451
          %s453 = sshll.u32 %s446, 4
          %s454 = int_to_ptr.vmem [resolvable:$true] %s453
          %459 = dma.hbm_to_vmem [thread:$0]  %s452, 3072, %s454, %s443, 192, 192, 12
        $region24: #{tpu_custom_call.1} parent=19 // pred_fallthru
          _
        // Predicated region
        $region25: #{tpu_custom_call.1} parent=19 // pred_check
          %p460 = pneg %p111
        $region26: #{tpu_custom_call.1} parent=19 // pred_check_branch
          %462 = sbr.rel (%p460) target = $region28
        $region27: #{tpu_custom_call.1} parent=19 // pred_region
          %p463 = scmp.lt.s32.totalorder %s35, 1
          %s464 = scalar_select %p463, %s35, 1
          %s465 = smul.addr %s464, 3
          %s466 = scalar_lea.vmem %s2, %s465
        $region28: #{tpu_custom_call.1} parent=19 // pred_fallthru
          _
        // Predicated region
        $region29: #{tpu_custom_call.1} parent=19 // pred_check
          %p467 = pneg %p137
        $region30: #{tpu_custom_call.1} parent=19 // pred_check_branch
          %469 = sbr.rel (%p467) target = $region32
        $region31: #{tpu_custom_call.1} parent=19 // pred_region
          %s470 = sand.u32 %s27, 1
          %s471 = scalar_lea.sflag [#allocation8], %s470
          %s472 = sand.u32 %s127, 1
          %s473 = smul.addr %s472, 64
          %s474 = scalar_lea.vmem [#allocation9], %s473
          %s476 = ssub.s32 1024, 1024
          %477 = vsyncadd %s471, %s476
          %s478 = smul.addr %s35, 16
          %s479 = smul.addr %s478, 64
          %s480 = scalar_lea.hbm %s3, %s479
          %s481 = sshll.u32 %s474, 4
          %s482 = int_to_ptr.vmem [resolvable:$true] %s481
          %487 = dma.hbm_to_vmem [thread:$0]  %s480, 1024, %s482, %s471, 64, 64, 4
        $region32: #{tpu_custom_call.1} parent=19 // pred_fallthru
          _
        // Predicated region
        $region33: #{tpu_custom_call.1} parent=19 // pred_check
          %p488 = pneg %p163
        $region34: #{tpu_custom_call.1} parent=19 // pred_check_branch
          %490 = sbr.rel (%p488) target = $region36
        $region35: #{tpu_custom_call.1} parent=19 // pred_region
          %p491 = scmp.lt.s32.totalorder %s35, 1
          %s492 = scalar_select %p491, %s35, 1
          %s493 = scalar_lea.vmem %s4, %s492
        $region36: #{tpu_custom_call.1} parent=19 // pred_fallthru
          _
        // Predicated region
        $region37: #{tpu_custom_call.1} parent=19 // pred_check
          %p494 = pneg %p189
        $region38: #{tpu_custom_call.1} parent=19 // pred_check_branch
          %496 = sbr.rel (%p494) target = $region40
        $region39: #{tpu_custom_call.1} parent=19 // pred_region
          %p497 = scmp.lt.s32.totalorder %s35, 1
          %s498 = scalar_select %p497, %s35, 1
          %s499 = scalar_lea.vmem %s5, %s498
        $region40: #{tpu_custom_call.1} parent=19 // pred_fallthru
          _
        // Predicated region
        $region41: #{tpu_custom_call.1} parent=19 // pred_check
          %p500 = pneg %p215
        $region42: #{tpu_custom_call.1} parent=19 // pred_check_branch
          %502 = sbr.rel (%p500) target = $region44
        $region43: #{tpu_custom_call.1} parent=19 // pred_region
          %p503 = scmp.lt.s32.totalorder %s35, 1
          %s504 = scalar_select %p503, %s35, 1
          %s505 = scalar_lea.vmem %s6, %s504
        $region44: #{tpu_custom_call.1} parent=19 // pred_fallthru
          _
        // Predicated region
        $region45: #{tpu_custom_call.1} parent=19 // pred_check
          %p506 = pneg %p241
        $region46: #{tpu_custom_call.1} parent=19 // pred_check_branch
          %508 = sbr.rel (%p506) target = $region48
        $region47: #{tpu_custom_call.1} parent=19 // pred_region
          %s509 = sand.u32 %s27, 1
          %s510 = scalar_lea.sflag [#allocation11], %s509
          %s511 = sand.u32 %s231, 1
          %s512 = smul.addr %s511, 128
          %s513 = scalar_lea.vmem [#allocation10], %s512
          %s515 = ssub.s32 2048, 2048
          %516 = vsyncadd %s510, %s515
          %s517 = smul.addr %s35, 32
          %s518 = smul.addr %s517, 64
          %s519 = scalar_lea.hbm %s7, %s518
          %s520 = sshll.u32 %s513, 4
          %s521 = int_to_ptr.vmem [resolvable:$true] %s520
          %526 = dma.hbm_to_vmem [thread:$0]  %s519, 2048, %s521, %s510, 128, 128, 8
        $region48: #{tpu_custom_call.1} parent=19 // pred_fallthru
          _
        // Predicated region
        $region49: #{tpu_custom_call.1} parent=19 // pred_check
          %p527 = pneg %p267
        $region50: #{tpu_custom_call.1} parent=19 // pred_check_branch
          %529 = sbr.rel (%p527) target = $region52
        $region51: #{tpu_custom_call.1} parent=19 // pred_region
          %p530 = scmp.lt.s32.totalorder %s35, 1
          %s531 = scalar_select %p530, %s35, 1
          %s532 = smul.addr %s531, 2
          %s533 = scalar_lea.vmem %s8, %s532
        $region52: #{tpu_custom_call.1} parent=19 // pred_fallthru
          _
        // Predicated region
        $region53: #{tpu_custom_call.1} parent=19 // pred_check
          %p534 = pneg %p293
        $region54: #{tpu_custom_call.1} parent=19 // pred_check_branch
          %536 = sbr.rel (%p534) target = $region56
        $region55: #{tpu_custom_call.1} parent=19 // pred_region
          %s537 = sand.u32 %s27, 1
          %s538 = scalar_lea.sflag [#allocation11], %s537
          %s539 = sand.u32 %s283, 1
          %s540 = smul.addr %s539, 128
          %s541 = scalar_lea.vmem [#allocation12], %s540
          %s543 = ssub.s32 2048, 2048
          %544 = vsyncadd %s538, %s543
          %s545 = smul.addr %s35, 32
          %s546 = smul.addr %s545, 64
          %s547 = scalar_lea.hbm %s9, %s546
          %s548 = sshll.u32 %s541, 4
          %s549 = int_to_ptr.vmem [resolvable:$true] %s548
          %554 = dma.hbm_to_vmem [thread:$0]  %s547, 2048, %s549, %s538, 64, 64, 4
        $region56: #{tpu_custom_call.1} parent=19 // pred_fallthru
          _
        // Predicated region
        $region57: #{tpu_custom_call.1} parent=19 // pred_check
          %p555 = pneg %p319
        $region58: #{tpu_custom_call.1} parent=19 // pred_check_branch
          %557 = sbr.rel (%p555) target = $region60
        $region59: #{tpu_custom_call.1} parent=19 // pred_region
          %p558 = scmp.lt.s32.totalorder %s35, 1
          %s559 = scalar_select %p558, %s35, 1
          %s560 = scalar_lea.vmem %s10, %s559
        $region60: #{tpu_custom_call.1} parent=19 // pred_fallthru
          _
        // Predicated region
        $region61: #{tpu_custom_call.1} parent=19 // pred_check
          %p561 = pneg %p345
        $region62: #{tpu_custom_call.1} parent=19 // pred_check_branch
          %563 = sbr.rel (%p561) target = $region64
        $region63: #{tpu_custom_call.1} parent=19 // pred_region
          %p564 = scmp.lt.s32.totalorder %s35, 1
          %s565 = scalar_select %p564, %s35, 1
          %s566 = scalar_lea.vmem %s11, %s565
        $region64: #{tpu_custom_call.1} parent=19 // pred_fallthru
          _
        // Predicated region
        $region65: #{tpu_custom_call.1} parent=19 // pred_check
          %p567 = pneg %p371
        $region66: #{tpu_custom_call.1} parent=19 // pred_check_branch
          %569 = sbr.rel (%p567) target = $region68
        $region67: #{tpu_custom_call.1} parent=19 // pred_region
          %p570 = scmp.lt.s32.totalorder %s35, 1
          %s571 = scalar_select %p570, %s35, 1
          %s572 = scalar_lea.vmem %s12, %s571
        $region68: #{tpu_custom_call.1} parent=19 // pred_fallthru
          _
      $region20: #{tpu_custom_call.1} parent=5 // pred_fallthru
        _
      %p573 = scmp.le.s32.totalorder 1, %s27
      %p574 = scmp.lt.s32.totalorder %s27, 3
      %p575 = pnand %p573, %p574
      %p576 = pneg %p575
      // Predicated region
      $region69: #{tpu_custom_call.1} parent=5 // pred_check
        _
      $region70: #{tpu_custom_call.1} parent=5 // pred_check_branch
        %578 = sbr.rel (%p575) target = $region72
      $region71: #{tpu_custom_call.1} parent=5 // pred_region
        %s579 = ssub.s32 %s27, 1
        // Predicated region
        $region73: #{tpu_custom_call.1} parent=71 // pred_check
          %p580 = pneg %p65
        $region74: #{tpu_custom_call.1} parent=71 // pred_check_branch
          %582 = sbr.rel (%p580) target = $region76
        $region75: #{tpu_custom_call.1} parent=71 // pred_region
          %583 = dma.done [#allocation5], 512
        $region76: #{tpu_custom_call.1} parent=71 // pred_fallthru
          _
        %s584 = sand.u32 %s32, 1
        %s585 = scalar_lea.sflag [#allocation8], %s584
        %s586 = sand.u32 %s78, 1
        %s587 = smul.addr %s586, 192
        %s588 = scalar_lea.vmem [#allocation7], %s587
        // Predicated region
        $region77: #{tpu_custom_call.1} parent=71 // pred_check
          %p589 = pneg %p91
        $region78: #{tpu_custom_call.1} parent=71 // pred_check_branch
          %591 = sbr.rel (%p589) target = $region80
        $region79: #{tpu_custom_call.1} parent=71 // pred_region
          %592 = dma.done %s585, 3072
        $region80: #{tpu_custom_call.1} parent=71 // pred_fallthru
          _
        %s593 = sand.u32 %s32, 1
        %s594 = scalar_lea.sflag [#allocation8], %s593
        %s595 = sand.u32 %s130, 1
        %s596 = smul.addr %s595, 64
        %s597 = scalar_lea.vmem [#allocation9], %s596
        // Predicated region
        $region81: #{tpu_custom_call.1} parent=71 // pred_check
          %p598 = pneg %p143
        $region82: #{tpu_custom_call.1} parent=71 // pred_check_branch
          %600 = sbr.rel (%p598) target = $region84
        $region83: #{tpu_custom_call.1} parent=71 // pred_region
          %601 = dma.done %s594, 1024
        $region84: #{tpu_custom_call.1} parent=71 // pred_fallthru
          _
        %s602 = sand.u32 %s32, 1
        %s603 = scalar_lea.sflag [#allocation11], %s602
        %s604 = sand.u32 %s234, 1
        %s605 = smul.addr %s604, 128
        %s606 = scalar_lea.vmem [#allocation10], %s605
        // Predicated region
        $region85: #{tpu_custom_call.1} parent=71 // pred_check
          %p607 = pneg %p247
        $region86: #{tpu_custom_call.1} parent=71 // pred_check_branch
          %609 = sbr.rel (%p607) target = $region88
        $region87: #{tpu_custom_call.1} parent=71 // pred_region
          %610 = dma.done %s603, 2048
        $region88: #{tpu_custom_call.1} parent=71 // pred_fallthru
          _
        %s611 = sand.u32 %s32, 1
        %s612 = scalar_lea.sflag [#allocation11], %s611
        %s613 = sand.u32 %s286, 1
        %s614 = smul.addr %s613, 128
        %s615 = scalar_lea.vmem [#allocation12], %s614
        // Predicated region
        $region89: #{tpu_custom_call.1} parent=71 // pred_check
          %p616 = pneg %p299
        $region90: #{tpu_custom_call.1} parent=71 // pred_check_branch
          %618 = sbr.rel (%p616) target = $region92
        $region91: #{tpu_custom_call.1} parent=71 // pred_region
          %619 = dma.done %s612, 2048
        $region92: #{tpu_custom_call.1} parent=71 // pred_fallthru
          _
        %p620 = pneg %p65
        %p621 = pneg %p62
        %s622 = sand.u32 %s32, 1
        %s623 = scalar_lea.sflag [#allocation8], %s622
        %s624 = sand.u32 %s78, 1
        %s625 = smul.addr %s624, 192
        %s626 = scalar_lea.vmem [#allocation7], %s625
        %p627 = pneg %p91
        %p628 = pneg %p88
        %p629 = scmp.lt.s32.totalorder %s37, 1
        %s630 = scalar_select %p629, %s37, 1
        %s631 = smul.addr %s630, 3
        %s632 = scalar_lea.vmem %s2, %s631
        %p633 = pneg %p117
        %p634 = pneg %p114
        %s635 = sand.u32 %s32, 1
        %s636 = scalar_lea.sflag [#allocation8], %s635
        %s637 = sand.u32 %s130, 1
        %s638 = smul.addr %s637, 64
        %s639 = scalar_lea.vmem [#allocation9], %s638
        %p640 = pneg %p143
        %p641 = pneg %p140
        %p642 = scmp.lt.s32.totalorder %s37, 1
        %s643 = scalar_select %p642, %s37, 1
        %s644 = scalar_lea.vmem %s4, %s643
        %p645 = pneg %p169
        %p646 = pneg %p166
        %p647 = scmp.lt.s32.totalorder %s37, 1
        %s648 = scalar_select %p647, %s37, 1
        %s649 = scalar_lea.vmem %s5, %s648
        %p650 = pneg %p195
        %p651 = pneg %p192
        %p652 = scmp.lt.s32.totalorder %s37, 1
        %s653 = scalar_select %p652, %s37, 1
        %s654 = scalar_lea.vmem %s6, %s653
        %p655 = pneg %p221
        %p656 = pneg %p218
        %s657 = sand.u32 %s32, 1
        %s658 = scalar_lea.sflag [#allocation11], %s657
        %s659 = sand.u32 %s234, 1
        %s660 = smul.addr %s659, 128
        %s661 = scalar_lea.vmem [#allocation10], %s660
        %p662 = pneg %p247
        %p663 = pneg %p244
        %p664 = scmp.lt.s32.totalorder %s37, 1
        %s665 = scalar_select %p664, %s37, 1
        %s666 = smul.addr %s665, 2
        %s667 = scalar_lea.vmem %s8, %s666
        %p668 = pneg %p273
        %p669 = pneg %p270
        %s670 = sand.u32 %s32, 1
        %s671 = scalar_lea.sflag [#allocation11], %s670
        %s672 = sand.u32 %s286, 1
        %s673 = smul.addr %s672, 128
        %s674 = scalar_lea.vmem [#allocation12], %s673
        %p675 = pneg %p299
        %p676 = pneg %p296
        %p677 = scmp.lt.s32.totalorder %s37, 1
        %s678 = scalar_select %p677, %s37, 1
        %s679 = scalar_lea.vmem %s10, %s678
        %p680 = pneg %p325
        %p681 = pneg %p322
        %p682 = scmp.lt.s32.totalorder %s37, 1
        %s683 = scalar_select %p682, %s37, 1
        %s684 = scalar_lea.vmem %s11, %s683
        %p685 = pneg %p351
        %p686 = pneg %p348
        %p687 = scmp.lt.s32.totalorder %s37, 1
        %s688 = scalar_select %p687, %s37, 1
        %s689 = scalar_lea.vmem %s12, %s688
        %p690 = pneg %p377
        %p691 = pneg %p374
        %p692 = pneg %p403
        %p693 = pneg %p400
        %s694 = smul.u32 2, %s36
        %p695 = scmp.lt.s32.totalorder %s37, 1
        %s696 = scalar_select %p695, %s37, 1
        %s697 = smul.addr %s696, 3
        %s698 = scalar_lea.vmem %s2, %s697
        %p699 = scmp.lt.s32.totalorder %s37, 1
        %s700 = scalar_select %p699, %s37, 1
        %s701 = scalar_lea.vmem %s4, %s700
        %p702 = scmp.lt.s32.totalorder %s37, 1
        %s703 = scalar_select %p702, %s37, 1
        %s704 = scalar_lea.vmem %s5, %s703
        %p705 = scmp.lt.s32.totalorder %s37, 1
        %s706 = scalar_select %p705, %s37, 1
        %s707 = scalar_lea.vmem %s6, %s706
        %p708 = scmp.lt.s32.totalorder %s37, 1
        %s709 = scalar_select %p708, %s37, 1
        %s710 = smul.addr %s709, 2
        %s711 = scalar_lea.vmem %s8, %s710
        %p712 = scmp.lt.s32.totalorder %s37, 1
        %s713 = scalar_select %p712, %s37, 1
        %s714 = scalar_lea.vmem %s10, %s713
        %p715 = scmp.lt.s32.totalorder %s37, 1
        %s716 = scalar_select %p715, %s37, 1
        %s717 = scalar_lea.vmem %s11, %s716
        %p718 = scmp.lt.s32.totalorder %s37, 1
        %s719 = scalar_select %p718, %s37, 1
        %s720 = scalar_lea.vmem %s12, %s719
        %s721 = smul.u32 2, %s36
        %p723 = scmp.eq.s32.totalorder %s37, 0
        // Predicated region
        $region93: #{tpu_custom_call.1} parent=71 // pred_check
          %p724 = pneg %p723
        $region94: #{tpu_custom_call.1} parent=71 // pred_check_branch
          %726 = sbr.rel (%p724) target = $region96
        $region95: #{tpu_custom_call.1} parent=71 // pred_region
          %727 = vst [vmem:[#allocation2] sm:$0xff] 0.0
          %728 = vst [vmem:[#allocation2 + $0x8] sm:$0xff] 0.0
          %729 = vst [vmem:[#allocation2 + $0x10] sm:$0xff] 0.0
          %730 = vst [vmem:[#allocation2 + $0x18] sm:$0xff] 0.0
        $region96: #{tpu_custom_call.1} parent=71 // pred_fallthru
          _
        %v731 = vld [vmem:[#allocation4] sm:$0xff]
        %v732 = vld [vmem:[#allocation4 + $0x8] sm:$0xff]
        %v733 = vld [vmem:[#allocation4 + $0x10] sm:$0xff]
        %v734 = vld [vmem:[#allocation4 + $0x18] sm:$0xff]
        %v735 = vpack.c.bf16 %v732, %v731
        %v736 = vpack.c.bf16 %v734, %v733
        %v737 = vld [vmem:[%s588] sm:$0xff]
        %v738 = vld [vmem:[%s588 + $0x8] sm:$0xf]
        %v739 = vld [vmem:[%s588 + $0xc] sm:$0xff]
        %v740 = vld [vmem:[%s588 + $0x14] sm:$0xf]
        %v741 = vld [vmem:[%s588 + $0x18] sm:$0xff]
        %v742 = vld [vmem:[%s588 + $0x20] sm:$0xf]
        %v743 = vld [vmem:[%s588 + $0x24] sm:$0xff]
        %v744 = vld [vmem:[%s588 + $0x2c] sm:$0xf]
        %v745 = vld [vmem:[%s588 + $0x30] sm:$0xff]
        %v746 = vld [vmem:[%s588 + $0x38] sm:$0xf]
        %v747 = vld [vmem:[%s588 + $0x3c] sm:$0xff]
        %v748 = vld [vmem:[%s588 + $0x44] sm:$0xf]
        %v749 = vld [vmem:[%s588 + $0x48] sm:$0xff]
        %v750 = vld [vmem:[%s588 + $0x50] sm:$0xf]
        %v751 = vld [vmem:[%s588 + $0x54] sm:$0xff]
        %v752 = vld [vmem:[%s588 + $0x5c] sm:$0xf]
        %v753 = vld [vmem:[%s588 + $0x60] sm:$0xff]
        %v754 = vld [vmem:[%s588 + $0x68] sm:$0xf]
        %v755 = vld [vmem:[%s588 + $0x6c] sm:$0xff]
        %v756 = vld [vmem:[%s588 + $0x74] sm:$0xf]
        %v757 = vld [vmem:[%s588 + $0x78] sm:$0xff]
        %v758 = vld [vmem:[%s588 + $0x80] sm:$0xf]
        %v759 = vld [vmem:[%s588 + $0x84] sm:$0xff]
        %v760 = vld [vmem:[%s588 + $0x8c] sm:$0xf]
        %v761 = vld [vmem:[%s588 + $0x90] sm:$0xff]
        %v762 = vld [vmem:[%s588 + $0x98] sm:$0xf]
        %v763 = vld [vmem:[%s588 + $0x9c] sm:$0xff]
        %v764 = vld [vmem:[%s588 + $0xa4] sm:$0xf]
        %v765 = vld [vmem:[%s588 + $0xa8] sm:$0xff]
        %v766 = vld [vmem:[%s588 + $0xb0] sm:$0xf]
        %v767 = vld [vmem:[%s588 + $0xb4] sm:$0xff]
        %v768 = vld [vmem:[%s588 + $0xbc] sm:$0xf]
        %v769 = vld [vmem:[%s698] sm:$0x7]
        %v771 = vlaneseq
        %v772 = vshrl.u32 %v771, 7
        %v773 = vsub.s32 0, %v772
        %v774 = vrot.slane %v769, %v773
        %v775 = vlaneseq
        %v776 = vshrl.u32 %v775, 7
        %v777 = vsub.s32 1, %v776
        %v778 = vrot.slane %v769, %v777
        %v779 = vlaneseq
        %v780 = vshrl.u32 %v779, 7
        %v781 = vsub.s32 2, %v780
        %v782 = vrot.slane %v769, %v781
        %v818 = vunpack.c.l.b16 %v737
        %v819 = vunpack.c.h.b16 %v737
        %v820 = vunpack.c.l.b16 %v738
        %v821 = vunpack.c.l.b16 %v739
        %v822 = vunpack.c.h.b16 %v739
        %v823 = vunpack.c.l.b16 %v740
        %v824 = vunpack.c.l.b16 %v741
        %v825 = vunpack.c.h.b16 %v741
        %v826 = vunpack.c.l.b16 %v742
        %v827 = vunpack.c.l.b16 %v743
        %v828 = vunpack.c.h.b16 %v743
        %v829 = vunpack.c.l.b16 %v744
        %v830 = vunpack.c.l.b16 %v745
        %v831 = vunpack.c.h.b16 %v745
        %v832 = vunpack.c.l.b16 %v746
        %v833 = vunpack.c.l.b16 %v747
        %v834 = vunpack.c.h.b16 %v747
        %v835 = vunpack.c.l.b16 %v748
        %v836 = vunpack.c.l.b16 %v749
        %v837 = vunpack.c.h.b16 %v749
        %v838 = vunpack.c.l.b16 %v750
        %v839 = vunpack.c.l.b16 %v751
        %v840 = vunpack.c.h.b16 %v751
        %v841 = vunpack.c.l.b16 %v752
        %v842 = vunpack.c.l.b16 %v753
        %v843 = vunpack.c.h.b16 %v753
        %v844 = vunpack.c.l.b16 %v754
        %v845 = vunpack.c.l.b16 %v755
        %v846 = vunpack.c.h.b16 %v755
        %v847 = vunpack.c.l.b16 %v756
        %v848 = vunpack.c.l.b16 %v757
        %v849 = vunpack.c.h.b16 %v757
        %v850 = vunpack.c.l.b16 %v758
        %v851 = vunpack.c.l.b16 %v759
        %v852 = vunpack.c.h.b16 %v759
        %v853 = vunpack.c.l.b16 %v760
        %v854 = vunpack.c.l.b16 %v761
        %v855 = vunpack.c.h.b16 %v761
        %v856 = vunpack.c.l.b16 %v762
        %v857 = vunpack.c.l.b16 %v763
        %v858 = vunpack.c.h.b16 %v763
        %v859 = vunpack.c.l.b16 %v764
        %v860 = vunpack.c.l.b16 %v765
        %v861 = vunpack.c.h.b16 %v765
        %v862 = vunpack.c.l.b16 %v766
        %v863 = vunpack.c.l.b16 %v767
        %v864 = vunpack.c.h.b16 %v767
        %v865 = vunpack.c.l.b16 %v768
        %v866 = vpack.c.b16 %v821, %v818
        %v867 = vpack.c.b16 %v822, %v819
        %v868 = vpack.c.b16 %v823, %v820
        %v869 = vpack.c.b16 %v827, %v824
        %v870 = vpack.c.b16 %v828, %v825
        %v871 = vpack.c.b16 %v829, %v826
        %v872 = vpack.c.b16 %v833, %v830
        %v873 = vpack.c.b16 %v834, %v831
        %v874 = vpack.c.b16 %v835, %v832
        %v875 = vpack.c.b16 %v839, %v836
        %v876 = vpack.c.b16 %v840, %v837
        %v877 = vpack.c.b16 %v841, %v838
        %v878 = vpack.c.b16 %v845, %v842
        %v879 = vpack.c.b16 %v846, %v843
        %v880 = vpack.c.b16 %v847, %v844
        %v881 = vpack.c.b16 %v851, %v848
        %v882 = vpack.c.b16 %v852, %v849
        %v883 = vpack.c.b16 %v853, %v850
        %v884 = vpack.c.b16 %v857, %v854
        %v885 = vpack.c.b16 %v858, %v855
        %v886 = vpack.c.b16 %v859, %v856
        %v887 = vpack.c.b16 %v863, %v860
        %v888 = vpack.c.b16 %v864, %v861
        %v889 = vpack.c.b16 %v865, %v862
        %914 = vmatprep.subr.bf16.mxu0 %v867
        %915 = vmatpush1.bf16.msra.mxu0 %v866
        %916 = vmatprep.subr.bf16.mxu0 %v870
        %917 = vmatpush1.bf16.msra.mxu0 %v869
        %918 = vmatprep.subr.bf16.mxu0 %v873
        %919 = vmatpush1.bf16.msra.mxu0 %v872
        %920 = vmatprep.subr.bf16.mxu0 %v876
        %921 = vmatpush1.bf16.msra.mxu0 %v875
        %922 = vmatprep.subr.bf16.mxu0 %v879
        %923 = vmatpush1.bf16.msra.mxu0 %v878
        %924 = vmatprep.subr.bf16.mxu0 %v882
        %925 = vmatpush1.bf16.msra.mxu0 %v881
        %926 = vmatprep.subr.bf16.mxu0 %v885
        %927 = vmatpush1.bf16.msra.mxu0 %v884
        %928 = vmatprep.subr.bf16.mxu0 %v888
        %929 = vmatpush1.bf16.msra.mxu0 %v887
        %930 = vmatprep.subr.bf16.mxu0 0
        %931 = vmatpush1.bf16.msra.mxu0 0
        %932 = vmatprep.subr.bf16.mxu0 0
        %933 = vmatpush1.bf16.msra.mxu0 0
        %934 = vmatprep.subr.bf16.mxu0 0
        %935 = vmatpush1.bf16.msra.mxu0 0
        %936 = vmatprep.subr.bf16.mxu0 0
        %937 = vmatpush1.bf16.msra.mxu0 0
        %938 = vmatprep.subr.bf16.mxu0 0
        %939 = vmatpush1.bf16.msra.mxu0 0
        %940 = vmatprep.subr.bf16.mxu0 0
        %941 = vmatpush1.bf16.msra.mxu0 0
        %942 = vmatprep.subr.bf16.mxu0 0
        %943 = vmatpush1.bf16.msra.mxu0 0
        %944 = vmatprep.subr.bf16.mxu0 0
        %945 = vmatpush1.bf16.msra.mxu0 0
        %946 = vmatprep.mubr.bf16.mxu0 0
        %947 = vmatmul.mubr.bf16.gmra.mrb[0].mxu0 %v735
        %v948 = vpop.f32.mrb[0].mxu0
        %v949 = vadd.f32 %v774, %v948
        %v950 = vpop.f32.mrb[0].mxu0
        %v951 = vadd.f32 %v778, %v950
        %v952 = vpop.f32.mrb[0].mxu0
        %v953 = vadd.f32 %v774, %v952
        %v954 = vpop.f32.mrb[0].mxu0
        %v955 = vadd.f32 %v778, %v954
        %956 = vmatprep.mubr.bf16.mxu0 0
        %957 = vmatmul.mubr.bf16.gmra.mrb[0].mxu0 %v736
        %v958 = vpop.f32.mrb[0].mxu0
        %v959 = vadd.f32 %v774, %v958
        %v960 = vpop.f32.mrb[0].mxu0
        %v961 = vadd.f32 %v778, %v960
        %v962 = vpop.f32.mrb[0].mxu0
        %v963 = vadd.f32 %v774, %v962
        %v964 = vpop.f32.mrb[0].mxu0
        %v965 = vadd.f32 %v778, %v964
        %966 = vdwg.mxu0
        %967 = vmatprep.subr.bf16.mxu0 0
        %968 = vmatpush1.bf16.msra.mxu0 %v868
        %969 = vmatprep.subr.bf16.mxu0 0
        %970 = vmatpush1.bf16.msra.mxu0 %v871
        %971 = vmatprep.subr.bf16.mxu0 0
        %972 = vmatpush1.bf16.msra.mxu0 %v874
        %973 = vmatprep.subr.bf16.mxu0 0
        %974 = vmatpush1.bf16.msra.mxu0 %v877
        %975 = vmatprep.subr.bf16.mxu0 0
        %976 = vmatpush1.bf16.msra.mxu0 %v880
        %977 = vmatprep.subr.bf16.mxu0 0
        %978 = vmatpush1.bf16.msra.mxu0 %v883
        %979 = vmatprep.subr.bf16.mxu0 0
        %980 = vmatpush1.bf16.msra.mxu0 %v886
        %981 = vmatprep.subr.bf16.mxu0 0
        %982 = vmatpush1.bf16.msra.mxu0 %v889
        %983 = vmatprep.subr.bf16.mxu0 0
        %984 = vmatpush1.bf16.msra.mxu0 0
        %985 = vmatprep.subr.bf16.mxu0 0
        %986 = vmatpush1.bf16.msra.mxu0 0
        %987 = vmatprep.subr.bf16.mxu0 0
        %988 = vmatpush1.bf16.msra.mxu0 0
        %989 = vmatprep.subr.bf16.mxu0 0
        %990 = vmatpush1.bf16.msra.mxu0 0
        %991 = vmatprep.subr.bf16.mxu0 0
        %992 = vmatpush1.bf16.msra.mxu0 0
        %993 = vmatprep.subr.bf16.mxu0 0
        %994 = vmatpush1.bf16.msra.mxu0 0
        %995 = vmatprep.subr.bf16.mxu0 0
        %996 = vmatpush1.bf16.msra.mxu0 0
        %997 = vmatprep.subr.bf16.mxu0 0
        %998 = vmatpush1.bf16.msra.mxu0 0
        %999 = vmatprep.mubr.bf16.mxu0 0
        %1000 = vmatmul.mubr.bf16.gmra.mrb[0].mxu0 %v735
        %v1001 = vpop.f32.mrb[0].mxu0
        %v1002 = vadd.f32 %v782, %v1001
        %v1003 = vpop.f32.mrb[0].mxu0
        %v1004 = vpop.f32.mrb[0].mxu0
        %v1005 = vadd.f32 %v782, %v1004
        %v1006 = vpop.f32.mrb[0].mxu0
        %1007 = vmatprep.mubr.bf16.mxu0 0
        %1008 = vmatmul.mubr.bf16.gmra.mrb[0].mxu0 %v736
        %v1009 = vpop.f32.mrb[0].mxu0
        %v1010 = vadd.f32 %v782, %v1009
        %v1011 = vpop.f32.mrb[0].mxu0
        %v1012 = vpop.f32.mrb[0].mxu0
        %v1013 = vadd.f32 %v782, %v1012
        %v1014 = vpop.f32.mrb[0].mxu0
        %1015 = vdwg.mxu0
        %v1016 = vpack.c.bf16 %v953, %v949
        %v1017 = vpack.c.bf16 %v963, %v959
        %v1018 = vpack.c.bf16 %v955, %v951
        %v1019 = vpack.c.bf16 %v965, %v961
        %v1020 = vpack.c.bf16 %v1005, %v1002
        %v1021 = vpack.c.bf16 %v1013, %v1010
        %vm1022 = vcmask 261120
        %v1024 = vsel %vm1022, %v1016, 0
        %v1027 = vsel %vm1022, %v1018, 0
        %1029 = vmatprep.subr.bf16.mxu0 0
        %1030 = vmatpush1.bf16.xpose.msra.mxu0 %v1027
        %1031 = vmatprep.subr.bf16.mxu0 0
        %1032 = vmatpush1.bf16.xpose.msra.mxu0 0
        %1033 = vmatprep.subr.bf16.mxu0 0
        %1034 = vmatpush1.bf16.xpose.msra.mxu0 0
        %1035 = vmatprep.subr.bf16.mxu0 0
        %1036 = vmatpush1.bf16.xpose.msra.mxu0 0
        %1037 = vmatprep.subr.bf16.mxu0 0
        %1038 = vmatpush1.bf16.xpose.msra.mxu0 0
        %1039 = vmatprep.subr.bf16.mxu0 0
        %1040 = vmatpush1.bf16.xpose.msra.mxu0 0
        %1041 = vmatprep.subr.bf16.mxu0 0
        %1042 = vmatpush1.bf16.xpose.msra.mxu0 0
        %1043 = vmatprep.subr.bf16.mxu0 0
        %1044 = vmatpush1.bf16.xpose.msra.mxu0 0
        %1045 = vmatprep.subr.bf16.mxu0 0
        %1046 = vmatpush1.bf16.xpose.msra.mxu0 0
        %1047 = vmatprep.subr.bf16.mxu0 0
        %1048 = vmatpush1.bf16.xpose.msra.mxu0 0
        %1049 = vmatprep.subr.bf16.mxu0 0
        %1050 = vmatpush1.bf16.xpose.msra.mxu0 0
        %1051 = vmatprep.subr.bf16.mxu0 0
        %1052 = vmatpush1.bf16.xpose.msra.mxu0 0
        %1053 = vmatprep.subr.bf16.mxu0 0
        %1054 = vmatpush1.bf16.xpose.msra.mxu0 0
        %1055 = vmatprep.subr.bf16.mxu0 0
        %1056 = vmatpush1.bf16.xpose.msra.mxu0 0
        %1057 = vmatprep.subr.bf16.mxu0 0
        %1058 = vmatpush1.bf16.xpose.msra.mxu0 0
        %1059 = vmatprep.subr.bf16.mxu0 0
        %1060 = vmatpush1.bf16.xpose.msra.mxu0 0
        %1061 = vmatprep.mubr.bf16.mxu0 0
        %1062 = vmatmul.mubr.bf16.gmra.mrb[0].mxu0 %v1024
        %v1063 = vpop.f32.mrb[0].mxu0
        %v1064 = vadd.f32 0.0, %v1063
        %v1065 = vpop.f32.mrb[0].mxu0
        %v1066 = vpop.f32.mrb[0].mxu0
        %v1067 = vadd.f32 0.0, %v1066
        %v1068 = vpop.f32.mrb[0].mxu0
        %1069 = vdwg.mxu0
        %v1071 = vsel %vm1022, %v1017, 0
        %v1074 = vsel %vm1022, %v1019, 0
        %1076 = vmatprep.subr.bf16.mxu0 0
        %1077 = vmatpush1.bf16.xpose.msra.mxu0 %v1074
        %1078 = vmatprep.subr.bf16.mxu0 0
        %1079 = vmatpush1.bf16.xpose.msra.mxu0 0
        %1080 = vmatprep.subr.bf16.mxu0 0
        %1081 = vmatpush1.bf16.xpose.msra.mxu0 0
        %1082 = vmatprep.subr.bf16.mxu0 0
        %1083 = vmatpush1.bf16.xpose.msra.mxu0 0
        %1084 = vmatprep.subr.bf16.mxu0 0
        %1085 = vmatpush1.bf16.xpose.msra.mxu0 0
        %1086 = vmatprep.subr.bf16.mxu0 0
        %1087 = vmatpush1.bf16.xpose.msra.mxu0 0
        %1088 = vmatprep.subr.bf16.mxu0 0
        %1089 = vmatpush1.bf16.xpose.msra.mxu0 0
        %1090 = vmatprep.subr.bf16.mxu0 0
        %1091 = vmatpush1.bf16.xpose.msra.mxu0 0
        %1092 = vmatprep.subr.bf16.mxu0 0
        %1093 = vmatpush1.bf16.xpose.msra.mxu0 0
        %1094 = vmatprep.subr.bf16.mxu0 0
        %1095 = vmatpush1.bf16.xpose.msra.mxu0 0
        %1096 = vmatprep.subr.bf16.mxu0 0
        %1097 = vmatpush1.bf16.xpose.msra.mxu0 0
        %1098 = vmatprep.subr.bf16.mxu0 0
        %1099 = vmatpush1.bf16.xpose.msra.mxu0 0
        %1100 = vmatprep.subr.bf16.mxu0 0
        %1101 = vmatpush1.bf16.xpose.msra.mxu0 0
        %1102 = vmatprep.subr.bf16.mxu0 0
        %1103 = vmatpush1.bf16.xpose.msra.mxu0 0
        %1104 = vmatprep.subr.bf16.mxu0 0
        %1105 = vmatpush1.bf16.xpose.msra.mxu0 0
        %1106 = vmatprep.subr.bf16.mxu0 0
        %1107 = vmatpush1.bf16.xpose.msra.mxu0 0
        %1108 = vmatprep.mubr.bf16.mxu0 0
        %1109 = vmatmul.mubr.bf16.gmra.mrb[0].mxu0 %v1071
        %v1110 = vpop.f32.mrb[0].mxu0
        %v1111 = vadd.f32 0.0, %v1110
        %v1112 = vpop.f32.mrb[0].mxu0
        %v1113 = vpop.f32.mrb[0].mxu0
        %v1114 = vadd.f32 0.0, %v1113
        %v1115 = vpop.f32.mrb[0].mxu0
        %1116 = vdwg.mxu0
        %v1117 = vmul.f32 %v1064, 0.17677669
        %v1118 = vmul.f32 %v1067, 0.17677669
        %v1119 = vmul.f32 %v1111, 0.17677669
        %v1120 = vmul.f32 %v1114, 0.17677669
        %vm1121 = vcmask 130048
        %v1122 = vsel %vm1121, %v1117, -inf
        %1123 = vmax.xlane.f32.xlu0 %v1122
        %v1124 = vpop.xlane.xlu0 %1123
        %v1125 = vsel %vm1121, %v1118, -inf
        %1126 = vmax.xlane.f32.xlu0 %v1125
        %v1127 = vpop.xlane.xlu0 %1126
        %v1128 = vsel %vm1121, %v1119, -inf
        %1129 = vmax.xlane.f32.xlu0 %v1128
        %v1130 = vpop.xlane.xlu0 %1129
        %v1131 = vsel %vm1121, %v1120, -inf
        %1132 = vmax.xlane.f32.xlu0 %v1131
        %v1133 = vpop.xlane.xlu0 %1132
        %v1134 = vsub.f32 %v1117, %v1124
        %v1135 = vsub.f32 %v1118, %v1127
        %v1136 = vsub.f32 %v1119, %v1130
        %v1137 = vsub.f32 %v1120, %v1133
        %v1138 = vmul.f32 %v1134, 1.442695
        %v1139 = vpow.pop %v1138
        %v1140 = vmul.f32 %v1135, 1.442695
        %v1141 = vpow.pop %v1140
        %v1142 = vmul.f32 %v1136, 1.442695
        %v1143 = vpow.pop %v1142
        %v1144 = vmul.f32 %v1137, 1.442695
        %v1145 = vpow.pop %v1144
        %v1146 = vsel %vm1121, %v1139, 0.0
        %1147 = vadd.xlane.f32.xlu0 %v1146
        %v1148 = vpop.xlane.xlu0 %1147
        %v1149 = vsel %vm1121, %v1141, 0.0
        %1150 = vadd.xlane.f32.xlu0 %v1149
        %v1151 = vpop.xlane.xlu0 %1150
        %v1152 = vsel %vm1121, %v1143, 0.0
        %1153 = vadd.xlane.f32.xlu0 %v1152
        %v1154 = vpop.xlane.xlu0 %1153
        %v1155 = vsel %vm1121, %v1145, 0.0
        %1156 = vadd.xlane.f32.xlu0 %v1155
        %v1157 = vpop.xlane.xlu0 %1156
        %v1158 = vrcp.pop %v1148
        %v1159 = vrcp.pop %v1151
        %v1160 = vrcp.pop %v1154
        %v1161 = vrcp.pop %v1157
        %v1162 = vmul.f32 %v1139, %v1158
        %v1163 = vmul.f32 %v1141, %v1159
        %v1164 = vmul.f32 %v1143, %v1160
        %v1165 = vmul.f32 %v1145, %v1161
        %v1166 = vpack.c.bf16 %v1163, %v1162
        %v1167 = vpack.c.bf16 %v1165, %v1164
        %v1169 = vsel %vm1121, %v1166, 0
        %1171 = vmatprep.subr.bf16.mxu0 0
        %1172 = vmatpush1.bf16.msra.mxu0 %v1020
        %1173 = vmatprep.subr.bf16.mxu0 0
        %1174 = vmatpush1.bf16.msra.mxu0 0
        %1175 = vmatprep.subr.bf16.mxu0 0
        %1176 = vmatpush1.bf16.msra.mxu0 0
        %1177 = vmatprep.subr.bf16.mxu0 0
        %1178 = vmatpush1.bf16.msra.mxu0 0
        %1179 = vmatprep.subr.bf16.mxu0 0
        %1180 = vmatpush1.bf16.msra.mxu0 0
        %1181 = vmatprep.subr.bf16.mxu0 0
        %1182 = vmatpush1.bf16.msra.mxu0 0
        %1183 = vmatprep.subr.bf16.mxu0 0
        %1184 = vmatpush1.bf16.msra.mxu0 0
        %1185 = vmatprep.subr.bf16.mxu0 0
        %1186 = vmatpush1.bf16.msra.mxu0 0
        %1187 = vmatprep.subr.bf16.mxu0 0
        %1188 = vmatpush1.bf16.msra.mxu0 0
        %1189 = vmatprep.subr.bf16.mxu0 0
        %1190 = vmatpush1.bf16.msra.mxu0 0
        %1191 = vmatprep.subr.bf16.mxu0 0
        %1192 = vmatpush1.bf16.msra.mxu0 0
        %1193 = vmatprep.subr.bf16.mxu0 0
        %1194 = vmatpush1.bf16.msra.mxu0 0
        %1195 = vmatprep.subr.bf16.mxu0 0
        %1196 = vmatpush1.bf16.msra.mxu0 0
        %1197 = vmatprep.subr.bf16.mxu0 0
        %1198 = vmatpush1.bf16.msra.mxu0 0
        %1199 = vmatprep.subr.bf16.mxu0 0
        %1200 = vmatpush1.bf16.msra.mxu0 0
        %1201 = vmatprep.subr.bf16.mxu0 0
        %1202 = vmatpush1.bf16.msra.mxu0 0
        %1203 = vmatprep.mubr.bf16.mxu0 0
        %1204 = vmatmul.mubr.bf16.gmra.mrb[0].mxu0 %v1169
        %v1205 = vpop.f32.mrb[0].mxu0
        %v1206 = vadd.f32 0.0, %v1205
        %v1207 = vpop.f32.mrb[0].mxu0
        %v1208 = vpop.f32.mrb[0].mxu0
        %v1209 = vadd.f32 0.0, %v1208
        %v1210 = vpop.f32.mrb[0].mxu0
        %1211 = vdwg.mxu0
        %v1213 = vsel %vm1121, %v1167, 0
        %1215 = vmatprep.subr.bf16.mxu0 0
        %1216 = vmatpush1.bf16.msra.mxu0 %v1021
        %1217 = vmatprep.subr.bf16.mxu0 0
        %1218 = vmatpush1.bf16.msra.mxu0 0
        %1219 = vmatprep.subr.bf16.mxu0 0
        %1220 = vmatpush1.bf16.msra.mxu0 0
        %1221 = vmatprep.subr.bf16.mxu0 0
        %1222 = vmatpush1.bf16.msra.mxu0 0
        %1223 = vmatprep.subr.bf16.mxu0 0
        %1224 = vmatpush1.bf16.msra.mxu0 0
        %1225 = vmatprep.subr.bf16.mxu0 0
        %1226 = vmatpush1.bf16.msra.mxu0 0
        %1227 = vmatprep.subr.bf16.mxu0 0
        %1228 = vmatpush1.bf16.msra.mxu0 0
        %1229 = vmatprep.subr.bf16.mxu0 0
        %1230 = vmatpush1.bf16.msra.mxu0 0
        %1231 = vmatprep.subr.bf16.mxu0 0
        %1232 = vmatpush1.bf16.msra.mxu0 0
        %1233 = vmatprep.subr.bf16.mxu0 0
        %1234 = vmatpush1.bf16.msra.mxu0 0
        %1235 = vmatprep.subr.bf16.mxu0 0
        %1236 = vmatpush1.bf16.msra.mxu0 0
        %1237 = vmatprep.subr.bf16.mxu0 0
        %1238 = vmatpush1.bf16.msra.mxu0 0
        %1239 = vmatprep.subr.bf16.mxu0 0
        %1240 = vmatpush1.bf16.msra.mxu0 0
        %1241 = vmatprep.subr.bf16.mxu0 0
        %1242 = vmatpush1.bf16.msra.mxu0 0
        %1243 = vmatprep.subr.bf16.mxu0 0
        %1244 = vmatpush1.bf16.msra.mxu0 0
        %1245 = vmatprep.subr.bf16.mxu0 0
        %1246 = vmatpush1.bf16.msra.mxu0 0
        %1247 = vmatprep.mubr.bf16.mxu0 0
        %1248 = vmatmul.mubr.bf16.gmra.mrb[0].mxu0 %v1213
        %v1249 = vpop.f32.mrb[0].mxu0
        %v1250 = vadd.f32 0.0, %v1249
        %v1251 = vpop.f32.mrb[0].mxu0
        %v1252 = vpop.f32.mrb[0].mxu0
        %v1253 = vadd.f32 0.0, %v1252
        %v1254 = vpop.f32.mrb[0].mxu0
        %1255 = vdwg.mxu0
        %1256 = vst.msk [vmem:[#allocation3] sm:$0xff] %vm1022, %v1206
        %1257 = vst.msk [vmem:[#allocation3 + $0x8] sm:$0xff] %vm1022, %v1209
        %1258 = vst.msk [vmem:[#allocation3 + $0x10] sm:$0xff] %vm1022, %v1250
        %1259 = vst.msk [vmem:[#allocation3 + $0x18] sm:$0xff] %vm1022, %v1253
        %1261 = vrot.lane.b32.xlu0 %v1016, 96
        %v1262 = vpop.permute.xlu0 %1261
        %1264 = vrot.lane.b32.xlu0 %v1018, 96
        %v1265 = vpop.permute.xlu0 %1264
        %v1267 = vsel %vm1022, %v1262, 0
        %v1270 = vsel %vm1022, %v1265, 0
        %1272 = vmatprep.subr.bf16.mxu0 0
        %1273 = vmatpush1.bf16.xpose.msra.mxu0 %v1270
        %1274 = vmatprep.subr.bf16.mxu0 0
        %1275 = vmatpush1.bf16.xpose.msra.mxu0 0
        %1276 = vmatprep.subr.bf16.mxu0 0
        %1277 = vmatpush1.bf16.xpose.msra.mxu0 0
        %1278 = vmatprep.subr.bf16.mxu0 0
        %1279 = vmatpush1.bf16.xpose.msra.mxu0 0
        %1280 = vmatprep.subr.bf16.mxu0 0
        %1281 = vmatpush1.bf16.xpose.msra.mxu0 0
        %1282 = vmatprep.subr.bf16.mxu0 0
        %1283 = vmatpush1.bf16.xpose.msra.mxu0 0
        %1284 = vmatprep.subr.bf16.mxu0 0
        %1285 = vmatpush1.bf16.xpose.msra.mxu0 0
        %1286 = vmatprep.subr.bf16.mxu0 0
        %1287 = vmatpush1.bf16.xpose.msra.mxu0 0
        %1288 = vmatprep.subr.bf16.mxu0 0
        %1289 = vmatpush1.bf16.xpose.msra.mxu0 0
        %1290 = vmatprep.subr.bf16.mxu0 0
        %1291 = vmatpush1.bf16.xpose.msra.mxu0 0
        %1292 = vmatprep.subr.bf16.mxu0 0
        %1293 = vmatpush1.bf16.xpose.msra.mxu0 0
        %1294 = vmatprep.subr.bf16.mxu0 0
        %1295 = vmatpush1.bf16.xpose.msra.mxu0 0
        %1296 = vmatprep.subr.bf16.mxu0 0
        %1297 = vmatpush1.bf16.xpose.msra.mxu0 0
        %1298 = vmatprep.subr.bf16.mxu0 0
        %1299 = vmatpush1.bf16.xpose.msra.mxu0 0
        %1300 = vmatprep.subr.bf16.mxu0 0
        %1301 = vmatpush1.bf16.xpose.msra.mxu0 0
        %1302 = vmatprep.subr.bf16.mxu0 0
        %1303 = vmatpush1.bf16.xpose.msra.mxu0 0
        %1304 = vmatprep.mubr.bf16.mxu0 0
        %1305 = vmatmul.mubr.bf16.gmra.mrb[0].mxu0 %v1267
        %v1306 = vpop.f32.mrb[0].mxu0
        %v1307 = vadd.f32 0.0, %v1306
        %v1308 = vpop.f32.mrb[0].mxu0
        %v1309 = vpop.f32.mrb[0].mxu0
        %v1310 = vadd.f32 0.0, %v1309
        %v1311 = vpop.f32.mrb[0].mxu0
        %1312 = vdwg.mxu0
        %1314 = vrot.lane.b32.xlu0 %v1017, 96
        %v1315 = vpop.permute.xlu0 %1314
        %1317 = vrot.lane.b32.xlu0 %v1019, 96
        %v1318 = vpop.permute.xlu0 %1317
        %v1320 = vsel %vm1022, %v1315, 0
        %v1323 = vsel %vm1022, %v1318, 0
        %1325 = vmatprep.subr.bf16.mxu0 0
        %1326 = vmatpush1.bf16.xpose.msra.mxu0 %v1323
        %1327 = vmatprep.subr.bf16.mxu0 0
        %1328 = vmatpush1.bf16.xpose.msra.mxu0 0
        %1329 = vmatprep.subr.bf16.mxu0 0
        %1330 = vmatpush1.bf16.xpose.msra.mxu0 0
        %1331 = vmatprep.subr.bf16.mxu0 0
        %1332 = vmatpush1.bf16.xpose.msra.mxu0 0
        %1333 = vmatprep.subr.bf16.mxu0 0
        %1334 = vmatpush1.bf16.xpose.msra.mxu0 0
        %1335 = vmatprep.subr.bf16.mxu0 0
        %1336 = vmatpush1.bf16.xpose.msra.mxu0 0
        %1337 = vmatprep.subr.bf16.mxu0 0
        %1338 = vmatpush1.bf16.xpose.msra.mxu0 0
        %1339 = vmatprep.subr.bf16.mxu0 0
        %1340 = vmatpush1.bf16.xpose.msra.mxu0 0
        %1341 = vmatprep.subr.bf16.mxu0 0
        %1342 = vmatpush1.bf16.xpose.msra.mxu0 0
        %1343 = vmatprep.subr.bf16.mxu0 0
        %1344 = vmatpush1.bf16.xpose.msra.mxu0 0
        %1345 = vmatprep.subr.bf16.mxu0 0
        %1346 = vmatpush1.bf16.xpose.msra.mxu0 0
        %1347 = vmatprep.subr.bf16.mxu0 0
        %1348 = vmatpush1.bf16.xpose.msra.mxu0 0
        %1349 = vmatprep.subr.bf16.mxu0 0
        %1350 = vmatpush1.bf16.xpose.msra.mxu0 0
        %1351 = vmatprep.subr.bf16.mxu0 0
        %1352 = vmatpush1.bf16.xpose.msra.mxu0 0
        %1353 = vmatprep.subr.bf16.mxu0 0
        %1354 = vmatpush1.bf16.xpose.msra.mxu0 0
        %1355 = vmatprep.subr.bf16.mxu0 0
        %1356 = vmatpush1.bf16.xpose.msra.mxu0 0
        %1357 = vmatprep.mubr.bf16.mxu0 0
        %1358 = vmatmul.mubr.bf16.gmra.mrb[0].mxu0 %v1320
        %v1359 = vpop.f32.mrb[0].mxu0
        %v1360 = vadd.f32 0.0, %v1359
        %v1361 = vpop.f32.mrb[0].mxu0
        %v1362 = vpop.f32.mrb[0].mxu0
        %v1363 = vadd.f32 0.0, %v1362
        %v1364 = vpop.f32.mrb[0].mxu0
        %1365 = vdwg.mxu0
        %v1366 = vmul.f32 %v1307, 0.17677669
        %v1367 = vmul.f32 %v1310, 0.17677669
        %v1368 = vmul.f32 %v1360, 0.17677669
        %v1369 = vmul.f32 %v1363, 0.17677669
        %v1370 = vsel %vm1121, %v1366, -inf
        %1371 = vmax.xlane.f32.xlu0 %v1370
        %v1372 = vpop.xlane.xlu0 %1371
        %v1373 = vsel %vm1121, %v1367, -inf
        %1374 = vmax.xlane.f32.xlu0 %v1373
        %v1375 = vpop.xlane.xlu0 %1374
        %v1376 = vsel %vm1121, %v1368, -inf
        %1377 = vmax.xlane.f32.xlu0 %v1376
        %v1378 = vpop.xlane.xlu0 %1377
        %v1379 = vsel %vm1121, %v1369, -inf
        %1380 = vmax.xlane.f32.xlu0 %v1379
        %v1381 = vpop.xlane.xlu0 %1380
        %v1382 = vsub.f32 %v1366, %v1372
        %v1383 = vsub.f32 %v1367, %v1375
        %v1384 = vsub.f32 %v1368, %v1378
        %v1385 = vsub.f32 %v1369, %v1381
        %v1386 = vmul.f32 %v1382, 1.442695
        %v1387 = vpow.pop %v1386
        %v1388 = vmul.f32 %v1383, 1.442695
        %v1389 = vpow.pop %v1388
        %v1390 = vmul.f32 %v1384, 1.442695
        %v1391 = vpow.pop %v1390
        %v1392 = vmul.f32 %v1385, 1.442695
        %v1393 = vpow.pop %v1392
        %v1394 = vsel %vm1121, %v1387, 0.0
        %1395 = vadd.xlane.f32.xlu0 %v1394
        %v1396 = vpop.xlane.xlu0 %1395
        %v1397 = vsel %vm1121, %v1389, 0.0
        %1398 = vadd.xlane.f32.xlu0 %v1397
        %v1399 = vpop.xlane.xlu0 %1398
        %v1400 = vsel %vm1121, %v1391, 0.0
        %1401 = vadd.xlane.f32.xlu0 %v1400
        %v1402 = vpop.xlane.xlu0 %1401
        %v1403 = vsel %vm1121, %v1393, 0.0
        %1404 = vadd.xlane.f32.xlu0 %v1403
        %v1405 = vpop.xlane.xlu0 %1404
        %v1406 = vrcp.pop %v1396
        %v1407 = vrcp.pop %v1399
        %v1408 = vrcp.pop %v1402
        %v1409 = vrcp.pop %v1405
        %v1410 = vmul.f32 %v1387, %v1406
        %v1411 = vmul.f32 %v1389, %v1407
        %v1412 = vmul.f32 %v1391, %v1408
        %v1413 = vmul.f32 %v1393, %v1409
        %v1414 = vpack.c.bf16 %v1411, %v1410
        %v1415 = vpack.c.bf16 %v1413, %v1412
        %1417 = vrot.lane.b32.xlu0 %v1020, 96
        %v1418 = vpop.permute.xlu0 %1417
        %v1421 = vsel %vm1121, %v1414, 0
        %1423 = vmatprep.subr.bf16.mxu0 0
        %1424 = vmatpush1.bf16.msra.mxu0 %v1418
        %1425 = vmatprep.subr.bf16.mxu0 0
        %1426 = vmatpush1.bf16.msra.mxu0 0
        %1427 = vmatprep.subr.bf16.mxu0 0
        %1428 = vmatpush1.bf16.msra.mxu0 0
        %1429 = vmatprep.subr.bf16.mxu0 0
        %1430 = vmatpush1.bf16.msra.mxu0 0
        %1431 = vmatprep.subr.bf16.mxu0 0
        %1432 = vmatpush1.bf16.msra.mxu0 0
        %1433 = vmatprep.subr.bf16.mxu0 0
        %1434 = vmatpush1.bf16.msra.mxu0 0
        %1435 = vmatprep.subr.bf16.mxu0 0
        %1436 = vmatpush1.bf16.msra.mxu0 0
        %1437 = vmatprep.subr.bf16.mxu0 0
        %1438 = vmatpush1.bf16.msra.mxu0 0
        %1439 = vmatprep.subr.bf16.mxu0 0
        %1440 = vmatpush1.bf16.msra.mxu0 0
        %1441 = vmatprep.subr.bf16.mxu0 0
        %1442 = vmatpush1.bf16.msra.mxu0 0
        %1443 = vmatprep.subr.bf16.mxu0 0
        %1444 = vmatpush1.bf16.msra.mxu0 0
        %1445 = vmatprep.subr.bf16.mxu0 0
        %1446 = vmatpush1.bf16.msra.mxu0 0
        %1447 = vmatprep.subr.bf16.mxu0 0
        %1448 = vmatpush1.bf16.msra.mxu0 0
        %1449 = vmatprep.subr.bf16.mxu0 0
        %1450 = vmatpush1.bf16.msra.mxu0 0
        %1451 = vmatprep.subr.bf16.mxu0 0
        %1452 = vmatpush1.bf16.msra.mxu0 0
        %1453 = vmatprep.subr.bf16.mxu0 0
        %1454 = vmatpush1.bf16.msra.mxu0 0
        %1455 = vmatprep.mubr.bf16.mxu0 0
        %1456 = vmatmul.mubr.bf16.gmra.mrb[0].mxu0 %v1421
        %v1457 = vpop.f32.mrb[0].mxu0
        %v1458 = vadd.f32 0.0, %v1457
        %v1459 = vpop.f32.mrb[0].mxu0
        %v1460 = vpop.f32.mrb[0].mxu0
        %v1461 = vadd.f32 0.0, %v1460
        %v1462 = vpop.f32.mrb[0].mxu0
        %1463 = vdwg.mxu0
        %1465 = vrot.lane.b32.xlu0 %v1021, 96
        %v1466 = vpop.permute.xlu0 %1465
        %v1469 = vsel %vm1121, %v1415, 0
        %1471 = vmatprep.subr.bf16.mxu0 0
        %1472 = vmatpush1.bf16.msra.mxu0 %v1466
        %1473 = vmatprep.subr.bf16.mxu0 0
        %1474 = vmatpush1.bf16.msra.mxu0 0
        %1475 = vmatprep.subr.bf16.mxu0 0
        %1476 = vmatpush1.bf16.msra.mxu0 0
        %1477 = vmatprep.subr.bf16.mxu0 0
        %1478 = vmatpush1.bf16.msra.mxu0 0
        %1479 = vmatprep.subr.bf16.mxu0 0
        %1480 = vmatpush1.bf16.msra.mxu0 0
        %1481 = vmatprep.subr.bf16.mxu0 0
        %1482 = vmatpush1.bf16.msra.mxu0 0
        %1483 = vmatprep.subr.bf16.mxu0 0
        %1484 = vmatpush1.bf16.msra.mxu0 0
        %1485 = vmatprep.subr.bf16.mxu0 0
        %1486 = vmatpush1.bf16.msra.mxu0 0
        %1487 = vmatprep.subr.bf16.mxu0 0
        %1488 = vmatpush1.bf16.msra.mxu0 0
        %1489 = vmatprep.subr.bf16.mxu0 0
        %1490 = vmatpush1.bf16.msra.mxu0 0
        %1491 = vmatprep.subr.bf16.mxu0 0
        %1492 = vmatpush1.bf16.msra.mxu0 0
        %1493 = vmatprep.subr.bf16.mxu0 0
        %1494 = vmatpush1.bf16.msra.mxu0 0
        %1495 = vmatprep.subr.bf16.mxu0 0
        %1496 = vmatpush1.bf16.msra.mxu0 0
        %1497 = vmatprep.subr.bf16.mxu0 0
        %1498 = vmatpush1.bf16.msra.mxu0 0
        %1499 = vmatprep.subr.bf16.mxu0 0
        %1500 = vmatpush1.bf16.msra.mxu0 0
        %1501 = vmatprep.subr.bf16.mxu0 0
        %1502 = vmatpush1.bf16.msra.mxu0 0
        %1503 = vmatprep.mubr.bf16.mxu0 0
        %1504 = vmatmul.mubr.bf16.gmra.mrb[0].mxu0 %v1469
        %v1505 = vpop.f32.mrb[0].mxu0
        %v1506 = vadd.f32 0.0, %v1505
        %v1507 = vpop.f32.mrb[0].mxu0
        %v1508 = vpop.f32.mrb[0].mxu0
        %v1509 = vadd.f32 0.0, %v1508
        %v1510 = vpop.f32.mrb[0].mxu0
        %1511 = vdwg.mxu0
        %1516 = vrot.lane.b32.xlu0 %v1458, 32
        %v1517 = vpop.permute.xlu0 %1516
        %1518 = vrot.lane.b32.xlu0 %v1461, 32
        %v1519 = vpop.permute.xlu0 %1518
        %1520 = vrot.lane.b32.xlu0 %v1506, 32
        %v1521 = vpop.permute.xlu0 %1520
        %1522 = vrot.lane.b32.xlu0 %v1509, 32
        %v1523 = vpop.permute.xlu0 %1522
        %vm1528 = vcmask 523520
        %1529 = vst.msk [vmem:[#allocation3] sm:$0xff] %vm1528, %v1517
        %1530 = vst.msk [vmem:[#allocation3 + $0x8] sm:$0xff] %vm1528, %v1519
        %1531 = vst.msk [vmem:[#allocation3 + $0x10] sm:$0xff] %vm1528, %v1521
        %1532 = vst.msk [vmem:[#allocation3 + $0x18] sm:$0xff] %vm1528, %v1523
        %1533 = vrot.lane.b32.xlu0 %v1016, 64
        %v1534 = vpop.permute.xlu0 %1533
        %1535 = vrot.lane.b32.xlu0 %v1018, 64
        %v1536 = vpop.permute.xlu0 %1535
        %v1538 = vsel %vm1022, %v1534, 0
        %v1541 = vsel %vm1022, %v1536, 0
        %1543 = vmatprep.subr.bf16.mxu0 0
        %1544 = vmatpush1.bf16.xpose.msra.mxu0 %v1541
        %1545 = vmatprep.subr.bf16.mxu0 0
        %1546 = vmatpush1.bf16.xpose.msra.mxu0 0
        %1547 = vmatprep.subr.bf16.mxu0 0
        %1548 = vmatpush1.bf16.xpose.msra.mxu0 0
        %1549 = vmatprep.subr.bf16.mxu0 0
        %1550 = vmatpush1.bf16.xpose.msra.mxu0 0
        %1551 = vmatprep.subr.bf16.mxu0 0
        %1552 = vmatpush1.bf16.xpose.msra.mxu0 0
        %1553 = vmatprep.subr.bf16.mxu0 0
        %1554 = vmatpush1.bf16.xpose.msra.mxu0 0
        %1555 = vmatprep.subr.bf16.mxu0 0
        %1556 = vmatpush1.bf16.xpose.msra.mxu0 0
        %1557 = vmatprep.subr.bf16.mxu0 0
        %1558 = vmatpush1.bf16.xpose.msra.mxu0 0
        %1559 = vmatprep.subr.bf16.mxu0 0
        %1560 = vmatpush1.bf16.xpose.msra.mxu0 0
        %1561 = vmatprep.subr.bf16.mxu0 0
        %1562 = vmatpush1.bf16.xpose.msra.mxu0 0
        %1563 = vmatprep.subr.bf16.mxu0 0
        %1564 = vmatpush1.bf16.xpose.msra.mxu0 0
        %1565 = vmatprep.subr.bf16.mxu0 0
        %1566 = vmatpush1.bf16.xpose.msra.mxu0 0
        %1567 = vmatprep.subr.bf16.mxu0 0
        %1568 = vmatpush1.bf16.xpose.msra.mxu0 0
        %1569 = vmatprep.subr.bf16.mxu0 0
        %1570 = vmatpush1.bf16.xpose.msra.mxu0 0
        %1571 = vmatprep.subr.bf16.mxu0 0
        %1572 = vmatpush1.bf16.xpose.msra.mxu0 0
        %1573 = vmatprep.subr.bf16.mxu0 0
        %1574 = vmatpush1.bf16.xpose.msra.mxu0 0
        %1575 = vmatprep.mubr.bf16.mxu0 0
        %1576 = vmatmul.mubr.bf16.gmra.mrb[0].mxu0 %v1538
        %v1577 = vpop.f32.mrb[0].mxu0
        %v1578 = vadd.f32 0.0, %v1577
        %v1579 = vpop.f32.mrb[0].mxu0
        %v1580 = vpop.f32.mrb[0].mxu0
        %v1581 = vadd.f32 0.0, %v1580
        %v1582 = vpop.f32.mrb[0].mxu0
        %1583 = vdwg.mxu0
        %1584 = vrot.lane.b32.xlu0 %v1017, 64
        %v1585 = vpop.permute.xlu0 %1584
        %1586 = vrot.lane.b32.xlu0 %v1019, 64
        %v1587 = vpop.permute.xlu0 %1586
        %v1589 = vsel %vm1022, %v1585, 0
        %v1592 = vsel %vm1022, %v1587, 0
        %1594 = vmatprep.subr.bf16.mxu0 0
        %1595 = vmatpush1.bf16.xpose.msra.mxu0 %v1592
        %1596 = vmatprep.subr.bf16.mxu0 0
        %1597 = vmatpush1.bf16.xpose.msra.mxu0 0
        %1598 = vmatprep.subr.bf16.mxu0 0
        %1599 = vmatpush1.bf16.xpose.msra.mxu0 0
        %1600 = vmatprep.subr.bf16.mxu0 0
        %1601 = vmatpush1.bf16.xpose.msra.mxu0 0
        %1602 = vmatprep.subr.bf16.mxu0 0
        %1603 = vmatpush1.bf16.xpose.msra.mxu0 0
        %1604 = vmatprep.subr.bf16.mxu0 0
        %1605 = vmatpush1.bf16.xpose.msra.mxu0 0
        %1606 = vmatprep.subr.bf16.mxu0 0
        %1607 = vmatpush1.bf16.xpose.msra.mxu0 0
        %1608 = vmatprep.subr.bf16.mxu0 0
        %1609 = vmatpush1.bf16.xpose.msra.mxu0 0
        %1610 = vmatprep.subr.bf16.mxu0 0
        %1611 = vmatpush1.bf16.xpose.msra.mxu0 0
        %1612 = vmatprep.subr.bf16.mxu0 0
        %1613 = vmatpush1.bf16.xpose.msra.mxu0 0
        %1614 = vmatprep.subr.bf16.mxu0 0
        %1615 = vmatpush1.bf16.xpose.msra.mxu0 0
        %1616 = vmatprep.subr.bf16.mxu0 0
        %1617 = vmatpush1.bf16.xpose.msra.mxu0 0
        %1618 = vmatprep.subr.bf16.mxu0 0
        %1619 = vmatpush1.bf16.xpose.msra.mxu0 0
        %1620 = vmatprep.subr.bf16.mxu0 0
        %1621 = vmatpush1.bf16.xpose.msra.mxu0 0
        %1622 = vmatprep.subr.bf16.mxu0 0
        %1623 = vmatpush1.bf16.xpose.msra.mxu0 0
        %1624 = vmatprep.subr.bf16.mxu0 0
        %1625 = vmatpush1.bf16.xpose.msra.mxu0 0
        %1626 = vmatprep.mubr.bf16.mxu0 0
        %1627 = vmatmul.mubr.bf16.gmra.mrb[0].mxu0 %v1589
        %v1628 = vpop.f32.mrb[0].mxu0
        %v1629 = vadd.f32 0.0, %v1628
        %v1630 = vpop.f32.mrb[0].mxu0
        %v1631 = vpop.f32.mrb[0].mxu0
        %v1632 = vadd.f32 0.0, %v1631
        %v1633 = vpop.f32.mrb[0].mxu0
        %1634 = vdwg.mxu0
        %v1635 = vmul.f32 %v1578, 0.17677669
        %v1636 = vmul.f32 %v1581, 0.17677669
        %v1637 = vmul.f32 %v1629, 0.17677669
        %v1638 = vmul.f32 %v1632, 0.17677669
        %v1639 = vsel %vm1121, %v1635, -inf
        %1640 = vmax.xlane.f32.xlu0 %v1639
        %v1641 = vpop.xlane.xlu0 %1640
        %v1642 = vsel %vm1121, %v1636, -inf
        %1643 = vmax.xlane.f32.xlu0 %v1642
        %v1644 = vpop.xlane.xlu0 %1643
        %v1645 = vsel %vm1121, %v1637, -inf
        %1646 = vmax.xlane.f32.xlu0 %v1645
        %v1647 = vpop.xlane.xlu0 %1646
        %v1648 = vsel %vm1121, %v1638, -inf
        %1649 = vmax.xlane.f32.xlu0 %v1648
        %v1650 = vpop.xlane.xlu0 %1649
        %v1651 = vsub.f32 %v1635, %v1641
        %v1652 = vsub.f32 %v1636, %v1644
        %v1653 = vsub.f32 %v1637, %v1647
        %v1654 = vsub.f32 %v1638, %v1650
        %v1655 = vmul.f32 %v1651, 1.442695
        %v1656 = vpow.pop %v1655
        %v1657 = vmul.f32 %v1652, 1.442695
        %v1658 = vpow.pop %v1657
        %v1659 = vmul.f32 %v1653, 1.442695
        %v1660 = vpow.pop %v1659
        %v1661 = vmul.f32 %v1654, 1.442695
        %v1662 = vpow.pop %v1661
        %v1663 = vsel %vm1121, %v1656, 0.0
        %1664 = vadd.xlane.f32.xlu0 %v1663
        %v1665 = vpop.xlane.xlu0 %1664
        %v1666 = vsel %vm1121, %v1658, 0.0
        %1667 = vadd.xlane.f32.xlu0 %v1666
        %v1668 = vpop.xlane.xlu0 %1667
        %v1669 = vsel %vm1121, %v1660, 0.0
        %1670 = vadd.xlane.f32.xlu0 %v1669
        %v1671 = vpop.xlane.xlu0 %1670
        %v1672 = vsel %vm1121, %v1662, 0.0
        %1673 = vadd.xlane.f32.xlu0 %v1672
        %v1674 = vpop.xlane.xlu0 %1673
        %v1675 = vrcp.pop %v1665
        %v1676 = vrcp.pop %v1668
        %v1677 = vrcp.pop %v1671
        %v1678 = vrcp.pop %v1674
        %v1679 = vmul.f32 %v1656, %v1675
        %v1680 = vmul.f32 %v1658, %v1676
        %v1681 = vmul.f32 %v1660, %v1677
        %v1682 = vmul.f32 %v1662, %v1678
        %v1683 = vpack.c.bf16 %v1680, %v1679
        %v1684 = vpack.c.bf16 %v1682, %v1681
        %1685 = vrot.lane.b32.xlu0 %v1020, 64
        %v1686 = vpop.permute.xlu0 %1685
        %v1689 = vsel %vm1121, %v1683, 0
        %1691 = vmatprep.subr.bf16.mxu0 0
        %1692 = vmatpush1.bf16.msra.mxu0 %v1686
        %1693 = vmatprep.subr.bf16.mxu0 0
        %1694 = vmatpush1.bf16.msra.mxu0 0
        %1695 = vmatprep.subr.bf16.mxu0 0
        %1696 = vmatpush1.bf16.msra.mxu0 0
        %1697 = vmatprep.subr.bf16.mxu0 0
        %1698 = vmatpush1.bf16.msra.mxu0 0
        %1699 = vmatprep.subr.bf16.mxu0 0
        %1700 = vmatpush1.bf16.msra.mxu0 0
        %1701 = vmatprep.subr.bf16.mxu0 0
        %1702 = vmatpush1.bf16.msra.mxu0 0
        %1703 = vmatprep.subr.bf16.mxu0 0
        %1704 = vmatpush1.bf16.msra.mxu0 0
        %1705 = vmatprep.subr.bf16.mxu0 0
        %1706 = vmatpush1.bf16.msra.mxu0 0
        %1707 = vmatprep.subr.bf16.mxu0 0
        %1708 = vmatpush1.bf16.msra.mxu0 0
        %1709 = vmatprep.subr.bf16.mxu0 0
        %1710 = vmatpush1.bf16.msra.mxu0 0
        %1711 = vmatprep.subr.bf16.mxu0 0
        %1712 = vmatpush1.bf16.msra.mxu0 0
        %1713 = vmatprep.subr.bf16.mxu0 0
        %1714 = vmatpush1.bf16.msra.mxu0 0
        %1715 = vmatprep.subr.bf16.mxu0 0
        %1716 = vmatpush1.bf16.msra.mxu0 0
        %1717 = vmatprep.subr.bf16.mxu0 0
        %1718 = vmatpush1.bf16.msra.mxu0 0
        %1719 = vmatprep.subr.bf16.mxu0 0
        %1720 = vmatpush1.bf16.msra.mxu0 0
        %1721 = vmatprep.subr.bf16.mxu0 0
        %1722 = vmatpush1.bf16.msra.mxu0 0
        %1723 = vmatprep.mubr.bf16.mxu0 0
        %1724 = vmatmul.mubr.bf16.gmra.mrb[0].mxu0 %v1689
        %v1725 = vpop.f32.mrb[0].mxu0
        %v1726 = vadd.f32 0.0, %v1725
        %v1727 = vpop.f32.mrb[0].mxu0
        %v1728 = vpop.f32.mrb[0].mxu0
        %v1729 = vadd.f32 0.0, %v1728
        %v1730 = vpop.f32.mrb[0].mxu0
        %1731 = vdwg.mxu0
        %1732 = vrot.lane.b32.xlu0 %v1021, 64
        %v1733 = vpop.permute.xlu0 %1732
        %v1736 = vsel %vm1121, %v1684, 0
        %1738 = vmatprep.subr.bf16.mxu0 0
        %1739 = vmatpush1.bf16.msra.mxu0 %v1733
        %1740 = vmatprep.subr.bf16.mxu0 0
        %1741 = vmatpush1.bf16.msra.mxu0 0
        %1742 = vmatprep.subr.bf16.mxu0 0
        %1743 = vmatpush1.bf16.msra.mxu0 0
        %1744 = vmatprep.subr.bf16.mxu0 0
        %1745 = vmatpush1.bf16.msra.mxu0 0
        %1746 = vmatprep.subr.bf16.mxu0 0
        %1747 = vmatpush1.bf16.msra.mxu0 0
        %1748 = vmatprep.subr.bf16.mxu0 0
        %1749 = vmatpush1.bf16.msra.mxu0 0
        %1750 = vmatprep.subr.bf16.mxu0 0
        %1751 = vmatpush1.bf16.msra.mxu0 0
        %1752 = vmatprep.subr.bf16.mxu0 0
        %1753 = vmatpush1.bf16.msra.mxu0 0
        %1754 = vmatprep.subr.bf16.mxu0 0
        %1755 = vmatpush1.bf16.msra.mxu0 0
        %1756 = vmatprep.subr.bf16.mxu0 0
        %1757 = vmatpush1.bf16.msra.mxu0 0
        %1758 = vmatprep.subr.bf16.mxu0 0
        %1759 = vmatpush1.bf16.msra.mxu0 0
        %1760 = vmatprep.subr.bf16.mxu0 0
        %1761 = vmatpush1.bf16.msra.mxu0 0
        %1762 = vmatprep.subr.bf16.mxu0 0
        %1763 = vmatpush1.bf16.msra.mxu0 0
        %1764 = vmatprep.subr.bf16.mxu0 0
        %1765 = vmatpush1.bf16.msra.mxu0 0
        %1766 = vmatprep.subr.bf16.mxu0 0
        %1767 = vmatpush1.bf16.msra.mxu0 0
        %1768 = vmatprep.subr.bf16.mxu0 0
        %1769 = vmatpush1.bf16.msra.mxu0 0
        %1770 = vmatprep.mubr.bf16.mxu0 0
        %1771 = vmatmul.mubr.bf16.gmra.mrb[0].mxu0 %v1736
        %v1772 = vpop.f32.mrb[0].mxu0
        %v1773 = vadd.f32 0.0, %v1772
        %v1774 = vpop.f32.mrb[0].mxu0
        %v1775 = vpop.f32.mrb[0].mxu0
        %v1776 = vadd.f32 0.0, %v1775
        %v1777 = vpop.f32.mrb[0].mxu0
        %1778 = vdwg.mxu0
        %1783 = vrot.lane.b32.xlu0 %v1726, 64
        %v1784 = vpop.permute.xlu0 %1783
        %1785 = vrot.lane.b32.xlu0 %v1729, 64
        %v1786 = vpop.permute.xlu0 %1785
        %1787 = vrot.lane.b32.xlu0 %v1773, 64
        %v1788 = vpop.permute.xlu0 %1787
        %1789 = vrot.lane.b32.xlu0 %v1776, 64
        %v1790 = vpop.permute.xlu0 %1789
        %vm1795 = vcmask 785920
        %1796 = vst.msk [vmem:[#allocation3] sm:$0xff] %vm1795, %v1784
        %1797 = vst.msk [vmem:[#allocation3 + $0x8] sm:$0xff] %vm1795, %v1786
        %1798 = vst.msk [vmem:[#allocation3 + $0x10] sm:$0xff] %vm1795, %v1788
        %1799 = vst.msk [vmem:[#allocation3 + $0x18] sm:$0xff] %vm1795, %v1790
        %1800 = vrot.lane.b32.xlu0 %v1016, 32
        %v1801 = vpop.permute.xlu0 %1800
        %1802 = vrot.lane.b32.xlu0 %v1018, 32
        %v1803 = vpop.permute.xlu0 %1802
        %v1805 = vsel %vm1022, %v1801, 0
        %v1808 = vsel %vm1022, %v1803, 0
        %1810 = vmatprep.subr.bf16.mxu0 0
        %1811 = vmatpush1.bf16.xpose.msra.mxu0 %v1808
        %1812 = vmatprep.subr.bf16.mxu0 0
        %1813 = vmatpush1.bf16.xpose.msra.mxu0 0
        %1814 = vmatprep.subr.bf16.mxu0 0
        %1815 = vmatpush1.bf16.xpose.msra.mxu0 0
        %1816 = vmatprep.subr.bf16.mxu0 0
        %1817 = vmatpush1.bf16.xpose.msra.mxu0 0
        %1818 = vmatprep.subr.bf16.mxu0 0
        %1819 = vmatpush1.bf16.xpose.msra.mxu0 0
        %1820 = vmatprep.subr.bf16.mxu0 0
        %1821 = vmatpush1.bf16.xpose.msra.mxu0 0
        %1822 = vmatprep.subr.bf16.mxu0 0
        %1823 = vmatpush1.bf16.xpose.msra.mxu0 0
        %1824 = vmatprep.subr.bf16.mxu0 0
        %1825 = vmatpush1.bf16.xpose.msra.mxu0 0
        %1826 = vmatprep.subr.bf16.mxu0 0
        %1827 = vmatpush1.bf16.xpose.msra.mxu0 0
        %1828 = vmatprep.subr.bf16.mxu0 0
        %1829 = vmatpush1.bf16.xpose.msra.mxu0 0
        %1830 = vmatprep.subr.bf16.mxu0 0
        %1831 = vmatpush1.bf16.xpose.msra.mxu0 0
        %1832 = vmatprep.subr.bf16.mxu0 0
        %1833 = vmatpush1.bf16.xpose.msra.mxu0 0
        %1834 = vmatprep.subr.bf16.mxu0 0
        %1835 = vmatpush1.bf16.xpose.msra.mxu0 0
        %1836 = vmatprep.subr.bf16.mxu0 0
        %1837 = vmatpush1.bf16.xpose.msra.mxu0 0
        %1838 = vmatprep.subr.bf16.mxu0 0
        %1839 = vmatpush1.bf16.xpose.msra.mxu0 0
        %1840 = vmatprep.subr.bf16.mxu0 0
        %1841 = vmatpush1.bf16.xpose.msra.mxu0 0
        %1842 = vmatprep.mubr.bf16.mxu0 0
        %1843 = vmatmul.mubr.bf16.gmra.mrb[0].mxu0 %v1805
        %v1844 = vpop.f32.mrb[0].mxu0
        %v1845 = vadd.f32 0.0, %v1844
        %v1846 = vpop.f32.mrb[0].mxu0
        %v1847 = vpop.f32.mrb[0].mxu0
        %v1848 = vadd.f32 0.0, %v1847
        %v1849 = vpop.f32.mrb[0].mxu0
        %1850 = vdwg.mxu0
        %1851 = vrot.lane.b32.xlu0 %v1017, 32
        %v1852 = vpop.permute.xlu0 %1851
        %1853 = vrot.lane.b32.xlu0 %v1019, 32
        %v1854 = vpop.permute.xlu0 %1853
        %v1856 = vsel %vm1022, %v1852, 0
        %v1859 = vsel %vm1022, %v1854, 0
        %1861 = vmatprep.subr.bf16.mxu0 0
        %1862 = vmatpush1.bf16.xpose.msra.mxu0 %v1859
        %1863 = vmatprep.subr.bf16.mxu0 0
        %1864 = vmatpush1.bf16.xpose.msra.mxu0 0
        %1865 = vmatprep.subr.bf16.mxu0 0
        %1866 = vmatpush1.bf16.xpose.msra.mxu0 0
        %1867 = vmatprep.subr.bf16.mxu0 0
        %1868 = vmatpush1.bf16.xpose.msra.mxu0 0
        %1869 = vmatprep.subr.bf16.mxu0 0
        %1870 = vmatpush1.bf16.xpose.msra.mxu0 0
        %1871 = vmatprep.subr.bf16.mxu0 0
        %1872 = vmatpush1.bf16.xpose.msra.mxu0 0
        %1873 = vmatprep.subr.bf16.mxu0 0
        %1874 = vmatpush1.bf16.xpose.msra.mxu0 0
        %1875 = vmatprep.subr.bf16.mxu0 0
        %1876 = vmatpush1.bf16.xpose.msra.mxu0 0
        %1877 = vmatprep.subr.bf16.mxu0 0
        %1878 = vmatpush1.bf16.xpose.msra.mxu0 0
        %1879 = vmatprep.subr.bf16.mxu0 0
        %1880 = vmatpush1.bf16.xpose.msra.mxu0 0
        %1881 = vmatprep.subr.bf16.mxu0 0
        %1882 = vmatpush1.bf16.xpose.msra.mxu0 0
        %1883 = vmatprep.subr.bf16.mxu0 0
        %1884 = vmatpush1.bf16.xpose.msra.mxu0 0
        %1885 = vmatprep.subr.bf16.mxu0 0
        %1886 = vmatpush1.bf16.xpose.msra.mxu0 0
        %1887 = vmatprep.subr.bf16.mxu0 0
        %1888 = vmatpush1.bf16.xpose.msra.mxu0 0
        %1889 = vmatprep.subr.bf16.mxu0 0
        %1890 = vmatpush1.bf16.xpose.msra.mxu0 0
        %1891 = vmatprep.subr.bf16.mxu0 0
        %1892 = vmatpush1.bf16.xpose.msra.mxu0 0
        %1893 = vmatprep.mubr.bf16.mxu0 0
        %1894 = vmatmul.mubr.bf16.gmra.mrb[0].mxu0 %v1856
        %v1895 = vpop.f32.mrb[0].mxu0
        %v1896 = vadd.f32 0.0, %v1895
        %v1897 = vpop.f32.mrb[0].mxu0
        %v1898 = vpop.f32.mrb[0].mxu0
        %v1899 = vadd.f32 0.0, %v1898
        %v1900 = vpop.f32.mrb[0].mxu0
        %1901 = vdwg.mxu0
        %v1902 = vmul.f32 %v1845, 0.17677669
        %v1903 = vmul.f32 %v1848, 0.17677669
        %v1904 = vmul.f32 %v1896, 0.17677669
        %v1905 = vmul.f32 %v1899, 0.17677669
        %v1906 = vsel %vm1121, %v1902, -inf
        %1907 = vmax.xlane.f32.xlu0 %v1906
        %v1908 = vpop.xlane.xlu0 %1907
        %v1909 = vsel %vm1121, %v1903, -inf
        %1910 = vmax.xlane.f32.xlu0 %v1909
        %v1911 = vpop.xlane.xlu0 %1910
        %v1912 = vsel %vm1121, %v1904, -inf
        %1913 = vmax.xlane.f32.xlu0 %v1912
        %v1914 = vpop.xlane.xlu0 %1913
        %v1915 = vsel %vm1121, %v1905, -inf
        %1916 = vmax.xlane.f32.xlu0 %v1915
        %v1917 = vpop.xlane.xlu0 %1916
        %v1918 = vsub.f32 %v1902, %v1908
        %v1919 = vsub.f32 %v1903, %v1911
        %v1920 = vsub.f32 %v1904, %v1914
        %v1921 = vsub.f32 %v1905, %v1917
        %v1922 = vmul.f32 %v1918, 1.442695
        %v1923 = vpow.pop %v1922
        %v1924 = vmul.f32 %v1919, 1.442695
        %v1925 = vpow.pop %v1924
        %v1926 = vmul.f32 %v1920, 1.442695
        %v1927 = vpow.pop %v1926
        %v1928 = vmul.f32 %v1921, 1.442695
        %v1929 = vpow.pop %v1928
        %v1930 = vsel %vm1121, %v1923, 0.0
        %1931 = vadd.xlane.f32.xlu0 %v1930
        %v1932 = vpop.xlane.xlu0 %1931
        %v1933 = vsel %vm1121, %v1925, 0.0
        %1934 = vadd.xlane.f32.xlu0 %v1933
        %v1935 = vpop.xlane.xlu0 %1934
        %v1936 = vsel %vm1121, %v1927, 0.0
        %1937 = vadd.xlane.f32.xlu0 %v1936
        %v1938 = vpop.xlane.xlu0 %1937
        %v1939 = vsel %vm1121, %v1929, 0.0
        %1940 = vadd.xlane.f32.xlu0 %v1939
        %v1941 = vpop.xlane.xlu0 %1940
        %v1942 = vrcp.pop %v1932
        %v1943 = vrcp.pop %v1935
        %v1944 = vrcp.pop %v1938
        %v1945 = vrcp.pop %v1941
        %v1946 = vmul.f32 %v1923, %v1942
        %v1947 = vmul.f32 %v1925, %v1943
        %v1948 = vmul.f32 %v1927, %v1944
        %v1949 = vmul.f32 %v1929, %v1945
        %v1950 = vpack.c.bf16 %v1947, %v1946
        %v1951 = vpack.c.bf16 %v1949, %v1948
        %1952 = vrot.lane.b32.xlu0 %v1020, 32
        %v1953 = vpop.permute.xlu0 %1952
        %v1956 = vsel %vm1121, %v1950, 0
        %1958 = vmatprep.subr.bf16.mxu0 0
        %1959 = vmatpush1.bf16.msra.mxu0 %v1953
        %1960 = vmatprep.subr.bf16.mxu0 0
        %1961 = vmatpush1.bf16.msra.mxu0 0
        %1962 = vmatprep.subr.bf16.mxu0 0
        %1963 = vmatpush1.bf16.msra.mxu0 0
        %1964 = vmatprep.subr.bf16.mxu0 0
        %1965 = vmatpush1.bf16.msra.mxu0 0
        %1966 = vmatprep.subr.bf16.mxu0 0
        %1967 = vmatpush1.bf16.msra.mxu0 0
        %1968 = vmatprep.subr.bf16.mxu0 0
        %1969 = vmatpush1.bf16.msra.mxu0 0
        %1970 = vmatprep.subr.bf16.mxu0 0
        %1971 = vmatpush1.bf16.msra.mxu0 0
        %1972 = vmatprep.subr.bf16.mxu0 0
        %1973 = vmatpush1.bf16.msra.mxu0 0
        %1974 = vmatprep.subr.bf16.mxu0 0
        %1975 = vmatpush1.bf16.msra.mxu0 0
        %1976 = vmatprep.subr.bf16.mxu0 0
        %1977 = vmatpush1.bf16.msra.mxu0 0
        %1978 = vmatprep.subr.bf16.mxu0 0
        %1979 = vmatpush1.bf16.msra.mxu0 0
        %1980 = vmatprep.subr.bf16.mxu0 0
        %1981 = vmatpush1.bf16.msra.mxu0 0
        %1982 = vmatprep.subr.bf16.mxu0 0
        %1983 = vmatpush1.bf16.msra.mxu0 0
        %1984 = vmatprep.subr.bf16.mxu0 0
        %1985 = vmatpush1.bf16.msra.mxu0 0
        %1986 = vmatprep.subr.bf16.mxu0 0
        %1987 = vmatpush1.bf16.msra.mxu0 0
        %1988 = vmatprep.subr.bf16.mxu0 0
        %1989 = vmatpush1.bf16.msra.mxu0 0
        %1990 = vmatprep.mubr.bf16.mxu0 0
        %1991 = vmatmul.mubr.bf16.gmra.mrb[0].mxu0 %v1956
        %v1992 = vpop.f32.mrb[0].mxu0
        %v1993 = vadd.f32 0.0, %v1992
        %v1994 = vpop.f32.mrb[0].mxu0
        %v1995 = vpop.f32.mrb[0].mxu0
        %v1996 = vadd.f32 0.0, %v1995
        %v1997 = vpop.f32.mrb[0].mxu0
        %1998 = vdwg.mxu0
        %1999 = vrot.lane.b32.xlu0 %v1021, 32
        %v2000 = vpop.permute.xlu0 %1999
        %v2003 = vsel %vm1121, %v1951, 0
        %2005 = vmatprep.subr.bf16.mxu0 0
        %2006 = vmatpush1.bf16.msra.mxu0 %v2000
        %2007 = vmatprep.subr.bf16.mxu0 0
        %2008 = vmatpush1.bf16.msra.mxu0 0
        %2009 = vmatprep.subr.bf16.mxu0 0
        %2010 = vmatpush1.bf16.msra.mxu0 0
        %2011 = vmatprep.subr.bf16.mxu0 0
        %2012 = vmatpush1.bf16.msra.mxu0 0
        %2013 = vmatprep.subr.bf16.mxu0 0
        %2014 = vmatpush1.bf16.msra.mxu0 0
        %2015 = vmatprep.subr.bf16.mxu0 0
        %2016 = vmatpush1.bf16.msra.mxu0 0
        %2017 = vmatprep.subr.bf16.mxu0 0
        %2018 = vmatpush1.bf16.msra.mxu0 0
        %2019 = vmatprep.subr.bf16.mxu0 0
        %2020 = vmatpush1.bf16.msra.mxu0 0
        %2021 = vmatprep.subr.bf16.mxu0 0
        %2022 = vmatpush1.bf16.msra.mxu0 0
        %2023 = vmatprep.subr.bf16.mxu0 0
        %2024 = vmatpush1.bf16.msra.mxu0 0
        %2025 = vmatprep.subr.bf16.mxu0 0
        %2026 = vmatpush1.bf16.msra.mxu0 0
        %2027 = vmatprep.subr.bf16.mxu0 0
        %2028 = vmatpush1.bf16.msra.mxu0 0
        %2029 = vmatprep.subr.bf16.mxu0 0
        %2030 = vmatpush1.bf16.msra.mxu0 0
        %2031 = vmatprep.subr.bf16.mxu0 0
        %2032 = vmatpush1.bf16.msra.mxu0 0
        %2033 = vmatprep.subr.bf16.mxu0 0
        %2034 = vmatpush1.bf16.msra.mxu0 0
        %2035 = vmatprep.subr.bf16.mxu0 0
        %2036 = vmatpush1.bf16.msra.mxu0 0
        %2037 = vmatprep.mubr.bf16.mxu0 0
        %2038 = vmatmul.mubr.bf16.gmra.mrb[0].mxu0 %v2003
        %v2039 = vpop.f32.mrb[0].mxu0
        %v2040 = vadd.f32 0.0, %v2039
        %v2041 = vpop.f32.mrb[0].mxu0
        %v2042 = vpop.f32.mrb[0].mxu0
        %v2043 = vadd.f32 0.0, %v2042
        %v2044 = vpop.f32.mrb[0].mxu0
        %2045 = vdwg.mxu0
        %2050 = vrot.lane.b32.xlu0 %v1993, 96
        %v2051 = vpop.permute.xlu0 %2050
        %2052 = vrot.lane.b32.xlu0 %v1996, 96
        %v2053 = vpop.permute.xlu0 %2052
        %2054 = vrot.lane.b32.xlu0 %v2040, 96
        %v2055 = vpop.permute.xlu0 %2054
        %2056 = vrot.lane.b32.xlu0 %v2043, 96
        %v2057 = vpop.permute.xlu0 %2056
        %vm2062 = vcmask 1048320
        %2063 = vst.msk [vmem:[#allocation3] sm:$0xff] %vm2062, %v2051
        %2064 = vst.msk [vmem:[#allocation3 + $0x8] sm:$0xff] %vm2062, %v2053
        %2065 = vst.msk [vmem:[#allocation3 + $0x10] sm:$0xff] %vm2062, %v2055
        %2066 = vst.msk [vmem:[#allocation3 + $0x18] sm:$0xff] %vm2062, %v2057
        %v2067 = vld [vmem:[#allocation3] sm:$0xff]
        %v2068 = vld [vmem:[#allocation3 + $0x8] sm:$0xff]
        %v2069 = vld [vmem:[#allocation3 + $0x10] sm:$0xff]
        %v2070 = vld [vmem:[#allocation3 + $0x18] sm:$0xff]
        %v2071 = vpack.c.bf16 %v2068, %v2067
        %v2072 = vpack.c.bf16 %v2070, %v2069
        %v2073 = vld [vmem:[%s597] sm:$0xf]
        %v2074 = vld [vmem:[%s597 + $0x4] sm:$0xf]
        %v2075 = vld [vmem:[%s597 + $0x8] sm:$0xf]
        %v2076 = vld [vmem:[%s597 + $0xc] sm:$0xf]
        %v2077 = vld [vmem:[%s597 + $0x10] sm:$0xf]
        %v2078 = vld [vmem:[%s597 + $0x14] sm:$0xf]
        %v2079 = vld [vmem:[%s597 + $0x18] sm:$0xf]
        %v2080 = vld [vmem:[%s597 + $0x1c] sm:$0xf]
        %v2081 = vld [vmem:[%s597 + $0x20] sm:$0xf]
        %v2082 = vld [vmem:[%s597 + $0x24] sm:$0xf]
        %v2083 = vld [vmem:[%s597 + $0x28] sm:$0xf]
        %v2084 = vld [vmem:[%s597 + $0x2c] sm:$0xf]
        %v2085 = vld [vmem:[%s597 + $0x30] sm:$0xf]
        %v2086 = vld [vmem:[%s597 + $0x34] sm:$0xf]
        %v2087 = vld [vmem:[%s597 + $0x38] sm:$0xf]
        %v2088 = vld [vmem:[%s597 + $0x3c] sm:$0xf]
        %v2089 = vld [vmem:[%s701] sm:$0x1]
        %v2091 = vlaneseq
        %v2092 = vshrl.u32 %v2091, 7
        %v2093 = vsub.s32 0, %v2092
        %v2094 = vrot.slane %v2089, %v2093
        %v2112 = vunpack.c.l.b16 %v2073
        %v2113 = vunpack.c.l.b16 %v2074
        %v2114 = vunpack.c.l.b16 %v2075
        %v2115 = vunpack.c.l.b16 %v2076
        %v2116 = vunpack.c.l.b16 %v2077
        %v2117 = vunpack.c.l.b16 %v2078
        %v2118 = vunpack.c.l.b16 %v2079
        %v2119 = vunpack.c.l.b16 %v2080
        %v2120 = vunpack.c.l.b16 %v2081
        %v2121 = vunpack.c.l.b16 %v2082
        %v2122 = vunpack.c.l.b16 %v2083
        %v2123 = vunpack.c.l.b16 %v2084
        %v2124 = vunpack.c.l.b16 %v2085
        %v2125 = vunpack.c.l.b16 %v2086
        %v2126 = vunpack.c.l.b16 %v2087
        %v2127 = vunpack.c.l.b16 %v2088
        %v2128 = vpack.c.b16 %v2113, %v2112
        %v2129 = vpack.c.b16 %v2115, %v2114
        %v2130 = vpack.c.b16 %v2117, %v2116
        %v2131 = vpack.c.b16 %v2119, %v2118
        %v2132 = vpack.c.b16 %v2121, %v2120
        %v2133 = vpack.c.b16 %v2123, %v2122
        %v2134 = vpack.c.b16 %v2125, %v2124
        %v2135 = vpack.c.b16 %v2127, %v2126
        %2144 = vmatprep.subr.bf16.mxu0 0
        %2145 = vmatpush1.bf16.msra.mxu0 %v2128
        %2146 = vmatprep.subr.bf16.mxu0 0
        %2147 = vmatpush1.bf16.msra.mxu0 %v2129
        %2148 = vmatprep.subr.bf16.mxu0 0
        %2149 = vmatpush1.bf16.msra.mxu0 %v2130
        %2150 = vmatprep.subr.bf16.mxu0 0
        %2151 = vmatpush1.bf16.msra.mxu0 %v2131
        %2152 = vmatprep.subr.bf16.mxu0 0
        %2153 = vmatpush1.bf16.msra.mxu0 %v2132
        %2154 = vmatprep.subr.bf16.mxu0 0
        %2155 = vmatpush1.bf16.msra.mxu0 %v2133
        %2156 = vmatprep.subr.bf16.mxu0 0
        %2157 = vmatpush1.bf16.msra.mxu0 %v2134
        %2158 = vmatprep.subr.bf16.mxu0 0
        %2159 = vmatpush1.bf16.msra.mxu0 %v2135
        %2160 = vmatprep.subr.bf16.mxu0 0
        %2161 = vmatpush1.bf16.msra.mxu0 0
        %2162 = vmatprep.subr.bf16.mxu0 0
        %2163 = vmatpush1.bf16.msra.mxu0 0
        %2164 = vmatprep.subr.bf16.mxu0 0
        %2165 = vmatpush1.bf16.msra.mxu0 0
        %2166 = vmatprep.subr.bf16.mxu0 0
        %2167 = vmatpush1.bf16.msra.mxu0 0
        %2168 = vmatprep.subr.bf16.mxu0 0
        %2169 = vmatpush1.bf16.msra.mxu0 0
        %2170 = vmatprep.subr.bf16.mxu0 0
        %2171 = vmatpush1.bf16.msra.mxu0 0
        %2172 = vmatprep.subr.bf16.mxu0 0
        %2173 = vmatpush1.bf16.msra.mxu0 0
        %2174 = vmatprep.subr.bf16.mxu0 0
        %2175 = vmatpush1.bf16.msra.mxu0 0
        %2176 = vmatprep.mubr.bf16.mxu0 0
        %2177 = vmatmul.mubr.bf16.gmra.mrb[0].mxu0 %v2071
        %v2178 = vpop.f32.mrb[0].mxu0
        %v2179 = vadd.f32 %v2094, %v2178
        %v2180 = vpop.f32.mrb[0].mxu0
        %v2181 = vpop.f32.mrb[0].mxu0
        %v2182 = vadd.f32 %v2094, %v2181
        %v2183 = vpop.f32.mrb[0].mxu0
        %2184 = vmatprep.mubr.bf16.mxu0 0
        %2185 = vmatmul.mubr.bf16.gmra.mrb[0].mxu0 %v2072
        %v2186 = vpop.f32.mrb[0].mxu0
        %v2187 = vadd.f32 %v2094, %v2186
        %v2188 = vpop.f32.mrb[0].mxu0
        %v2189 = vpop.f32.mrb[0].mxu0
        %v2190 = vadd.f32 %v2094, %v2189
        %v2191 = vpop.f32.mrb[0].mxu0
        %2192 = vdwg.mxu0
        %v2193 = vadd.f32 %v731, %v2179
        %v2194 = vadd.f32 %v732, %v2182
        %v2195 = vadd.f32 %v733, %v2187
        %v2196 = vadd.f32 %v734, %v2190
        %v2197 = vld [vmem:[%s704] sm:$0x1]
        %v2198 = vld [vmem:[%s707] sm:$0x1]
        %2199 = vadd.xlane.f32.xlu0 %v2193
        %v2200 = vpop.xlane.xlu0 %2199
        %2201 = vadd.xlane.f32.xlu0 %v2194
        %v2202 = vpop.xlane.xlu0 %2201
        %2203 = vadd.xlane.f32.xlu0 %v2195
        %v2204 = vpop.xlane.xlu0 %2203
        %2205 = vadd.xlane.f32.xlu0 %v2196
        %v2206 = vpop.xlane.xlu0 %2205
        %v2207 = vrcp.pop 128.0
        %v2208 = vmul.f32 %v2200, %v2207
        %v2209 = vmul.f32 %v2202, %v2207
        %v2210 = vmul.f32 %v2204, %v2207
        %v2211 = vmul.f32 %v2206, %v2207
        %v2212 = vsub.f32 %v2193, %v2208
        %v2213 = vsub.f32 %v2194, %v2209
        %v2214 = vsub.f32 %v2195, %v2210
        %v2215 = vsub.f32 %v2196, %v2211
        %v2216 = vmul.f32 %v2212, %v2212
        %v2217 = vmul.f32 %v2213, %v2213
        %v2218 = vmul.f32 %v2214, %v2214
        %v2219 = vmul.f32 %v2215, %v2215
        %2220 = vadd.xlane.f32.xlu0 %v2216
        %v2221 = vpop.xlane.xlu0 %2220
        %2222 = vadd.xlane.f32.xlu0 %v2217
        %v2223 = vpop.xlane.xlu0 %2222
        %2224 = vadd.xlane.f32.xlu0 %v2218
        %v2225 = vpop.xlane.xlu0 %2224
        %2226 = vadd.xlane.f32.xlu0 %v2219
        %v2227 = vpop.xlane.xlu0 %2226
        %v2228 = vmul.f32 %v2221, %v2207
        %v2229 = vmul.f32 %v2223, %v2207
        %v2230 = vmul.f32 %v2225, %v2207
        %v2231 = vmul.f32 %v2227, %v2207
        %v2232 = vadd.f32 %v2228, 0.1
        %v2233 = vadd.f32 %v2229, 0.1
        %v2234 = vadd.f32 %v2230, 0.1
        %v2235 = vadd.f32 %v2231, 0.1
        %v2236 = vrsqrt.pop %v2232
        %v2237 = vrsqrt.pop %v2233
        %v2238 = vrsqrt.pop %v2234
        %v2239 = vrsqrt.pop %v2235
        %v2240 = vmul.f32 %v2212, %v2236
        %v2241 = vmul.f32 %v2213, %v2237
        %v2242 = vmul.f32 %v2214, %v2238
        %v2243 = vmul.f32 %v2215, %v2239
        %v2245 = vlaneseq
        %v2246 = vshrl.u32 %v2245, 7
        %v2247 = vsub.s32 0, %v2246
        %v2248 = vrot.slane %v2197, %v2247
        %v2250 = vmul.f32 %v2240, %v2248
        %v2251 = vmul.f32 %v2241, %v2248
        %v2252 = vmul.f32 %v2242, %v2248
        %v2253 = vmul.f32 %v2243, %v2248
        %v2255 = vlaneseq
        %v2256 = vshrl.u32 %v2255, 7
        %v2257 = vsub.s32 0, %v2256
        %v2258 = vrot.slane %v2198, %v2257
        %v2260 = vadd.f32 %v2250, %v2258
        %v2261 = vadd.f32 %v2251, %v2258
        %v2262 = vadd.f32 %v2252, %v2258
        %v2263 = vadd.f32 %v2253, %v2258
        %v2264 = vpack.c.bf16 %v2261, %v2260
        %v2265 = vpack.c.bf16 %v2263, %v2262
        %v2266 = vld [vmem:[%s606] sm:$0xff]
        %v2267 = vld [vmem:[%s606 + $0x8] sm:$0xff]
        %v2268 = vld [vmem:[%s606 + $0x10] sm:$0xff]
        %v2269 = vld [vmem:[%s606 + $0x18] sm:$0xff]
        %v2270 = vld [vmem:[%s606 + $0x20] sm:$0xff]
        %v2271 = vld [vmem:[%s606 + $0x28] sm:$0xff]
        %v2272 = vld [vmem:[%s606 + $0x30] sm:$0xff]
        %v2273 = vld [vmem:[%s606 + $0x38] sm:$0xff]
        %v2274 = vld [vmem:[%s606 + $0x40] sm:$0xff]
        %v2275 = vld [vmem:[%s606 + $0x48] sm:$0xff]
        %v2276 = vld [vmem:[%s606 + $0x50] sm:$0xff]
        %v2277 = vld [vmem:[%s606 + $0x58] sm:$0xff]
        %v2278 = vld [vmem:[%s606 + $0x60] sm:$0xff]
        %v2279 = vld [vmem:[%s606 + $0x68] sm:$0xff]
        %v2280 = vld [vmem:[%s606 + $0x70] sm:$0xff]
        %v2281 = vld [vmem:[%s606 + $0x78] sm:$0xff]
        %v2282 = vld [vmem:[%s711] sm:$0x3]
        %v2284 = vlaneseq
        %v2285 = vshrl.u32 %v2284, 7
        %v2286 = vsub.s32 0, %v2285
        %v2287 = vrot.slane %v2282, %v2286
        %v2288 = vlaneseq
        %v2289 = vshrl.u32 %v2288, 7
        %v2290 = vsub.s32 1, %v2289
        %v2291 = vrot.slane %v2282, %v2290
        %v2310 = vunpack.c.l.b16 %v2266
        %v2311 = vunpack.c.h.b16 %v2266
        %v2312 = vunpack.c.l.b16 %v2267
        %v2313 = vunpack.c.h.b16 %v2267
        %v2314 = vunpack.c.l.b16 %v2268
        %v2315 = vunpack.c.h.b16 %v2268
        %v2316 = vunpack.c.l.b16 %v2269
        %v2317 = vunpack.c.h.b16 %v2269
        %v2318 = vunpack.c.l.b16 %v2270
        %v2319 = vunpack.c.h.b16 %v2270
        %v2320 = vunpack.c.l.b16 %v2271
        %v2321 = vunpack.c.h.b16 %v2271
        %v2322 = vunpack.c.l.b16 %v2272
        %v2323 = vunpack.c.h.b16 %v2272
        %v2324 = vunpack.c.l.b16 %v2273
        %v2325 = vunpack.c.h.b16 %v2273
        %v2326 = vunpack.c.l.b16 %v2274
        %v2327 = vunpack.c.h.b16 %v2274
        %v2328 = vunpack.c.l.b16 %v2275
        %v2329 = vunpack.c.h.b16 %v2275
        %v2330 = vunpack.c.l.b16 %v2276
        %v2331 = vunpack.c.h.b16 %v2276
        %v2332 = vunpack.c.l.b16 %v2277
        %v2333 = vunpack.c.h.b16 %v2277
        %v2334 = vunpack.c.l.b16 %v2278
        %v2335 = vunpack.c.h.b16 %v2278
        %v2336 = vunpack.c.l.b16 %v2279
        %v2337 = vunpack.c.h.b16 %v2279
        %v2338 = vunpack.c.l.b16 %v2280
        %v2339 = vunpack.c.h.b16 %v2280
        %v2340 = vunpack.c.l.b16 %v2281
        %v2341 = vunpack.c.h.b16 %v2281
        %v2342 = vpack.c.b16 %v2312, %v2310
        %v2343 = vpack.c.b16 %v2313, %v2311
        %v2344 = vpack.c.b16 %v2316, %v2314
        %v2345 = vpack.c.b16 %v2317, %v2315
        %v2346 = vpack.c.b16 %v2320, %v2318
        %v2347 = vpack.c.b16 %v2321, %v2319
        %v2348 = vpack.c.b16 %v2324, %v2322
        %v2349 = vpack.c.b16 %v2325, %v2323
        %v2350 = vpack.c.b16 %v2328, %v2326
        %v2351 = vpack.c.b16 %v2329, %v2327
        %v2352 = vpack.c.b16 %v2332, %v2330
        %v2353 = vpack.c.b16 %v2333, %v2331
        %v2354 = vpack.c.b16 %v2336, %v2334
        %v2355 = vpack.c.b16 %v2337, %v2335
        %v2356 = vpack.c.b16 %v2340, %v2338
        %v2357 = vpack.c.b16 %v2341, %v2339
        %2374 = vmatprep.subr.bf16.mxu0 %v2343
        %2375 = vmatpush1.bf16.msra.mxu0 %v2342
        %2376 = vmatprep.subr.bf16.mxu0 %v2345
        %2377 = vmatpush1.bf16.msra.mxu0 %v2344
        %2378 = vmatprep.subr.bf16.mxu0 %v2347
        %2379 = vmatpush1.bf16.msra.mxu0 %v2346
        %2380 = vmatprep.subr.bf16.mxu0 %v2349
        %2381 = vmatpush1.bf16.msra.mxu0 %v2348
        %2382 = vmatprep.subr.bf16.mxu0 %v2351
        %2383 = vmatpush1.bf16.msra.mxu0 %v2350
        %2384 = vmatprep.subr.bf16.mxu0 %v2353
        %2385 = vmatpush1.bf16.msra.mxu0 %v2352
        %2386 = vmatprep.subr.bf16.mxu0 %v2355
        %2387 = vmatpush1.bf16.msra.mxu0 %v2354
        %2388 = vmatprep.subr.bf16.mxu0 %v2357
        %2389 = vmatpush1.bf16.msra.mxu0 %v2356
        %2390 = vmatprep.subr.bf16.mxu0 0
        %2391 = vmatpush1.bf16.msra.mxu0 0
        %2392 = vmatprep.subr.bf16.mxu0 0
        %2393 = vmatpush1.bf16.msra.mxu0 0
        %2394 = vmatprep.subr.bf16.mxu0 0
        %2395 = vmatpush1.bf16.msra.mxu0 0
        %2396 = vmatprep.subr.bf16.mxu0 0
        %2397 = vmatpush1.bf16.msra.mxu0 0
        %2398 = vmatprep.subr.bf16.mxu0 0
        %2399 = vmatpush1.bf16.msra.mxu0 0
        %2400 = vmatprep.subr.bf16.mxu0 0
        %2401 = vmatpush1.bf16.msra.mxu0 0
        %2402 = vmatprep.subr.bf16.mxu0 0
        %2403 = vmatpush1.bf16.msra.mxu0 0
        %2404 = vmatprep.subr.bf16.mxu0 0
        %2405 = vmatpush1.bf16.msra.mxu0 0
        %2406 = vmatprep.mubr.bf16.mxu0 0
        %2407 = vmatmul.mubr.bf16.gmra.mrb[0].mxu0 %v2264
        %v2408 = vpop.f32.mrb[0].mxu0
        %v2409 = vadd.f32 %v2287, %v2408
        %v2410 = vpop.f32.mrb[0].mxu0
        %v2411 = vadd.f32 %v2291, %v2410
        %v2412 = vpop.f32.mrb[0].mxu0
        %v2413 = vadd.f32 %v2287, %v2412
        %v2414 = vpop.f32.mrb[0].mxu0
        %v2415 = vadd.f32 %v2291, %v2414
        %2416 = vmatprep.mubr.bf16.mxu0 0
        %2417 = vmatmul.mubr.bf16.gmra.mrb[0].mxu0 %v2265
        %v2418 = vpop.f32.mrb[0].mxu0
        %v2419 = vadd.f32 %v2287, %v2418
        %v2420 = vpop.f32.mrb[0].mxu0
        %v2421 = vadd.f32 %v2291, %v2420
        %v2422 = vpop.f32.mrb[0].mxu0
        %v2423 = vadd.f32 %v2287, %v2422
        %v2424 = vpop.f32.mrb[0].mxu0
        %v2425 = vadd.f32 %v2291, %v2424
        %2426 = vdwg.mxu0
        %v2427 = vmax.f32 %v2409, 0.0
        %v2428 = vmax.f32 %v2411, 0.0
        %v2429 = vmax.f32 %v2413, 0.0
        %v2430 = vmax.f32 %v2415, 0.0
        %v2431 = vmax.f32 %v2419, 0.0
        %v2432 = vmax.f32 %v2421, 0.0
        %v2433 = vmax.f32 %v2423, 0.0
        %v2434 = vmax.f32 %v2425, 0.0
        %v2435 = vpack.c.bf16 %v2429, %v2427
        %v2436 = vpack.c.bf16 %v2430, %v2428
        %v2437 = vpack.c.bf16 %v2433, %v2431
        %v2438 = vpack.c.bf16 %v2434, %v2432
        %v2439 = vld [vmem:[%s615] sm:$0xf]
        %v2440 = vld [vmem:[%s615 + $0x4] sm:$0xf]
        %v2441 = vld [vmem:[%s615 + $0x8] sm:$0xf]
        %v2442 = vld [vmem:[%s615 + $0xc] sm:$0xf]
        %v2443 = vld [vmem:[%s615 + $0x10] sm:$0xf]
        %v2444 = vld [vmem:[%s615 + $0x14] sm:$0xf]
        %v2445 = vld [vmem:[%s615 + $0x18] sm:$0xf]
        %v2446 = vld [vmem:[%s615 + $0x1c] sm:$0xf]
        %v2447 = vld [vmem:[%s615 + $0x20] sm:$0xf]
        %v2448 = vld [vmem:[%s615 + $0x24] sm:$0xf]
        %v2449 = vld [vmem:[%s615 + $0x28] sm:$0xf]
        %v2450 = vld [vmem:[%s615 + $0x2c] sm:$0xf]
        %v2451 = vld [vmem:[%s615 + $0x30] sm:$0xf]
        %v2452 = vld [vmem:[%s615 + $0x34] sm:$0xf]
        %v2453 = vld [vmem:[%s615 + $0x38] sm:$0xf]
        %v2454 = vld [vmem:[%s615 + $0x3c] sm:$0xf]
        %v2455 = vld [vmem:[%s615 + $0x40] sm:$0xf]
        %v2456 = vld [vmem:[%s615 + $0x44] sm:$0xf]
        %v2457 = vld [vmem:[%s615 + $0x48] sm:$0xf]
        %v2458 = vld [vmem:[%s615 + $0x4c] sm:$0xf]
        %v2459 = vld [vmem:[%s615 + $0x50] sm:$0xf]
        %v2460 = vld [vmem:[%s615 + $0x54] sm:$0xf]
        %v2461 = vld [vmem:[%s615 + $0x58] sm:$0xf]
        %v2462 = vld [vmem:[%s615 + $0x5c] sm:$0xf]
        %v2463 = vld [vmem:[%s615 + $0x60] sm:$0xf]
        %v2464 = vld [vmem:[%s615 + $0x64] sm:$0xf]
        %v2465 = vld [vmem:[%s615 + $0x68] sm:$0xf]
        %v2466 = vld [vmem:[%s615 + $0x6c] sm:$0xf]
        %v2467 = vld [vmem:[%s615 + $0x70] sm:$0xf]
        %v2468 = vld [vmem:[%s615 + $0x74] sm:$0xf]
        %v2469 = vld [vmem:[%s615 + $0x78] sm:$0xf]
        %v2470 = vld [vmem:[%s615 + $0x7c] sm:$0xf]
        %v2471 = vld [vmem:[%s714] sm:$0x1]
        %v2473 = vlaneseq
        %v2474 = vshrl.u32 %v2473, 7
        %v2475 = vsub.s32 0, %v2474
        %v2476 = vrot.slane %v2471, %v2475
        %v2510 = vunpack.c.l.b16 %v2439
        %v2511 = vunpack.c.l.b16 %v2440
        %v2512 = vunpack.c.l.b16 %v2441
        %v2513 = vunpack.c.l.b16 %v2442
        %v2514 = vunpack.c.l.b16 %v2443
        %v2515 = vunpack.c.l.b16 %v2444
        %v2516 = vunpack.c.l.b16 %v2445
        %v2517 = vunpack.c.l.b16 %v2446
        %v2518 = vunpack.c.l.b16 %v2447
        %v2519 = vunpack.c.l.b16 %v2448
        %v2520 = vunpack.c.l.b16 %v2449
        %v2521 = vunpack.c.l.b16 %v2450
        %v2522 = vunpack.c.l.b16 %v2451
        %v2523 = vunpack.c.l.b16 %v2452
        %v2524 = vunpack.c.l.b16 %v2453
        %v2525 = vunpack.c.l.b16 %v2454
        %v2526 = vunpack.c.l.b16 %v2455
        %v2527 = vunpack.c.l.b16 %v2456
        %v2528 = vunpack.c.l.b16 %v2457
        %v2529 = vunpack.c.l.b16 %v2458
        %v2530 = vunpack.c.l.b16 %v2459
        %v2531 = vunpack.c.l.b16 %v2460
        %v2532 = vunpack.c.l.b16 %v2461
        %v2533 = vunpack.c.l.b16 %v2462
        %v2534 = vunpack.c.l.b16 %v2463
        %v2535 = vunpack.c.l.b16 %v2464
        %v2536 = vunpack.c.l.b16 %v2465
        %v2537 = vunpack.c.l.b16 %v2466
        %v2538 = vunpack.c.l.b16 %v2467
        %v2539 = vunpack.c.l.b16 %v2468
        %v2540 = vunpack.c.l.b16 %v2469
        %v2541 = vunpack.c.l.b16 %v2470
        %v2542 = vpack.c.b16 %v2511, %v2510
        %v2543 = vpack.c.b16 %v2513, %v2512
        %v2544 = vpack.c.b16 %v2515, %v2514
        %v2545 = vpack.c.b16 %v2517, %v2516
        %v2546 = vpack.c.b16 %v2519, %v2518
        %v2547 = vpack.c.b16 %v2521, %v2520
        %v2548 = vpack.c.b16 %v2523, %v2522
        %v2549 = vpack.c.b16 %v2525, %v2524
        %v2550 = vpack.c.b16 %v2527, %v2526
        %v2551 = vpack.c.b16 %v2529, %v2528
        %v2552 = vpack.c.b16 %v2531, %v2530
        %v2553 = vpack.c.b16 %v2533, %v2532
        %v2554 = vpack.c.b16 %v2535, %v2534
        %v2555 = vpack.c.b16 %v2537, %v2536
        %v2556 = vpack.c.b16 %v2539, %v2538
        %v2557 = vpack.c.b16 %v2541, %v2540
        %2574 = vmatprep.subr.bf16.mxu0 0
        %2575 = vmatpush1.bf16.msra.mxu0 %v2542
        %2576 = vmatprep.subr.bf16.mxu0 0
        %2577 = vmatpush1.bf16.msra.mxu0 %v2543
        %2578 = vmatprep.subr.bf16.mxu0 0
        %2579 = vmatpush1.bf16.msra.mxu0 %v2544
        %2580 = vmatprep.subr.bf16.mxu0 0
        %2581 = vmatpush1.bf16.msra.mxu0 %v2545
        %2582 = vmatprep.subr.bf16.mxu0 0
        %2583 = vmatpush1.bf16.msra.mxu0 %v2546
        %2584 = vmatprep.subr.bf16.mxu0 0
        %2585 = vmatpush1.bf16.msra.mxu0 %v2547
        %2586 = vmatprep.subr.bf16.mxu0 0
        %2587 = vmatpush1.bf16.msra.mxu0 %v2548
        %2588 = vmatprep.subr.bf16.mxu0 0
        %2589 = vmatpush1.bf16.msra.mxu0 %v2549
        %2590 = vmatprep.subr.bf16.mxu0 0
        %2591 = vmatpush1.bf16.msra.mxu0 %v2550
        %2592 = vmatprep.subr.bf16.mxu0 0
        %2593 = vmatpush1.bf16.msra.mxu0 %v2551
        %2594 = vmatprep.subr.bf16.mxu0 0
        %2595 = vmatpush1.bf16.msra.mxu0 %v2552
        %2596 = vmatprep.subr.bf16.mxu0 0
        %2597 = vmatpush1.bf16.msra.mxu0 %v2553
        %2598 = vmatprep.subr.bf16.mxu0 0
        %2599 = vmatpush1.bf16.msra.mxu0 %v2554
        %2600 = vmatprep.subr.bf16.mxu0 0
        %2601 = vmatpush1.bf16.msra.mxu0 %v2555
        %2602 = vmatprep.subr.bf16.mxu0 0
        %2603 = vmatpush1.bf16.msra.mxu0 %v2556
        %2604 = vmatprep.subr.bf16.mxu0 0
        %2605 = vmatpush1.bf16.msra.mxu0 %v2557
        %2606 = vmatprep.mubr.bf16.mxu0 %v2436
        %2607 = vmatmul.mubr.bf16.gmra.mrb[0].mxu0 %v2435
        %v2608 = vpop.f32.mrb[0].mxu0
        %v2609 = vadd.f32 %v2476, %v2608
        %v2610 = vpop.f32.mrb[0].mxu0
        %v2611 = vpop.f32.mrb[0].mxu0
        %v2612 = vadd.f32 %v2476, %v2611
        %v2613 = vpop.f32.mrb[0].mxu0
        %2614 = vmatprep.mubr.bf16.mxu0 %v2438
        %2615 = vmatmul.mubr.bf16.gmra.mrb[0].mxu0 %v2437
        %v2616 = vpop.f32.mrb[0].mxu0
        %v2617 = vadd.f32 %v2476, %v2616
        %v2618 = vpop.f32.mrb[0].mxu0
        %v2619 = vpop.f32.mrb[0].mxu0
        %v2620 = vadd.f32 %v2476, %v2619
        %v2621 = vpop.f32.mrb[0].mxu0
        %2622 = vdwg.mxu0
        %v2623 = vadd.f32 %v2260, %v2609
        %v2624 = vadd.f32 %v2261, %v2612
        %v2625 = vadd.f32 %v2262, %v2617
        %v2626 = vadd.f32 %v2263, %v2620
        %v2627 = vld [vmem:[%s717] sm:$0x1]
        %v2628 = vld [vmem:[%s720] sm:$0x1]
        %2629 = vadd.xlane.f32.xlu0 %v2623
        %v2630 = vpop.xlane.xlu0 %2629
        %2631 = vadd.xlane.f32.xlu0 %v2624
        %v2632 = vpop.xlane.xlu0 %2631
        %2633 = vadd.xlane.f32.xlu0 %v2625
        %v2634 = vpop.xlane.xlu0 %2633
        %2635 = vadd.xlane.f32.xlu0 %v2626
        %v2636 = vpop.xlane.xlu0 %2635
        %v2637 = vmul.f32 %v2630, %v2207
        %v2638 = vmul.f32 %v2632, %v2207
        %v2639 = vmul.f32 %v2634, %v2207
        %v2640 = vmul.f32 %v2636, %v2207
        %v2641 = vsub.f32 %v2623, %v2637
        %v2642 = vsub.f32 %v2624, %v2638
        %v2643 = vsub.f32 %v2625, %v2639
        %v2644 = vsub.f32 %v2626, %v2640
        %v2645 = vmul.f32 %v2641, %v2641
        %v2646 = vmul.f32 %v2642, %v2642
        %v2647 = vmul.f32 %v2643, %v2643
        %v2648 = vmul.f32 %v2644, %v2644
        %2649 = vadd.xlane.f32.xlu0 %v2645
        %v2650 = vpop.xlane.xlu0 %2649
        %2651 = vadd.xlane.f32.xlu0 %v2646
        %v2652 = vpop.xlane.xlu0 %2651
        %2653 = vadd.xlane.f32.xlu0 %v2647
        %v2654 = vpop.xlane.xlu0 %2653
        %2655 = vadd.xlane.f32.xlu0 %v2648
        %v2656 = vpop.xlane.xlu0 %2655
        %v2657 = vmul.f32 %v2650, %v2207
        %v2658 = vmul.f32 %v2652, %v2207
        %v2659 = vmul.f32 %v2654, %v2207
        %v2660 = vmul.f32 %v2656, %v2207
        %v2661 = vadd.f32 %v2657, 0.1
        %v2662 = vadd.f32 %v2658, 0.1
        %v2663 = vadd.f32 %v2659, 0.1
        %v2664 = vadd.f32 %v2660, 0.1
        %v2665 = vrsqrt.pop %v2661
        %v2666 = vrsqrt.pop %v2662
        %v2667 = vrsqrt.pop %v2663
        %v2668 = vrsqrt.pop %v2664
        %v2669 = vmul.f32 %v2641, %v2665
        %v2670 = vmul.f32 %v2642, %v2666
        %v2671 = vmul.f32 %v2643, %v2667
        %v2672 = vmul.f32 %v2644, %v2668
        %v2674 = vlaneseq
        %v2675 = vshrl.u32 %v2674, 7
        %v2676 = vsub.s32 0, %v2675
        %v2677 = vrot.slane %v2627, %v2676
        %v2679 = vmul.f32 %v2669, %v2677
        %v2680 = vmul.f32 %v2670, %v2677
        %v2681 = vmul.f32 %v2671, %v2677
        %v2682 = vmul.f32 %v2672, %v2677
        %v2684 = vlaneseq
        %v2685 = vshrl.u32 %v2684, 7
        %v2686 = vsub.s32 0, %v2685
        %v2687 = vrot.slane %v2628, %v2686
        %v2689 = vadd.f32 %v2679, %v2687
        %v2690 = vadd.f32 %v2680, %v2687
        %v2691 = vadd.f32 %v2681, %v2687
        %v2692 = vadd.f32 %v2682, %v2687
        %v2693 = vld [vmem:[#allocation2] sm:$0xff]
        %v2694 = vld [vmem:[#allocation2 + $0x8] sm:$0xff]
        %v2695 = vld [vmem:[#allocation2 + $0x10] sm:$0xff]
        %v2696 = vld [vmem:[#allocation2 + $0x18] sm:$0xff]
        %v2697 = vadd.f32 %v2693, %v2689
        %v2698 = vadd.f32 %v2694, %v2690
        %v2699 = vadd.f32 %v2695, %v2691
        %v2700 = vadd.f32 %v2696, %v2692
        %2701 = vst [vmem:[#allocation2] sm:$0xff] %v2697
        %2702 = vst [vmem:[#allocation2 + $0x8] sm:$0xff] %v2698
        %2703 = vst [vmem:[#allocation2 + $0x10] sm:$0xff] %v2699
        %2704 = vst [vmem:[#allocation2 + $0x18] sm:$0xff] %v2700
        %p2705 = scmp.eq.s32.totalorder %s37, 1
        // Predicated region
        $region97: #{tpu_custom_call.1} parent=71 // pred_check
          %p2706 = pneg %p2705
        $region98: #{tpu_custom_call.1} parent=71 // pred_check_branch
          %2708 = sbr.rel (%p2706) target = $region100
        $region99: #{tpu_custom_call.1} parent=71 // pred_region
          %v2709 = vld [vmem:[#allocation2] sm:$0xff]
          %v2710 = vld [vmem:[#allocation2 + $0x8] sm:$0xff]
          %v2711 = vld [vmem:[#allocation2 + $0x10] sm:$0xff]
          %v2712 = vld [vmem:[#allocation2 + $0x18] sm:$0xff]
          %2713 = vst [vmem:[#allocation13] sm:$0xff] %v2709
          %2714 = vst [vmem:[#allocation13 + $0x8] sm:$0xff] %v2710
          %2715 = vst [vmem:[#allocation13 + $0x10] sm:$0xff] %v2711
          %2716 = vst [vmem:[#allocation13 + $0x18] sm:$0xff] %v2712
        $region100: #{tpu_custom_call.1} parent=71 // pred_fallthru
          _
        // Predicated region
        $region101: #{tpu_custom_call.1} parent=71 // pred_check
          %p2717 = pneg %p400
        $region102: #{tpu_custom_call.1} parent=71 // pred_check_branch
          %2719 = sbr.rel (%p2717) target = $region104
        $region103: #{tpu_custom_call.1} parent=71 // pred_region
          %s2720 = smul.u32 2, %s36
          %s2722 = ssub.s32 512, 512
          %2723 = vsyncadd [#allocation6], %s2722
          %s2724 = smul.addr %s2720, 2
          %s2725 = smul.addr %s2724, 128
          %s2726 = scalar_lea.hbm %s13, %s2725
          %s2727 = sshll.u32 [#allocation13], 4
          %s2728 = int_to_ptr.vmem [resolvable:$true] %s2727
          %2733 = dma.vmem_to_hbm [thread:$0]  %s2728, 512, %s2726, [#allocation6], 128, 128, 8
        $region104: #{tpu_custom_call.1} parent=71 // pred_fallthru
          _
        // Predicated region
        $region105: #{tpu_custom_call.1} parent=71 // pred_check
          %p2734 = pneg %p400
        $region106: #{tpu_custom_call.1} parent=71 // pred_check_branch
          %2736 = sbr.rel (%p2734) target = $region108
        $region107: #{tpu_custom_call.1} parent=71 // pred_region
          %2737 = dma.done [#allocation6], 512
        $region108: #{tpu_custom_call.1} parent=71 // pred_fallthru
          _
      $region72: #{tpu_custom_call.1} parent=5 // pred_fallthru
        _
      %p2738 = scmp.le.s32.totalorder 2, %s27
      // Predicated region
      $region109: #{tpu_custom_call.1} parent=5 // pred_check
        %p2739 = pneg %p2738
      $region110: #{tpu_custom_call.1} parent=5 // pred_check_branch
        %2741 = sbr.rel (%p2739) target = $region112
      $region111: #{tpu_custom_call.1} parent=5 // pred_region
        %s2742 = ssub.s32 %s27, 2
      $region112: #{tpu_custom_call.1} parent=5 // pred_fallthru
        _
    $region6: #{tpu_custom_call.1} parent=1 // loop_footer
      %s31 = sadd.s32 1, %s27
    $region7: #{tpu_custom_call.1} parent=1 // loop_footer_branch
      %26 = sbr.rel target = $region3
    $region8: #{tpu_custom_call.1} parent=1 // loop_exit
      _
    %2743 = vsyncpa [#allocation5], 1
    %s2744 = scalar_lea.sflag [#allocation5], 1
    %2745 = vsyncpa %s2744, 1
    %2746 = vsyncpa [#allocation8], 1
    %s2747 = scalar_lea.sflag [#allocation8], 1
    %2748 = vsyncpa %s2747, 1
    %2749 = vsyncpa [#allocation11], 1
    %s2750 = scalar_lea.sflag [#allocation11], 1
    %2751 = vsyncpa %s2750, 1
    %2752 = vsyncpa [#allocation6], 1
    %s2753 = scalar_lea.sflag [#allocation6], 1
    %2754 = vsyncpa %s2753, 1

</llo_original>
